<compile_context>
chip_gen: v7x
topology: tpu7x:2x2x1
jax: 0.10.0
libtpu: 0.0.40
codegen_flags: <defaults>
</compile_context>

<pallas_src>
from functools import partial

import numpy as np
import jax
import jax.numpy as jnp
from jax import lax
from jax.experimental import pallas as pl
from jax.experimental.pallas import tpu as pltpu

_EPS = 1e-5  # nn.LayerNorm default eps


# ---------------------------------------------------------------------------
# In-kernel helpers (pure jnp / pl, traced inside the Pallas body)
# ---------------------------------------------------------------------------
def _layernorm(x, w, b):
    mu = jnp.mean(x, axis=-1, keepdims=True)
    var = jnp.mean((x - mu) ** 2, axis=-1, keepdims=True)
    return (x - mu) * lax.rsqrt(var + _EPS) * w + b


def _newton_recip(den):
    """EUP approximate reciprocal + one Newton step (f32-accurate)."""
    inv = pl.reciprocal(den, approx=True)
    return inv * (2.0 - den * inv)


def _erf(x):
    # Abramowitz & Stegun 7.1.26, |err| < 1.5e-7 -> exact at float32 precision.
    a1, a2, a3, a4, a5 = 0.254829592, -0.284496736, 1.421413741, -1.453152027, 1.061405429
    p = 0.3275911
    s = jnp.where(x < 0, -1.0, 1.0)
    ax = jnp.abs(x)
    t = _newton_recip(1.0 + p * ax)            # EUP recip instead of VALU divide
    poly = ((((a5 * t + a4) * t + a3) * t + a2) * t + a1) * t
    return s * (1.0 - poly * jnp.exp(-ax * ax))


def _gelu_exact(x):
    # torch.nn.functional.gelu default = exact erf-based GELU
    return 0.5 * x * (1.0 + _erf(x * 0.7071067811865476))


# ---------------------------------------------------------------------------
# Fused kernel: whole layer stack for TB batch samples per grid step
# ---------------------------------------------------------------------------
def _fused_kernel(x_ref, wqkv_ref, wo_ref, w1_ref, b1_ref, w2_ref, vecs_ref,
                  o_ref, *, depth, heads, dim_head, seq, batch_tile):
    H, dh, S, TB = heads, dim_head, seq, batch_tile
    inner = H * dh
    x = x_ref[...].astype(jnp.float32)                       # (TB*S, D), resident across layers

    def layer(l, x):
        vecs = vecs_ref[l]                                   # (6, D) packed small vectors
        ln1w, ln1b, bo = vecs[0:1], vecs[1:2], vecs[2:3]
        ln2w, ln2b, b2 = vecs[3:4], vecs[4:5], vecs[5:6]

        # ---- Residual(PreNorm(Attention)) ----
        xn = _layernorm(x, ln1w, ln1b)
        # One packed QKV matmul (softmax scale pre-folded into the Q columns).
        qkv = jnp.dot(xn, wqkv_ref[l], preferred_element_type=jnp.float32)   # (TB*S, 3*inner)
        q = qkv[:, :inner]
        k = qkv[:, inner:2 * inner]
        v = qkv[:, 2 * inner:]

        # Per-(sample, head) score blocks, stacked along sublanes so the whole
        # softmax (max/exp/sum/reciprocal) runs ONCE over all of them.
        sims = []
        for b in range(TB):
            for h in range(H):
                qbh = q[b * S:(b + 1) * S, h * dh:(h + 1) * dh]
                kbh = k[b * S:(b + 1) * S, h * dh:(h + 1) * dh]
                sims.append(lax.dot_general(qbh, kbh, (((1,), (1,)), ((), ())),
                                            preferred_element_type=jnp.float32))
        sim = jnp.concatenate(sims, axis=0)                  # (TB*H*S, S)
        sim = sim - jnp.max(sim, axis=-1, keepdims=True)     # stable softmax
        e = jnp.exp(sim)
        p = e * _newton_recip(jnp.sum(e, axis=-1, keepdims=True))

        # Per-(sample, head) P@V, re-assembled into (TB*S, inner) so the output
        # projection is a single well-shaped K=inner matmul against W_out.
        rows = []
        for b in range(TB):
            houts = []
            for h in range(H):
                r = (b * H + h) * S
                pbh = p[r:r + S, :]
                vbh = v[b * S:(b + 1) * S, h * dh:(h + 1) * dh]
                houts.append(jnp.dot(pbh, vbh, preferred_element_type=jnp.float32))
            rows.append(jnp.concatenate(houts, axis=-1))      # (S, inner)
        attn_in = jnp.concatenate(rows, axis=0)               # (TB*S, inner)
        x = x + jnp.dot(attn_in, wo_ref[l], preferred_element_type=jnp.float32) + bo

        # ---- Residual(PreNorm(FeedForward: Linear -> GEGLU -> Linear)) ----
        xn = _layernorm(x, ln2w, ln2b)
        h12 = jnp.dot(xn, w1_ref[l], preferred_element_type=jnp.float32) + b1_ref[l]
        hidden = h12.shape[-1] // 2                            # 128-lane aligned split
        g = h12[:, :hidden] * _gelu_exact(h12[:, hidden:])
        # TODO(synk): Dropout with p>0 (training) not implemented; p=0 / eval is identity.
        x = x + jnp.dot(g, w2_ref[l], preferred_element_type=jnp.float32) + b2
        return x

    if depth <= 4:                       # shallow stack: full static unroll
        for l in range(depth):
            x = layer(l, x)
    else:                                # deep stack: bound vreg live ranges
        x = lax.fori_loop(0, depth, layer, x)

    o_ref[...] = x.astype(o_ref.dtype)


# ---------------------------------------------------------------------------
# Parameter prep: stack across depth, fold softmax scale, pack small vectors
# ---------------------------------------------------------------------------
def _prep_kernel_params(layers, heads, dim_head):
    D = layers[0][0]["w_qkv"].shape[0]
    inner = heads * dim_head
    scale = dim_head ** -0.5
    wqkv, wo, w1, b1, w2, vecs = [], [], [], [], [], []
    for attn_p, ff_p in layers:
        wq = attn_p["w_qkv"][:, :inner] * scale               # fold softmax scale into Q
        wqkv.append(jnp.concatenate([wq, attn_p["w_qkv"][:, inner:]], axis=-1))  # (D, 3*inner)
        wo.append(attn_p["w_out"])                             # (inner, D)
        w1.append(ff_p["w1"])                                   # (D, 2*hidden)
        b1.append(ff_p["b1"].reshape(1, -1))                    # (1, 2*hidden)
        w2.append(ff_p["w2"])                                   # (hidden, D)
        vecs.append(jnp.stack([attn_p["ln_w"].reshape(D), attn_p["ln_b"].reshape(D),
                               attn_p["b_out"].reshape(D),
                               ff_p["ln_w"].reshape(D), ff_p["ln_b"].reshape(D),
                               ff_p["b2"].reshape(D)], axis=0))  # (6, D)
    st = lambda xs: jnp.stack(xs, axis=0)
    return st(wqkv), st(wo), st(w1), st(b1), st(w2), st(vecs)


def _resident_spec(a):
    """Full-array block, constant block index across the batch grid -> stays in VMEM."""
    n = a.ndim
    return pl.BlockSpec(a.shape, lambda i, _n=n: (0,) * _n)


def _parallel_cores():
    """TensorCores a 'parallel' grid axis can be sharded over on this chip."""
    try:
        kind = jax.devices()[0].device_kind.lower()
    except Exception:
        return 1
    if "v7" in kind:                                          # v7x: 2 TCs / chip
        return 2
    if ("v4" in kind or "v5p" in kind) and "lite" not in kind:  # megacore chips
        return 2
    return 1                                                   # v5e / v6e: 1 TC


def _pick_batch_tile(B, cores, bytes_per_sample, cap_bytes=1 << 20):
    """Largest tile that divides B, keeps the grid a multiple of `cores`, and
    keeps the activation block modest so the x/out DMA stays pipelined."""
    cap = max(1, cap_bytes // max(1, bytes_per_sample))
    for tb in range(min(B, cap), 0, -1):
        if B % tb:
            continue
        if (B // tb) % cores == 0 or B < cores:
            return tb
    return 1


def variable_transformer(x, layers, heads, dim_head, mult=4):
    B, S, D = x.shape
    depth = len(layers)
    hidden = layers[0][1]["w2"].shape[0]
    if hidden != D * mult:
        raise ValueError(f"mult={mult} inconsistent with FFN weights "
                         f"(hidden={hidden}, dim={D})")

    params = _prep_kernel_params(layers, heads, dim_head)

    cores = _parallel_cores()
    tb = _pick_batch_tile(B, cores, S * D * x.dtype.itemsize)
    grid_b = B // tb

    # --- VMEM scaling guard (all layer weights stay resident across the grid) ---
    param_bytes = sum(int(p.size) * p.dtype.itemsize for p in params)
    block_bytes = tb * S * D * 4
    est_vmem = 2 * param_bytes + 4 * block_bytes + (2 << 20)   # dbl-buffered params + in/out + slack
    budget = 48 << 20                                          # safe on v7x (64 MiB / TensorCore)
    if est_vmem > budget:
        # TODO(synk): stream one layer's weights per step (extra 'arbitrary' depth
        # grid axis) instead of keeping the whole stack resident in VMEM.
        raise NotImplementedError("resident layer stack exceeds the v7x-safe VMEM budget")
    vmem_limit = None if est_vmem <= (16 << 20) else int(est_vmem)

    kern = partial(_fused_kernel, depth=depth, heads=heads, dim_head=dim_head,
                   seq=S, batch_tile=tb)

    out = pl.pallas_call(
        kern,
        out_shape=jax.ShapeDtypeStruct((B * S, D), x.dtype),
        grid=(grid_b,),
        in_specs=[pl.BlockSpec((tb * S, D), lambda i: (i, 0))]
                 + [_resident_spec(p) for p in params],
        out_specs=pl.BlockSpec((tb * S, D), lambda i: (i, 0)),
        compiler_params=pltpu.CompilerParams(
            dimension_semantics=("parallel",),
            vmem_limit_bytes=vmem_limit),
    )(x.reshape(B * S, D), *params)
    return out.reshape(B, S, D)


# ---------------------------------------------------------------------------
# Deterministic parameter initialization (shapes from the module __init__)
# ---------------------------------------------------------------------------
def init_params(key, dim, depth, heads, dim_head, mult=4):
    inner = heads * dim_head
    hidden = dim * mult
    layers = []
    for d in range(depth):
        keys = jax.random.split(jax.random.fold_in(key, d), 6)
        attn = dict(
            ln_w=jnp.ones((1, dim), jnp.float32),
            ln_b=jnp.zeros((1, dim), jnp.float32),
            w_qkv=0.05 * jax.random.normal(keys[0], (dim, 3 * inner), jnp.float32),
            w_out=0.05 * jax.random.normal(keys[1], (inner, dim), jnp.float32),
            b_out=0.01 * jax.random.normal(keys[2], (1, dim), jnp.float32),
        )
        ff = dict(
            ln_w=jnp.ones((1, dim), jnp.float32),
            ln_b=jnp.zeros((1, dim), jnp.float32),
            w1=0.05 * jax.random.normal(keys[3], (dim, 2 * hidden), jnp.float32),
            b1=0.01 * jax.random.normal(keys[4], (1, 2 * hidden), jnp.float32),
            w2=0.05 * jax.random.normal(keys[5], (hidden, dim), jnp.float32),
            b2=jnp.zeros((1, dim), jnp.float32),
        )
        layers.append((attn, ff))
    return layers


# ---------------------------------------------------------------------------
# Pure-JAX reference (mirrors the PyTorch forward) for a correctness check
# ---------------------------------------------------------------------------
def _reference_forward(x, layers, heads, dim_head, mult=4):
    inner = heads * dim_head
    scale = dim_head ** -0.5
    hidden = x.shape[-1] * mult
    for attn_p, ff_p in layers:
        xn = _layernorm(x, attn_p["ln_w"][0], attn_p["ln_b"][0])
        qkv = xn @ attn_p["w_qkv"]
        q, k, v = jnp.split(qkv, 3, axis=-1)
        B, S, _ = q.shape
        qh = q.reshape(B, S, heads, dim_head).transpose(0, 2, 1, 3)
        kh = k.reshape(B, S, heads, dim_head).transpose(0, 2, 1, 3)
        vh = v.reshape(B, S, heads, dim_head).transpose(0, 2, 1, 3)
        sim = jnp.einsum("bhid,bhjd->bhij", qh, kh) * scale
        attn = jax.nn.softmax(sim, axis=-1)
        out = jnp.einsum("bhij,bhjd->bhid", attn, vh)
        out = out.transpose(0, 2, 1, 3).reshape(B, S, inner)
        x = x + (out @ attn_p["w_out"] + attn_p["b_out"][0])

        xn = _layernorm(x, ff_p["ln_w"][0], ff_p["ln_b"][0])
        h = xn @ ff_p["w1"] + ff_p["b1"][0]
        val, gates = h[..., :hidden], h[..., hidden:]
        g = val * jax.nn.gelu(gates, approximate=False)   # exact erf GELU, like torch
        x = x + (g @ ff_p["w2"] + ff_p["b2"][0])
    return x


# ---------------------------------------------------------------------------
if __name__ == "__main__":
    # VariableTransformer(dim=32, depth=2, heads=4, dim_head=8,
    #                     attn_dropout=0.0, ff_dropout=0.0)
    B, S, D = 2, 8, 32
    depth, heads, dim_head, mult = 2, 4, 8, 4

    key = jax.random.PRNGKey(0)
    kx, kp = jax.random.split(key)
    x = jax.random.normal(kx, (B, S, D), jnp.float32)
    layers = init_params(kp, D, depth, heads, dim_head, mult)

    out = variable_transformer(x, layers, heads, dim_head, mult)
    out = jax.block_until_ready(out)

    ref = _reference_forward(x, layers, heads, dim_head, mult)
    np.testing.assert_allclose(np.asarray(out), np.asarray(ref), rtol=1e-3, atol=1e-4)

    print("KERNEL_OK")
</pallas_src>

<mosaic_0001>
module attributes {stable_mosaic.version = 11 : i64} {
  func.func @_fused_kernel(%arg0: i32, %arg1: memref<16x32xf32, #tpu.memory_space<vmem>>, %arg2: memref<2x32x96xf32, #tpu.memory_space<vmem>>, %arg3: memref<2x32x32xf32, #tpu.memory_space<vmem>>, %arg4: memref<2x32x256xf32, #tpu.memory_space<vmem>>, %arg5: memref<2x1x256xf32, #tpu.memory_space<vmem>>, %arg6: memref<2x128x32xf32, #tpu.memory_space<vmem>>, %arg7: memref<2x6x32xf32, #tpu.memory_space<vmem>>, %arg8: memref<16x32xf32, #tpu.memory_space<vmem>>) attributes {dimension_semantics = [#tpu.dimension_semantics<parallel>], iteration_bounds = array<i64: 1>, scalar_prefetch = 0 : i64, scratch_operands = 0 : i64, tpu.core_type = #tpu.core_type<tc>, window_params = [{transform_indices = @transform_0, window_bounds = array<i64: 16, 32>}, {pipeline_mode = #tpu.pipeline_mode<synchronous>, transform_indices = @transform_1, window_bounds = array<i64: 2, 32, 96>}, {pipeline_mode = #tpu.pipeline_mode<synchronous>, transform_indices = @transform_2, window_bounds = array<i64: 2, 32, 32>}, {pipeline_mode = #tpu.pipeline_mode<synchronous>, transform_indices = @transform_3, window_bounds = array<i64: 2, 32, 256>}, {pipeline_mode = #tpu.pipeline_mode<synchronous>, transform_indices = @transform_4, window_bounds = array<i64: 2, 1, 256>}, {pipeline_mode = #tpu.pipeline_mode<synchronous>, transform_indices = @transform_5, window_bounds = array<i64: 2, 128, 32>}, {pipeline_mode = #tpu.pipeline_mode<synchronous>, transform_indices = @transform_6, window_bounds = array<i64: 2, 6, 32>}, {transform_indices = @transform_7, window_bounds = array<i64: 16, 32>}]} {
    %c0 = arith.constant 0 : index
    %c0_0 = arith.constant 0 : index
    %0 = vector.load %arg1[%c0, %c0_0] : memref<16x32xf32, #tpu.memory_space<vmem>>, vector<16x32xf32>
    %c0_1 = arith.constant 0 : index
    %c0_2 = arith.constant 0 : index
    %c0_3 = arith.constant 0 : index
    %1 = vector.load %arg7[%c0_1, %c0_2, %c0_3] : memref<2x6x32xf32, #tpu.memory_space<vmem>>, vector<1x6x32xf32>
    %2 = vector.shape_cast %1 : vector<1x6x32xf32> to vector<6x32xf32>
    %3 = vector.extract_strided_slice %2 {offsets = [0, 0], sizes = [1, 32], strides = [1, 1]} : vector<6x32xf32> to vector<1x32xf32>
    %4 = vector.extract_strided_slice %2 {offsets = [1, 0], sizes = [1, 32], strides = [1, 1]} : vector<6x32xf32> to vector<1x32xf32>
    %5 = vector.extract_strided_slice %2 {offsets = [2, 0], sizes = [1, 32], strides = [1, 1]} : vector<6x32xf32> to vector<1x32xf32>
    %6 = vector.extract_strided_slice %2 {offsets = [3, 0], sizes = [1, 32], strides = [1, 1]} : vector<6x32xf32> to vector<1x32xf32>
    %7 = vector.extract_strided_slice %2 {offsets = [4, 0], sizes = [1, 32], strides = [1, 1]} : vector<6x32xf32> to vector<1x32xf32>
    %8 = vector.extract_strided_slice %2 {offsets = [5, 0], sizes = [1, 32], strides = [1, 1]} : vector<6x32xf32> to vector<1x32xf32>
    %cst = arith.constant dense<0.000000e+00> : vector<16xf32>
    %9 = vector.multi_reduction <add>, %0, %cst [1] : vector<16x32xf32> to vector<16xf32>
    %10 = vector.shape_cast %9 : vector<16xf32> to vector<16x1xf32>
    %cst_4 = arith.constant 3.200000e+01 : f32
    %11 = vector.broadcast %cst_4 : f32 to vector<16x1xf32>
    %12 = arith.divf %10, %11 : vector<16x1xf32>
    %13 = vector.broadcast %12 : vector<16x1xf32> to vector<16x32xf32>
    %14 = arith.subf %0, %13 : vector<16x32xf32>
    %15 = arith.mulf %14, %14 : vector<16x32xf32>
    %cst_5 = arith.constant dense<0.000000e+00> : vector<16xf32>
    %16 = vector.multi_reduction <add>, %15, %cst_5 [1] : vector<16x32xf32> to vector<16xf32>
    %17 = vector.shape_cast %16 : vector<16xf32> to vector<16x1xf32>
    %cst_6 = arith.constant 3.200000e+01 : f32
    %18 = vector.broadcast %cst_6 : f32 to vector<16x1xf32>
    %19 = arith.divf %17, %18 : vector<16x1xf32>
    %20 = vector.broadcast %12 : vector<16x1xf32> to vector<16x32xf32>
    %21 = arith.subf %0, %20 : vector<16x32xf32>
    %cst_7 = arith.constant 9.99999974E-6 : f32
    %22 = vector.broadcast %cst_7 : f32 to vector<16x1xf32>
    %23 = arith.addf %19, %22 : vector<16x1xf32>
    %24 = math.rsqrt %23 : vector<16x1xf32>
    %25 = vector.broadcast %24 : vector<16x1xf32> to vector<16x32xf32>
    %26 = arith.mulf %21, %25 : vector<16x32xf32>
    %27 = vector.broadcast %3 : vector<1x32xf32> to vector<16x32xf32>
    %28 = arith.mulf %26, %27 : vector<16x32xf32>
    %29 = vector.broadcast %4 : vector<1x32xf32> to vector<16x32xf32>
    %30 = arith.addf %28, %29 : vector<16x32xf32>
    %c0_8 = arith.constant 0 : index
    %c0_9 = arith.constant 0 : index
    %c0_10 = arith.constant 0 : index
    %31 = vector.load %arg2[%c0_8, %c0_9, %c0_10] : memref<2x32x96xf32, #tpu.memory_space<vmem>>, vector<1x32x96xf32>
    %32 = vector.shape_cast %31 : vector<1x32x96xf32> to vector<32x96xf32>
    %cst_11 = arith.constant dense<0.000000e+00> : vector<16x96xf32>
    %33 = tpu.matmul %30, %32, %cst_11 {dimension_numbers = #tpu.dot_dimension_numbers<[1], [0], [0], [1], [0, 0, 1, 1], [], []>} : vector<16x32xf32>, vector<32x96xf32>, vector<16x96xf32> -> vector<16x96xf32>
    %34 = vector.extract_strided_slice %33 {offsets = [0, 0], sizes = [16, 32], strides = [1, 1]} : vector<16x96xf32> to vector<16x32xf32>
    %35 = vector.extract_strided_slice %33 {offsets = [0, 32], sizes = [16, 32], strides = [1, 1]} : vector<16x96xf32> to vector<16x32xf32>
    %36 = vector.extract_strided_slice %33 {offsets = [0, 64], sizes = [16, 32], strides = [1, 1]} : vector<16x96xf32> to vector<16x32xf32>
    %37 = vector.extract_strided_slice %34 {offsets = [0, 0], sizes = [8, 8], strides = [1, 1]} : vector<16x32xf32> to vector<8x8xf32>
    %38 = vector.extract_strided_slice %35 {offsets = [0, 0], sizes = [8, 8], strides = [1, 1]} : vector<16x32xf32> to vector<8x8xf32>
    %cst_12 = arith.constant dense<0.000000e+00> : vector<8x8xf32>
    %39 = tpu.matmul %37, %38, %cst_12 {dimension_numbers = #tpu.dot_dimension_numbers<[1], [1], [0], [0], [0, 0, 1, 0], [], []>} : vector<8x8xf32>, vector<8x8xf32>, vector<8x8xf32> -> vector<8x8xf32>
    %40 = vector.extract_strided_slice %34 {offsets = [0, 8], sizes = [8, 8], strides = [1, 1]} : vector<16x32xf32> to vector<8x8xf32>
    %41 = vector.extract_strided_slice %35 {offsets = [0, 8], sizes = [8, 8], strides = [1, 1]} : vector<16x32xf32> to vector<8x8xf32>
    %cst_13 = arith.constant dense<0.000000e+00> : vector<8x8xf32>
    %42 = tpu.matmul %40, %41, %cst_13 {dimension_numbers = #tpu.dot_dimension_numbers<[1], [1], [0], [0], [0, 0, 1, 0], [], []>} : vector<8x8xf32>, vector<8x8xf32>, vector<8x8xf32> -> vector<8x8xf32>
    %43 = vector.extract_strided_slice %34 {offsets = [0, 16], sizes = [8, 8], strides = [1, 1]} : vector<16x32xf32> to vector<8x8xf32>
    %44 = vector.extract_strided_slice %35 {offsets = [0, 16], sizes = [8, 8], strides = [1, 1]} : vector<16x32xf32> to vector<8x8xf32>
    %cst_14 = arith.constant dense<0.000000e+00> : vector<8x8xf32>
    %45 = tpu.matmul %43, %44, %cst_14 {dimension_numbers = #tpu.dot_dimension_numbers<[1], [1], [0], [0], [0, 0, 1, 0], [], []>} : vector<8x8xf32>, vector<8x8xf32>, vector<8x8xf32> -> vector<8x8xf32>
    %46 = vector.extract_strided_slice %34 {offsets = [0, 24], sizes = [8, 8], strides = [1, 1]} : vector<16x32xf32> to vector<8x8xf32>
    %47 = vector.extract_strided_slice %35 {offsets = [0, 24], sizes = [8, 8], strides = [1, 1]} : vector<16x32xf32> to vector<8x8xf32>
    %cst_15 = arith.constant dense<0.000000e+00> : vector<8x8xf32>
    %48 = tpu.matmul %46, %47, %cst_15 {dimension_numbers = #tpu.dot_dimension_numbers<[1], [1], [0], [0], [0, 0, 1, 0], [], []>} : vector<8x8xf32>, vector<8x8xf32>, vector<8x8xf32> -> vector<8x8xf32>
    %49 = vector.extract_strided_slice %34 {offsets = [8, 0], sizes = [8, 8], strides = [1, 1]} : vector<16x32xf32> to vector<8x8xf32>
    %50 = vector.extract_strided_slice %35 {offsets = [8, 0], sizes = [8, 8], strides = [1, 1]} : vector<16x32xf32> to vector<8x8xf32>
    %cst_16 = arith.constant dense<0.000000e+00> : vector<8x8xf32>
    %51 = tpu.matmul %49, %50, %cst_16 {dimension_numbers = #tpu.dot_dimension_numbers<[1], [1], [0], [0], [0, 0, 1, 0], [], []>} : vector<8x8xf32>, vector<8x8xf32>, vector<8x8xf32> -> vector<8x8xf32>
    %52 = vector.extract_strided_slice %34 {offsets = [8, 8], sizes = [8, 8], strides = [1, 1]} : vector<16x32xf32> to vector<8x8xf32>
    %53 = vector.extract_strided_slice %35 {offsets = [8, 8], sizes = [8, 8], strides = [1, 1]} : vector<16x32xf32> to vector<8x8xf32>
    %cst_17 = arith.constant dense<0.000000e+00> : vector<8x8xf32>
    %54 = tpu.matmul %52, %53, %cst_17 {dimension_numbers = #tpu.dot_dimension_numbers<[1], [1], [0], [0], [0, 0, 1, 0], [], []>} : vector<8x8xf32>, vector<8x8xf32>, vector<8x8xf32> -> vector<8x8xf32>
    %55 = vector.extract_strided_slice %34 {offsets = [8, 16], sizes = [8, 8], strides = [1, 1]} : vector<16x32xf32> to vector<8x8xf32>
    %56 = vector.extract_strided_slice %35 {offsets = [8, 16], sizes = [8, 8], strides = [1, 1]} : vector<16x32xf32> to vector<8x8xf32>
    %cst_18 = arith.constant dense<0.000000e+00> : vector<8x8xf32>
    %57 = tpu.matmul %55, %56, %cst_18 {dimension_numbers = #tpu.dot_dimension_numbers<[1], [1], [0], [0], [0, 0, 1, 0], [], []>} : vector<8x8xf32>, vector<8x8xf32>, vector<8x8xf32> -> vector<8x8xf32>
    %58 = vector.extract_strided_slice %34 {offsets = [8, 24], sizes = [8, 8], strides = [1, 1]} : vector<16x32xf32> to vector<8x8xf32>
    %59 = vector.extract_strided_slice %35 {offsets = [8, 24], sizes = [8, 8], strides = [1, 1]} : vector<16x32xf32> to vector<8x8xf32>
    %cst_19 = arith.constant dense<0.000000e+00> : vector<8x8xf32>
    %60 = tpu.matmul %58, %59, %cst_19 {dimension_numbers = #tpu.dot_dimension_numbers<[1], [1], [0], [0], [0, 0, 1, 0], [], []>} : vector<8x8xf32>, vector<8x8xf32>, vector<8x8xf32> -> vector<8x8xf32>
    %61 = tpu.concatenate %39, %42, %45, %48, %51, %54, %57, %60 in 0 : vector<8x8xf32>, vector<8x8xf32>, vector<8x8xf32>, vector<8x8xf32>, vector<8x8xf32>, vector<8x8xf32>, vector<8x8xf32>, vector<8x8xf32> -> vector<64x8xf32>
    %cst_20 = arith.constant dense<0xFF800000> : vector<64xf32>
    %62 = vector.multi_reduction <maximumf>, %61, %cst_20 [1] : vector<64x8xf32> to vector<64xf32>
    %63 = vector.shape_cast %62 : vector<64xf32> to vector<64x1xf32>
    %64 = vector.broadcast %63 : vector<64x1xf32> to vector<64x8xf32>
    %65 = arith.subf %61, %64 : vector<64x8xf32>
    %66 = math.exp %65 : vector<64x8xf32>
    %cst_21 = arith.constant dense<0.000000e+00> : vector<64xf32>
    %67 = vector.multi_reduction <add>, %66, %cst_21 [1] : vector<64x8xf32> to vector<64xf32>
    %68 = vector.shape_cast %67 : vector<64xf32> to vector<64x1xf32>
    %69 = tpu.reciprocal %68 {approx = true} : vector<64x1xf32> -> vector<64x1xf32>
    %70 = arith.mulf %68, %69 : vector<64x1xf32>
    %cst_22 = arith.constant 2.000000e+00 : f32
    %71 = vector.broadcast %cst_22 : f32 to vector<64x1xf32>
    %72 = arith.subf %71, %70 : vector<64x1xf32>
    %73 = arith.mulf %69, %72 : vector<64x1xf32>
    %74 = vector.broadcast %73 : vector<64x1xf32> to vector<64x8xf32>
    %75 = arith.mulf %66, %74 : vector<64x8xf32>
    %76 = vector.extract_strided_slice %75 {offsets = [0, 0], sizes = [8, 8], strides = [1, 1]} : vector<64x8xf32> to vector<8x8xf32>
    %77 = vector.extract_strided_slice %36 {offsets = [0, 0], sizes = [8, 8], strides = [1, 1]} : vector<16x32xf32> to vector<8x8xf32>
    %cst_23 = arith.constant dense<0.000000e+00> : vector<8x8xf32>
    %78 = tpu.matmul %76, %77, %cst_23 {dimension_numbers = #tpu.dot_dimension_numbers<[1], [0], [0], [1], [0, 0, 1, 1], [], []>} : vector<8x8xf32>, vector<8x8xf32>, vector<8x8xf32> -> vector<8x8xf32>
    %79 = vector.extract_strided_slice %75 {offsets = [8, 0], sizes = [8, 8], strides = [1, 1]} : vector<64x8xf32> to vector<8x8xf32>
    %80 = vector.extract_strided_slice %36 {offsets = [0, 8], sizes = [8, 8], strides = [1, 1]} : vector<16x32xf32> to vector<8x8xf32>
    %cst_24 = arith.constant dense<0.000000e+00> : vector<8x8xf32>
    %81 = tpu.matmul %79, %80, %cst_24 {dimension_numbers = #tpu.dot_dimension_numbers<[1], [0], [0], [1], [0, 0, 1, 1], [], []>} : vector<8x8xf32>, vector<8x8xf32>, vector<8x8xf32> -> vector<8x8xf32>
    %82 = vector.extract_strided_slice %75 {offsets = [16, 0], sizes = [8, 8], strides = [1, 1]} : vector<64x8xf32> to vector<8x8xf32>
    %83 = vector.extract_strided_slice %36 {offsets = [0, 16], sizes = [8, 8], strides = [1, 1]} : vector<16x32xf32> to vector<8x8xf32>
    %cst_25 = arith.constant dense<0.000000e+00> : vector<8x8xf32>
    %84 = tpu.matmul %82, %83, %cst_25 {dimension_numbers = #tpu.dot_dimension_numbers<[1], [0], [0], [1], [0, 0, 1, 1], [], []>} : vector<8x8xf32>, vector<8x8xf32>, vector<8x8xf32> -> vector<8x8xf32>
    %85 = vector.extract_strided_slice %75 {offsets = [24, 0], sizes = [8, 8], strides = [1, 1]} : vector<64x8xf32> to vector<8x8xf32>
    %86 = vector.extract_strided_slice %36 {offsets = [0, 24], sizes = [8, 8], strides = [1, 1]} : vector<16x32xf32> to vector<8x8xf32>
    %cst_26 = arith.constant dense<0.000000e+00> : vector<8x8xf32>
    %87 = tpu.matmul %85, %86, %cst_26 {dimension_numbers = #tpu.dot_dimension_numbers<[1], [0], [0], [1], [0, 0, 1, 1], [], []>} : vector<8x8xf32>, vector<8x8xf32>, vector<8x8xf32> -> vector<8x8xf32>
    %88 = tpu.concatenate %78, %81, %84, %87 in 1 : vector<8x8xf32>, vector<8x8xf32>, vector<8x8xf32>, vector<8x8xf32> -> vector<8x32xf32>
    %89 = vector.extract_strided_slice %75 {offsets = [32, 0], sizes = [8, 8], strides = [1, 1]} : vector<64x8xf32> to vector<8x8xf32>
    %90 = vector.extract_strided_slice %36 {offsets = [8, 0], sizes = [8, 8], strides = [1, 1]} : vector<16x32xf32> to vector<8x8xf32>
    %cst_27 = arith.constant dense<0.000000e+00> : vector<8x8xf32>
    %91 = tpu.matmul %89, %90, %cst_27 {dimension_numbers = #tpu.dot_dimension_numbers<[1], [0], [0], [1], [0, 0, 1, 1], [], []>} : vector<8x8xf32>, vector<8x8xf32>, vector<8x8xf32> -> vector<8x8xf32>
    %92 = vector.extract_strided_slice %75 {offsets = [40, 0], sizes = [8, 8], strides = [1, 1]} : vector<64x8xf32> to vector<8x8xf32>
    %93 = vector.extract_strided_slice %36 {offsets = [8, 8], sizes = [8, 8], strides = [1, 1]} : vector<16x32xf32> to vector<8x8xf32>
    %cst_28 = arith.constant dense<0.000000e+00> : vector<8x8xf32>
    %94 = tpu.matmul %92, %93, %cst_28 {dimension_numbers = #tpu.dot_dimension_numbers<[1], [0], [0], [1], [0, 0, 1, 1], [], []>} : vector<8x8xf32>, vector<8x8xf32>, vector<8x8xf32> -> vector<8x8xf32>
    %95 = vector.extract_strided_slice %75 {offsets = [48, 0], sizes = [8, 8], strides = [1, 1]} : vector<64x8xf32> to vector<8x8xf32>
    %96 = vector.extract_strided_slice %36 {offsets = [8, 16], sizes = [8, 8], strides = [1, 1]} : vector<16x32xf32> to vector<8x8xf32>
    %cst_29 = arith.constant dense<0.000000e+00> : vector<8x8xf32>
    %97 = tpu.matmul %95, %96, %cst_29 {dimension_numbers = #tpu.dot_dimension_numbers<[1], [0], [0], [1], [0, 0, 1, 1], [], []>} : vector<8x8xf32>, vector<8x8xf32>, vector<8x8xf32> -> vector<8x8xf32>
    %98 = vector.extract_strided_slice %75 {offsets = [56, 0], sizes = [8, 8], strides = [1, 1]} : vector<64x8xf32> to vector<8x8xf32>
    %99 = vector.extract_strided_slice %36 {offsets = [8, 24], sizes = [8, 8], strides = [1, 1]} : vector<16x32xf32> to vector<8x8xf32>
    %cst_30 = arith.constant dense<0.000000e+00> : vector<8x8xf32>
    %100 = tpu.matmul %98, %99, %cst_30 {dimension_numbers = #tpu.dot_dimension_numbers<[1], [0], [0], [1], [0, 0, 1, 1], [], []>} : vector<8x8xf32>, vector<8x8xf32>, vector<8x8xf32> -> vector<8x8xf32>
    %101 = tpu.concatenate %91, %94, %97, %100 in 1 : vector<8x8xf32>, vector<8x8xf32>, vector<8x8xf32>, vector<8x8xf32> -> vector<8x32xf32>
    %102 = tpu.concatenate %88, %101 in 0 : vector<8x32xf32>, vector<8x32xf32> -> vector<16x32xf32>
    %c0_31 = arith.constant 0 : index
    %c0_32 = arith.constant 0 : index
    %c0_33 = arith.constant 0 : index
    %103 = vector.load %arg3[%c0_31, %c0_32, %c0_33] : memref<2x32x32xf32, #tpu.memory_space<vmem>>, vector<1x32x32xf32>
    %104 = vector.shape_cast %103 : vector<1x32x32xf32> to vector<32x32xf32>
    %cst_34 = arith.constant dense<0.000000e+00> : vector<16x32xf32>
    %105 = tpu.matmul %102, %104, %cst_34 {dimension_numbers = #tpu.dot_dimension_numbers<[1], [0], [0], [1], [0, 0, 1, 1], [], []>} : vector<16x32xf32>, vector<32x32xf32>, vector<16x32xf32> -> vector<16x32xf32>
    %106 = arith.addf %0, %105 : vector<16x32xf32>
    %107 = vector.broadcast %5 : vector<1x32xf32> to vector<16x32xf32>
    %108 = arith.addf %106, %107 : vector<16x32xf32>
    %cst_35 = arith.constant dense<0.000000e+00> : vector<16xf32>
    %109 = vector.multi_reduction <add>, %108, %cst_35 [1] : vector<16x32xf32> to vector<16xf32>
    %110 = vector.shape_cast %109 : vector<16xf32> to vector<16x1xf32>
    %cst_36 = arith.constant 3.200000e+01 : f32
    %111 = vector.broadcast %cst_36 : f32 to vector<16x1xf32>
    %112 = arith.divf %110, %111 : vector<16x1xf32>
    %113 = vector.broadcast %112 : vector<16x1xf32> to vector<16x32xf32>
    %114 = arith.subf %108, %113 : vector<16x32xf32>
    %115 = arith.mulf %114, %114 : vector<16x32xf32>
    %cst_37 = arith.constant dense<0.000000e+00> : vector<16xf32>
    %116 = vector.multi_reduction <add>, %115, %cst_37 [1] : vector<16x32xf32> to vector<16xf32>
    %117 = vector.shape_cast %116 : vector<16xf32> to vector<16x1xf32>
    %cst_38 = arith.constant 3.200000e+01 : f32
    %118 = vector.broadcast %cst_38 : f32 to vector<16x1xf32>
    %119 = arith.divf %117, %118 : vector<16x1xf32>
    %120 = vector.broadcast %112 : vector<16x1xf32> to vector<16x32xf32>
    %121 = arith.subf %108, %120 : vector<16x32xf32>
    %cst_39 = arith.constant 9.99999974E-6 : f32
    %122 = vector.broadcast %cst_39 : f32 to vector<16x1xf32>
    %123 = arith.addf %119, %122 : vector<16x1xf32>
    %124 = math.rsqrt %123 : vector<16x1xf32>
    %125 = vector.broadcast %124 : vector<16x1xf32> to vector<16x32xf32>
    %126 = arith.mulf %121, %125 : vector<16x32xf32>
    %127 = vector.broadcast %6 : vector<1x32xf32> to vector<16x32xf32>
    %128 = arith.mulf %126, %127 : vector<16x32xf32>
    %129 = vector.broadcast %7 : vector<1x32xf32> to vector<16x32xf32>
    %130 = arith.addf %128, %129 : vector<16x32xf32>
    %c0_40 = arith.constant 0 : index
    %c0_41 = arith.constant 0 : index
    %c0_42 = arith.constant 0 : index
    %131 = vector.load %arg4[%c0_40, %c0_41, %c0_42] : memref<2x32x256xf32, #tpu.memory_space<vmem>>, vector<1x32x256xf32>
    %132 = vector.shape_cast %131 : vector<1x32x256xf32> to vector<32x256xf32>
    %cst_43 = arith.constant dense<0.000000e+00> : vector<16x256xf32>
    %133 = tpu.matmul %130, %132, %cst_43 {dimension_numbers = #tpu.dot_dimension_numbers<[1], [0], [0], [1], [0, 0, 1, 1], [], []>} : vector<16x32xf32>, vector<32x256xf32>, vector<16x256xf32> -> vector<16x256xf32>
    %c0_44 = arith.constant 0 : index
    %c0_45 = arith.constant 0 : index
    %c0_46 = arith.constant 0 : index
    %134 = vector.load %arg5[%c0_44, %c0_45, %c0_46] : memref<2x1x256xf32, #tpu.memory_space<vmem>>, vector<1x1x256xf32>
    %135 = vector.shape_cast %134 : vector<1x1x256xf32> to vector<1x256xf32>
    %136 = vector.broadcast %135 : vector<1x256xf32> to vector<16x256xf32>
    %137 = arith.addf %133, %136 : vector<16x256xf32>
    %138 = vector.extract_strided_slice %137 {offsets = [0, 0], sizes = [16, 128], strides = [1, 1]} : vector<16x256xf32> to vector<16x128xf32>
    %139 = vector.extract_strided_slice %137 {offsets = [0, 128], sizes = [16, 128], strides = [1, 1]} : vector<16x256xf32> to vector<16x128xf32>
    %cst_47 = arith.constant 5.000000e-01 : f32
    %140 = vector.broadcast %cst_47 : f32 to vector<16x128xf32>
    %141 = arith.mulf %140, %139 : vector<16x128xf32>
    %cst_48 = arith.constant 0.707106769 : f32
    %142 = vector.broadcast %cst_48 : f32 to vector<16x128xf32>
    %143 = arith.mulf %139, %142 : vector<16x128xf32>
    %cst_49 = arith.constant 0.000000e+00 : f32
    %144 = vector.broadcast %cst_49 : f32 to vector<16x128xf32>
    %145 = arith.cmpf olt, %143, %144 : vector<16x128xf32>
    %cst_50 = arith.constant -1.000000e+00 : f32
    %cst_51 = arith.constant 1.000000e+00 : f32
    %146 = vector.broadcast %cst_50 : f32 to vector<16x128xf32>
    %147 = vector.broadcast %cst_51 : f32 to vector<16x128xf32>
    %148 = arith.select %145, %146, %147 : vector<16x128xi1>, vector<16x128xf32>
    %149 = math.absf %143 : vector<16x128xf32>
    %cst_52 = arith.constant 0.327591091 : f32
    %150 = vector.broadcast %cst_52 : f32 to vector<16x128xf32>
    %151 = arith.mulf %150, %149 : vector<16x128xf32>
    %cst_53 = arith.constant 1.000000e+00 : f32
    %152 = vector.broadcast %cst_53 : f32 to vector<16x128xf32>
    %153 = arith.addf %152, %151 : vector<16x128xf32>
    %154 = tpu.reciprocal %153 {approx = true} : vector<16x128xf32> -> vector<16x128xf32>
    %155 = arith.mulf %153, %154 : vector<16x128xf32>
    %cst_54 = arith.constant 2.000000e+00 : f32
    %156 = vector.broadcast %cst_54 : f32 to vector<16x128xf32>
    %157 = arith.subf %156, %155 : vector<16x128xf32>
    %158 = arith.mulf %154, %157 : vector<16x128xf32>
    %cst_55 = arith.constant 1.06140542 : f32
    %159 = vector.broadcast %cst_55 : f32 to vector<16x128xf32>
    %160 = arith.mulf %159, %158 : vector<16x128xf32>
    %cst_56 = arith.constant -1.45315206 : f32
    %161 = vector.broadcast %cst_56 : f32 to vector<16x128xf32>
    %162 = arith.addf %160, %161 : vector<16x128xf32>
    %163 = arith.mulf %162, %158 : vector<16x128xf32>
    %cst_57 = arith.constant 1.42141378 : f32
    %164 = vector.broadcast %cst_57 : f32 to vector<16x128xf32>
    %165 = arith.addf %163, %164 : vector<16x128xf32>
    %166 = arith.mulf %165, %158 : vector<16x128xf32>
    %cst_58 = arith.constant -0.284496725 : f32
    %167 = vector.broadcast %cst_58 : f32 to vector<16x128xf32>
    %168 = arith.addf %166, %167 : vector<16x128xf32>
    %169 = arith.mulf %168, %158 : vector<16x128xf32>
    %cst_59 = arith.constant 0.254829586 : f32
    %170 = vector.broadcast %cst_59 : f32 to vector<16x128xf32>
    %171 = arith.addf %169, %170 : vector<16x128xf32>
    %172 = arith.mulf %171, %158 : vector<16x128xf32>
    %cst_60 = arith.constant 0.000000e+00 : f32
    %173 = vector.broadcast %cst_60 : f32 to vector<16x128xf32>
    %174 = arith.subf %173, %149 : vector<16x128xf32>
    %175 = arith.mulf %174, %149 : vector<16x128xf32>
    %176 = math.exp %175 : vector<16x128xf32>
    %177 = arith.mulf %172, %176 : vector<16x128xf32>
    %cst_61 = arith.constant 1.000000e+00 : f32
    %178 = vector.broadcast %cst_61 : f32 to vector<16x128xf32>
    %179 = arith.subf %178, %177 : vector<16x128xf32>
    %180 = arith.mulf %148, %179 : vector<16x128xf32>
    %cst_62 = arith.constant 1.000000e+00 : f32
    %181 = vector.broadcast %cst_62 : f32 to vector<16x128xf32>
    %182 = arith.addf %181, %180 : vector<16x128xf32>
    %183 = arith.mulf %141, %182 : vector<16x128xf32>
    %184 = arith.mulf %138, %183 : vector<16x128xf32>
    %c0_63 = arith.constant 0 : index
    %c0_64 = arith.constant 0 : index
    %c0_65 = arith.constant 0 : index
    %185 = vector.load %arg6[%c0_63, %c0_64, %c0_65] : memref<2x128x32xf32, #tpu.memory_space<vmem>>, vector<1x128x32xf32>
    %186 = vector.shape_cast %185 : vector<1x128x32xf32> to vector<128x32xf32>
    %cst_66 = arith.constant dense<0.000000e+00> : vector<16x32xf32>
    %187 = tpu.matmul %184, %186, %cst_66 {dimension_numbers = #tpu.dot_dimension_numbers<[1], [0], [0], [1], [0, 0, 1, 1], [], []>} : vector<16x128xf32>, vector<128x32xf32>, vector<16x32xf32> -> vector<16x32xf32>
    %188 = arith.addf %108, %187 : vector<16x32xf32>
    %189 = vector.broadcast %8 : vector<1x32xf32> to vector<16x32xf32>
    %190 = arith.addf %188, %189 : vector<16x32xf32>
    %c1 = arith.constant 1 : index
    %c0_67 = arith.constant 0 : index
    %c0_68 = arith.constant 0 : index
    %191 = vector.load %arg7[%c1, %c0_67, %c0_68] : memref<2x6x32xf32, #tpu.memory_space<vmem>>, vector<1x6x32xf32>
    %192 = vector.shape_cast %191 : vector<1x6x32xf32> to vector<6x32xf32>
    %193 = vector.extract_strided_slice %192 {offsets = [0, 0], sizes = [1, 32], strides = [1, 1]} : vector<6x32xf32> to vector<1x32xf32>
    %194 = vector.extract_strided_slice %192 {offsets = [1, 0], sizes = [1, 32], strides = [1, 1]} : vector<6x32xf32> to vector<1x32xf32>
    %195 = vector.extract_strided_slice %192 {offsets = [2, 0], sizes = [1, 32], strides = [1, 1]} : vector<6x32xf32> to vector<1x32xf32>
    %196 = vector.extract_strided_slice %192 {offsets = [3, 0], sizes = [1, 32], strides = [1, 1]} : vector<6x32xf32> to vector<1x32xf32>
    %197 = vector.extract_strided_slice %192 {offsets = [4, 0], sizes = [1, 32], strides = [1, 1]} : vector<6x32xf32> to vector<1x32xf32>
    %198 = vector.extract_strided_slice %192 {offsets = [5, 0], sizes = [1, 32], strides = [1, 1]} : vector<6x32xf32> to vector<1x32xf32>
    %cst_69 = arith.constant dense<0.000000e+00> : vector<16xf32>
    %199 = vector.multi_reduction <add>, %190, %cst_69 [1] : vector<16x32xf32> to vector<16xf32>
    %200 = vector.shape_cast %199 : vector<16xf32> to vector<16x1xf32>
    %cst_70 = arith.constant 3.200000e+01 : f32
    %201 = vector.broadcast %cst_70 : f32 to vector<16x1xf32>
    %202 = arith.divf %200, %201 : vector<16x1xf32>
    %203 = vector.broadcast %202 : vector<16x1xf32> to vector<16x32xf32>
    %204 = arith.subf %190, %203 : vector<16x32xf32>
    %205 = arith.mulf %204, %204 : vector<16x32xf32>
    %cst_71 = arith.constant dense<0.000000e+00> : vector<16xf32>
    %206 = vector.multi_reduction <add>, %205, %cst_71 [1] : vector<16x32xf32> to vector<16xf32>
    %207 = vector.shape_cast %206 : vector<16xf32> to vector<16x1xf32>
    %cst_72 = arith.constant 3.200000e+01 : f32
    %208 = vector.broadcast %cst_72 : f32 to vector<16x1xf32>
    %209 = arith.divf %207, %208 : vector<16x1xf32>
    %210 = vector.broadcast %202 : vector<16x1xf32> to vector<16x32xf32>
    %211 = arith.subf %190, %210 : vector<16x32xf32>
    %cst_73 = arith.constant 9.99999974E-6 : f32
    %212 = vector.broadcast %cst_73 : f32 to vector<16x1xf32>
    %213 = arith.addf %209, %212 : vector<16x1xf32>
    %214 = math.rsqrt %213 : vector<16x1xf32>
    %215 = vector.broadcast %214 : vector<16x1xf32> to vector<16x32xf32>
    %216 = arith.mulf %211, %215 : vector<16x32xf32>
    %217 = vector.broadcast %193 : vector<1x32xf32> to vector<16x32xf32>
    %218 = arith.mulf %216, %217 : vector<16x32xf32>
    %219 = vector.broadcast %194 : vector<1x32xf32> to vector<16x32xf32>
    %220 = arith.addf %218, %219 : vector<16x32xf32>
    %c1_74 = arith.constant 1 : index
    %c0_75 = arith.constant 0 : index
    %c0_76 = arith.constant 0 : index
    %221 = vector.load %arg2[%c1_74, %c0_75, %c0_76] : memref<2x32x96xf32, #tpu.memory_space<vmem>>, vector<1x32x96xf32>
    %222 = vector.shape_cast %221 : vector<1x32x96xf32> to vector<32x96xf32>
    %cst_77 = arith.constant dense<0.000000e+00> : vector<16x96xf32>
    %223 = tpu.matmul %220, %222, %cst_77 {dimension_numbers = #tpu.dot_dimension_numbers<[1], [0], [0], [1], [0, 0, 1, 1], [], []>} : vector<16x32xf32>, vector<32x96xf32>, vector<16x96xf32> -> vector<16x96xf32>
    %224 = vector.extract_strided_slice %223 {offsets = [0, 0], sizes = [16, 32], strides = [1, 1]} : vector<16x96xf32> to vector<16x32xf32>
    %225 = vector.extract_strided_slice %223 {offsets = [0, 32], sizes = [16, 32], strides = [1, 1]} : vector<16x96xf32> to vector<16x32xf32>
    %226 = vector.extract_strided_slice %223 {offsets = [0, 64], sizes = [16, 32], strides = [1, 1]} : vector<16x96xf32> to vector<16x32xf32>
    %227 = vector.extract_strided_slice %224 {offsets = [0, 0], sizes = [8, 8], strides = [1, 1]} : vector<16x32xf32> to vector<8x8xf32>
    %228 = vector.extract_strided_slice %225 {offsets = [0, 0], sizes = [8, 8], strides = [1, 1]} : vector<16x32xf32> to vector<8x8xf32>
    %cst_78 = arith.constant dense<0.000000e+00> : vector<8x8xf32>
    %229 = tpu.matmul %227, %228, %cst_78 {dimension_numbers = #tpu.dot_dimension_numbers<[1], [1], [0], [0], [0, 0, 1, 0], [], []>} : vector<8x8xf32>, vector<8x8xf32>, vector<8x8xf32> -> vector<8x8xf32>
    %230 = vector.extract_strided_slice %224 {offsets = [0, 8], sizes = [8, 8], strides = [1, 1]} : vector<16x32xf32> to vector<8x8xf32>
    %231 = vector.extract_strided_slice %225 {offsets = [0, 8], sizes = [8, 8], strides = [1, 1]} : vector<16x32xf32> to vector<8x8xf32>
    %cst_79 = arith.constant dense<0.000000e+00> : vector<8x8xf32>
    %232 = tpu.matmul %230, %231, %cst_79 {dimension_numbers = #tpu.dot_dimension_numbers<[1], [1], [0], [0], [0, 0, 1, 0], [], []>} : vector<8x8xf32>, vector<8x8xf32>, vector<8x8xf32> -> vector<8x8xf32>
    %233 = vector.extract_strided_slice %224 {offsets = [0, 16], sizes = [8, 8], strides = [1, 1]} : vector<16x32xf32> to vector<8x8xf32>
    %234 = vector.extract_strided_slice %225 {offsets = [0, 16], sizes = [8, 8], strides = [1, 1]} : vector<16x32xf32> to vector<8x8xf32>
    %cst_80 = arith.constant dense<0.000000e+00> : vector<8x8xf32>
    %235 = tpu.matmul %233, %234, %cst_80 {dimension_numbers = #tpu.dot_dimension_numbers<[1], [1], [0], [0], [0, 0, 1, 0], [], []>} : vector<8x8xf32>, vector<8x8xf32>, vector<8x8xf32> -> vector<8x8xf32>
    %236 = vector.extract_strided_slice %224 {offsets = [0, 24], sizes = [8, 8], strides = [1, 1]} : vector<16x32xf32> to vector<8x8xf32>
    %237 = vector.extract_strided_slice %225 {offsets = [0, 24], sizes = [8, 8], strides = [1, 1]} : vector<16x32xf32> to vector<8x8xf32>
    %cst_81 = arith.constant dense<0.000000e+00> : vector<8x8xf32>
    %238 = tpu.matmul %236, %237, %cst_81 {dimension_numbers = #tpu.dot_dimension_numbers<[1], [1], [0], [0], [0, 0, 1, 0], [], []>} : vector<8x8xf32>, vector<8x8xf32>, vector<8x8xf32> -> vector<8x8xf32>
    %239 = vector.extract_strided_slice %224 {offsets = [8, 0], sizes = [8, 8], strides = [1, 1]} : vector<16x32xf32> to vector<8x8xf32>
    %240 = vector.extract_strided_slice %225 {offsets = [8, 0], sizes = [8, 8], strides = [1, 1]} : vector<16x32xf32> to vector<8x8xf32>
    %cst_82 = arith.constant dense<0.000000e+00> : vector<8x8xf32>
    %241 = tpu.matmul %239, %240, %cst_82 {dimension_numbers = #tpu.dot_dimension_numbers<[1], [1], [0], [0], [0, 0, 1, 0], [], []>} : vector<8x8xf32>, vector<8x8xf32>, vector<8x8xf32> -> vector<8x8xf32>
    %242 = vector.extract_strided_slice %224 {offsets = [8, 8], sizes = [8, 8], strides = [1, 1]} : vector<16x32xf32> to vector<8x8xf32>
    %243 = vector.extract_strided_slice %225 {offsets = [8, 8], sizes = [8, 8], strides = [1, 1]} : vector<16x32xf32> to vector<8x8xf32>
    %cst_83 = arith.constant dense<0.000000e+00> : vector<8x8xf32>
    %244 = tpu.matmul %242, %243, %cst_83 {dimension_numbers = #tpu.dot_dimension_numbers<[1], [1], [0], [0], [0, 0, 1, 0], [], []>} : vector<8x8xf32>, vector<8x8xf32>, vector<8x8xf32> -> vector<8x8xf32>
    %245 = vector.extract_strided_slice %224 {offsets = [8, 16], sizes = [8, 8], strides = [1, 1]} : vector<16x32xf32> to vector<8x8xf32>
    %246 = vector.extract_strided_slice %225 {offsets = [8, 16], sizes = [8, 8], strides = [1, 1]} : vector<16x32xf32> to vector<8x8xf32>
    %cst_84 = arith.constant dense<0.000000e+00> : vector<8x8xf32>
    %247 = tpu.matmul %245, %246, %cst_84 {dimension_numbers = #tpu.dot_dimension_numbers<[1], [1], [0], [0], [0, 0, 1, 0], [], []>} : vector<8x8xf32>, vector<8x8xf32>, vector<8x8xf32> -> vector<8x8xf32>
    %248 = vector.extract_strided_slice %224 {offsets = [8, 24], sizes = [8, 8], strides = [1, 1]} : vector<16x32xf32> to vector<8x8xf32>
    %249 = vector.extract_strided_slice %225 {offsets = [8, 24], sizes = [8, 8], strides = [1, 1]} : vector<16x32xf32> to vector<8x8xf32>
    %cst_85 = arith.constant dense<0.000000e+00> : vector<8x8xf32>
    %250 = tpu.matmul %248, %249, %cst_85 {dimension_numbers = #tpu.dot_dimension_numbers<[1], [1], [0], [0], [0, 0, 1, 0], [], []>} : vector<8x8xf32>, vector<8x8xf32>, vector<8x8xf32> -> vector<8x8xf32>
    %251 = tpu.concatenate %229, %232, %235, %238, %241, %244, %247, %250 in 0 : vector<8x8xf32>, vector<8x8xf32>, vector<8x8xf32>, vector<8x8xf32>, vector<8x8xf32>, vector<8x8xf32>, vector<8x8xf32>, vector<8x8xf32> -> vector<64x8xf32>
    %cst_86 = arith.constant dense<0xFF800000> : vector<64xf32>
    %252 = vector.multi_reduction <maximumf>, %251, %cst_86 [1] : vector<64x8xf32> to vector<64xf32>
    %253 = vector.shape_cast %252 : vector<64xf32> to vector<64x1xf32>
    %254 = vector.broadcast %253 : vector<64x1xf32> to vector<64x8xf32>
    %255 = arith.subf %251, %254 : vector<64x8xf32>
    %256 = math.exp %255 : vector<64x8xf32>
    %cst_87 = arith.constant dense<0.000000e+00> : vector<64xf32>
    %257 = vector.multi_reduction <add>, %256, %cst_87 [1] : vector<64x8xf32> to vector<64xf32>
    %258 = vector.shape_cast %257 : vector<64xf32> to vector<64x1xf32>
    %259 = tpu.reciprocal %258 {approx = true} : vector<64x1xf32> -> vector<64x1xf32>
    %260 = arith.mulf %258, %259 : vector<64x1xf32>
    %cst_88 = arith.constant 2.000000e+00 : f32
    %261 = vector.broadcast %cst_88 : f32 to vector<64x1xf32>
    %262 = arith.subf %261, %260 : vector<64x1xf32>
    %263 = arith.mulf %259, %262 : vector<64x1xf32>
    %264 = vector.broadcast %263 : vector<64x1xf32> to vector<64x8xf32>
    %265 = arith.mulf %256, %264 : vector<64x8xf32>
    %266 = vector.extract_strided_slice %265 {offsets = [0, 0], sizes = [8, 8], strides = [1, 1]} : vector<64x8xf32> to vector<8x8xf32>
    %267 = vector.extract_strided_slice %226 {offsets = [0, 0], sizes = [8, 8], strides = [1, 1]} : vector<16x32xf32> to vector<8x8xf32>
    %cst_89 = arith.constant dense<0.000000e+00> : vector<8x8xf32>
    %268 = tpu.matmul %266, %267, %cst_89 {dimension_numbers = #tpu.dot_dimension_numbers<[1], [0], [0], [1], [0, 0, 1, 1], [], []>} : vector<8x8xf32>, vector<8x8xf32>, vector<8x8xf32> -> vector<8x8xf32>
    %269 = vector.extract_strided_slice %265 {offsets = [8, 0], sizes = [8, 8], strides = [1, 1]} : vector<64x8xf32> to vector<8x8xf32>
    %270 = vector.extract_strided_slice %226 {offsets = [0, 8], sizes = [8, 8], strides = [1, 1]} : vector<16x32xf32> to vector<8x8xf32>
    %cst_90 = arith.constant dense<0.000000e+00> : vector<8x8xf32>
    %271 = tpu.matmul %269, %270, %cst_90 {dimension_numbers = #tpu.dot_dimension_numbers<[1], [0], [0], [1], [0, 0, 1, 1], [], []>} : vector<8x8xf32>, vector<8x8xf32>, vector<8x8xf32> -> vector<8x8xf32>
    %272 = vector.extract_strided_slice %265 {offsets = [16, 0], sizes = [8, 8], strides = [1, 1]} : vector<64x8xf32> to vector<8x8xf32>
    %273 = vector.extract_strided_slice %226 {offsets = [0, 16], sizes = [8, 8], strides = [1, 1]} : vector<16x32xf32> to vector<8x8xf32>
    %cst_91 = arith.constant dense<0.000000e+00> : vector<8x8xf32>
    %274 = tpu.matmul %272, %273, %cst_91 {dimension_numbers = #tpu.dot_dimension_numbers<[1], [0], [0], [1], [0, 0, 1, 1], [], []>} : vector<8x8xf32>, vector<8x8xf32>, vector<8x8xf32> -> vector<8x8xf32>
    %275 = vector.extract_strided_slice %265 {offsets = [24, 0], sizes = [8, 8], strides = [1, 1]} : vector<64x8xf32> to vector<8x8xf32>
    %276 = vector.extract_strided_slice %226 {offsets = [0, 24], sizes = [8, 8], strides = [1, 1]} : vector<16x32xf32> to vector<8x8xf32>
    %cst_92 = arith.constant dense<0.000000e+00> : vector<8x8xf32>
    %277 = tpu.matmul %275, %276, %cst_92 {dimension_numbers = #tpu.dot_dimension_numbers<[1], [0], [0], [1], [0, 0, 1, 1], [], []>} : vector<8x8xf32>, vector<8x8xf32>, vector<8x8xf32> -> vector<8x8xf32>
    %278 = tpu.concatenate %268, %271, %274, %277 in 1 : vector<8x8xf32>, vector<8x8xf32>, vector<8x8xf32>, vector<8x8xf32> -> vector<8x32xf32>
    %279 = vector.extract_strided_slice %265 {offsets = [32, 0], sizes = [8, 8], strides = [1, 1]} : vector<64x8xf32> to vector<8x8xf32>
    %280 = vector.extract_strided_slice %226 {offsets = [8, 0], sizes = [8, 8], strides = [1, 1]} : vector<16x32xf32> to vector<8x8xf32>
    %cst_93 = arith.constant dense<0.000000e+00> : vector<8x8xf32>
    %281 = tpu.matmul %279, %280, %cst_93 {dimension_numbers = #tpu.dot_dimension_numbers<[1], [0], [0], [1], [0, 0, 1, 1], [], []>} : vector<8x8xf32>, vector<8x8xf32>, vector<8x8xf32> -> vector<8x8xf32>
    %282 = vector.extract_strided_slice %265 {offsets = [40, 0], sizes = [8, 8], strides = [1, 1]} : vector<64x8xf32> to vector<8x8xf32>
    %283 = vector.extract_strided_slice %226 {offsets = [8, 8], sizes = [8, 8], strides = [1, 1]} : vector<16x32xf32> to vector<8x8xf32>
    %cst_94 = arith.constant dense<0.000000e+00> : vector<8x8xf32>
    %284 = tpu.matmul %282, %283, %cst_94 {dimension_numbers = #tpu.dot_dimension_numbers<[1], [0], [0], [1], [0, 0, 1, 1], [], []>} : vector<8x8xf32>, vector<8x8xf32>, vector<8x8xf32> -> vector<8x8xf32>
    %285 = vector.extract_strided_slice %265 {offsets = [48, 0], sizes = [8, 8], strides = [1, 1]} : vector<64x8xf32> to vector<8x8xf32>
    %286 = vector.extract_strided_slice %226 {offsets = [8, 16], sizes = [8, 8], strides = [1, 1]} : vector<16x32xf32> to vector<8x8xf32>
    %cst_95 = arith.constant dense<0.000000e+00> : vector<8x8xf32>
    %287 = tpu.matmul %285, %286, %cst_95 {dimension_numbers = #tpu.dot_dimension_numbers<[1], [0], [0], [1], [0, 0, 1, 1], [], []>} : vector<8x8xf32>, vector<8x8xf32>, vector<8x8xf32> -> vector<8x8xf32>
    %288 = vector.extract_strided_slice %265 {offsets = [56, 0], sizes = [8, 8], strides = [1, 1]} : vector<64x8xf32> to vector<8x8xf32>
    %289 = vector.extract_strided_slice %226 {offsets = [8, 24], sizes = [8, 8], strides = [1, 1]} : vector<16x32xf32> to vector<8x8xf32>
    %cst_96 = arith.constant dense<0.000000e+00> : vector<8x8xf32>
    %290 = tpu.matmul %288, %289, %cst_96 {dimension_numbers = #tpu.dot_dimension_numbers<[1], [0], [0], [1], [0, 0, 1, 1], [], []>} : vector<8x8xf32>, vector<8x8xf32>, vector<8x8xf32> -> vector<8x8xf32>
    %291 = tpu.concatenate %281, %284, %287, %290 in 1 : vector<8x8xf32>, vector<8x8xf32>, vector<8x8xf32>, vector<8x8xf32> -> vector<8x32xf32>
    %292 = tpu.concatenate %278, %291 in 0 : vector<8x32xf32>, vector<8x32xf32> -> vector<16x32xf32>
    %c1_97 = arith.constant 1 : index
    %c0_98 = arith.constant 0 : index
    %c0_99 = arith.constant 0 : index
    %293 = vector.load %arg3[%c1_97, %c0_98, %c0_99] : memref<2x32x32xf32, #tpu.memory_space<vmem>>, vector<1x32x32xf32>
    %294 = vector.shape_cast %293 : vector<1x32x32xf32> to vector<32x32xf32>
    %cst_100 = arith.constant dense<0.000000e+00> : vector<16x32xf32>
    %295 = tpu.matmul %292, %294, %cst_100 {dimension_numbers = #tpu.dot_dimension_numbers<[1], [0], [0], [1], [0, 0, 1, 1], [], []>} : vector<16x32xf32>, vector<32x32xf32>, vector<16x32xf32> -> vector<16x32xf32>
    %296 = arith.addf %190, %295 : vector<16x32xf32>
    %297 = vector.broadcast %195 : vector<1x32xf32> to vector<16x32xf32>
    %298 = arith.addf %296, %297 : vector<16x32xf32>
    %cst_101 = arith.constant dense<0.000000e+00> : vector<16xf32>
    %299 = vector.multi_reduction <add>, %298, %cst_101 [1] : vector<16x32xf32> to vector<16xf32>
    %300 = vector.shape_cast %299 : vector<16xf32> to vector<16x1xf32>
    %cst_102 = arith.constant 3.200000e+01 : f32
    %301 = vector.broadcast %cst_102 : f32 to vector<16x1xf32>
    %302 = arith.divf %300, %301 : vector<16x1xf32>
    %303 = vector.broadcast %302 : vector<16x1xf32> to vector<16x32xf32>
    %304 = arith.subf %298, %303 : vector<16x32xf32>
    %305 = arith.mulf %304, %304 : vector<16x32xf32>
    %cst_103 = arith.constant dense<0.000000e+00> : vector<16xf32>
    %306 = vector.multi_reduction <add>, %305, %cst_103 [1] : vector<16x32xf32> to vector<16xf32>
    %307 = vector.shape_cast %306 : vector<16xf32> to vector<16x1xf32>
    %cst_104 = arith.constant 3.200000e+01 : f32
    %308 = vector.broadcast %cst_104 : f32 to vector<16x1xf32>
    %309 = arith.divf %307, %308 : vector<16x1xf32>
    %310 = vector.broadcast %302 : vector<16x1xf32> to vector<16x32xf32>
    %311 = arith.subf %298, %310 : vector<16x32xf32>
    %cst_105 = arith.constant 9.99999974E-6 : f32
    %312 = vector.broadcast %cst_105 : f32 to vector<16x1xf32>
    %313 = arith.addf %309, %312 : vector<16x1xf32>
    %314 = math.rsqrt %313 : vector<16x1xf32>
    %315 = vector.broadcast %314 : vector<16x1xf32> to vector<16x32xf32>
    %316 = arith.mulf %311, %315 : vector<16x32xf32>
    %317 = vector.broadcast %196 : vector<1x32xf32> to vector<16x32xf32>
    %318 = arith.mulf %316, %317 : vector<16x32xf32>
    %319 = vector.broadcast %197 : vector<1x32xf32> to vector<16x32xf32>
    %320 = arith.addf %318, %319 : vector<16x32xf32>
    %c1_106 = arith.constant 1 : index
    %c0_107 = arith.constant 0 : index
    %c0_108 = arith.constant 0 : index
    %321 = vector.load %arg4[%c1_106, %c0_107, %c0_108] : memref<2x32x256xf32, #tpu.memory_space<vmem>>, vector<1x32x256xf32>
    %322 = vector.shape_cast %321 : vector<1x32x256xf32> to vector<32x256xf32>
    %cst_109 = arith.constant dense<0.000000e+00> : vector<16x256xf32>
    %323 = tpu.matmul %320, %322, %cst_109 {dimension_numbers = #tpu.dot_dimension_numbers<[1], [0], [0], [1], [0, 0, 1, 1], [], []>} : vector<16x32xf32>, vector<32x256xf32>, vector<16x256xf32> -> vector<16x256xf32>
    %c1_110 = arith.constant 1 : index
    %c0_111 = arith.constant 0 : index
    %c0_112 = arith.constant 0 : index
    %324 = vector.load %arg5[%c1_110, %c0_111, %c0_112] : memref<2x1x256xf32, #tpu.memory_space<vmem>>, vector<1x1x256xf32>
    %325 = vector.shape_cast %324 : vector<1x1x256xf32> to vector<1x256xf32>
    %326 = vector.broadcast %325 : vector<1x256xf32> to vector<16x256xf32>
    %327 = arith.addf %323, %326 : vector<16x256xf32>
    %328 = vector.extract_strided_slice %327 {offsets = [0, 0], sizes = [16, 128], strides = [1, 1]} : vector<16x256xf32> to vector<16x128xf32>
    %329 = vector.extract_strided_slice %327 {offsets = [0, 128], sizes = [16, 128], strides = [1, 1]} : vector<16x256xf32> to vector<16x128xf32>
    %cst_113 = arith.constant 5.000000e-01 : f32
    %330 = vector.broadcast %cst_113 : f32 to vector<16x128xf32>
    %331 = arith.mulf %330, %329 : vector<16x128xf32>
    %cst_114 = arith.constant 0.707106769 : f32
    %332 = vector.broadcast %cst_114 : f32 to vector<16x128xf32>
    %333 = arith.mulf %329, %332 : vector<16x128xf32>
    %cst_115 = arith.constant 0.000000e+00 : f32
    %334 = vector.broadcast %cst_115 : f32 to vector<16x128xf32>
    %335 = arith.cmpf olt, %333, %334 : vector<16x128xf32>
    %cst_116 = arith.constant -1.000000e+00 : f32
    %cst_117 = arith.constant 1.000000e+00 : f32
    %336 = vector.broadcast %cst_116 : f32 to vector<16x128xf32>
    %337 = vector.broadcast %cst_117 : f32 to vector<16x128xf32>
    %338 = arith.select %335, %336, %337 : vector<16x128xi1>, vector<16x128xf32>
    %339 = math.absf %333 : vector<16x128xf32>
    %cst_118 = arith.constant 0.327591091 : f32
    %340 = vector.broadcast %cst_118 : f32 to vector<16x128xf32>
    %341 = arith.mulf %340, %339 : vector<16x128xf32>
    %cst_119 = arith.constant 1.000000e+00 : f32
    %342 = vector.broadcast %cst_119 : f32 to vector<16x128xf32>
    %343 = arith.addf %342, %341 : vector<16x128xf32>
    %344 = tpu.reciprocal %343 {approx = true} : vector<16x128xf32> -> vector<16x128xf32>
    %345 = arith.mulf %343, %344 : vector<16x128xf32>
    %cst_120 = arith.constant 2.000000e+00 : f32
    %346 = vector.broadcast %cst_120 : f32 to vector<16x128xf32>
    %347 = arith.subf %346, %345 : vector<16x128xf32>
    %348 = arith.mulf %344, %347 : vector<16x128xf32>
    %cst_121 = arith.constant 1.06140542 : f32
    %349 = vector.broadcast %cst_121 : f32 to vector<16x128xf32>
    %350 = arith.mulf %349, %348 : vector<16x128xf32>
    %cst_122 = arith.constant -1.45315206 : f32
    %351 = vector.broadcast %cst_122 : f32 to vector<16x128xf32>
    %352 = arith.addf %350, %351 : vector<16x128xf32>
    %353 = arith.mulf %352, %348 : vector<16x128xf32>
    %cst_123 = arith.constant 1.42141378 : f32
    %354 = vector.broadcast %cst_123 : f32 to vector<16x128xf32>
    %355 = arith.addf %353, %354 : vector<16x128xf32>
    %356 = arith.mulf %355, %348 : vector<16x128xf32>
    %cst_124 = arith.constant -0.284496725 : f32
    %357 = vector.broadcast %cst_124 : f32 to vector<16x128xf32>
    %358 = arith.addf %356, %357 : vector<16x128xf32>
    %359 = arith.mulf %358, %348 : vector<16x128xf32>
    %cst_125 = arith.constant 0.254829586 : f32
    %360 = vector.broadcast %cst_125 : f32 to vector<16x128xf32>
    %361 = arith.addf %359, %360 : vector<16x128xf32>
    %362 = arith.mulf %361, %348 : vector<16x128xf32>
    %cst_126 = arith.constant 0.000000e+00 : f32
    %363 = vector.broadcast %cst_126 : f32 to vector<16x128xf32>
    %364 = arith.subf %363, %339 : vector<16x128xf32>
    %365 = arith.mulf %364, %339 : vector<16x128xf32>
    %366 = math.exp %365 : vector<16x128xf32>
    %367 = arith.mulf %362, %366 : vector<16x128xf32>
    %cst_127 = arith.constant 1.000000e+00 : f32
    %368 = vector.broadcast %cst_127 : f32 to vector<16x128xf32>
    %369 = arith.subf %368, %367 : vector<16x128xf32>
    %370 = arith.mulf %338, %369 : vector<16x128xf32>
    %cst_128 = arith.constant 1.000000e+00 : f32
    %371 = vector.broadcast %cst_128 : f32 to vector<16x128xf32>
    %372 = arith.addf %371, %370 : vector<16x128xf32>
    %373 = arith.mulf %331, %372 : vector<16x128xf32>
    %374 = arith.mulf %328, %373 : vector<16x128xf32>
    %c1_129 = arith.constant 1 : index
    %c0_130 = arith.constant 0 : index
    %c0_131 = arith.constant 0 : index
    %375 = vector.load %arg6[%c1_129, %c0_130, %c0_131] : memref<2x128x32xf32, #tpu.memory_space<vmem>>, vector<1x128x32xf32>
    %376 = vector.shape_cast %375 : vector<1x128x32xf32> to vector<128x32xf32>
    %cst_132 = arith.constant dense<0.000000e+00> : vector<16x32xf32>
    %377 = tpu.matmul %374, %376, %cst_132 {dimension_numbers = #tpu.dot_dimension_numbers<[1], [0], [0], [1], [0, 0, 1, 1], [], []>} : vector<16x128xf32>, vector<128x32xf32>, vector<16x32xf32> -> vector<16x32xf32>
    %378 = arith.addf %298, %377 : vector<16x32xf32>
    %379 = vector.broadcast %198 : vector<1x32xf32> to vector<16x32xf32>
    %380 = arith.addf %378, %379 : vector<16x32xf32>
    %c0_133 = arith.constant 0 : index
    %c0_134 = arith.constant 0 : index
    %381 = vector.load %arg8[%c0_133, %c0_134] : memref<16x32xf32, #tpu.memory_space<vmem>>, vector<16x32xf32>
    tpu.vector_store %arg8[%c0_133, %c0_134], %380 {strides = array<i32>} : memref<16x32xf32, #tpu.memory_space<vmem>>, vector<16x32xf32>,
    return
  }
  func.func @transform_0(%arg0: i32) -> (i32, i32) {
    %c0_i32 = arith.constant 0 : i32
    %c0_i32_0 = arith.constant 0 : i32
    return %arg0, %c0_i32 : i32, i32
  }
  func.func @transform_1(%arg0: i32) -> (i32, i32, i32) {
    %c0_i32 = arith.constant 0 : i32
    %c0_i32_0 = arith.constant 0 : i32
    %c0_i32_1 = arith.constant 0 : i32
    %c0_i32_2 = arith.constant 0 : i32
    return %c0_i32, %c0_i32_0, %c0_i32_1 : i32, i32, i32
  }
  func.func @transform_2(%arg0: i32) -> (i32, i32, i32) {
    %c0_i32 = arith.constant 0 : i32
    %c0_i32_0 = arith.constant 0 : i32
    %c0_i32_1 = arith.constant 0 : i32
    %c0_i32_2 = arith.constant 0 : i32
    return %c0_i32, %c0_i32_0, %c0_i32_1 : i32, i32, i32
  }
  func.func @transform_3(%arg0: i32) -> (i32, i32, i32) {
    %c0_i32 = arith.constant 0 : i32
    %c0_i32_0 = arith.constant 0 : i32
    %c0_i32_1 = arith.constant 0 : i32
    %c0_i32_2 = arith.constant 0 : i32
    return %c0_i32, %c0_i32_0, %c0_i32_1 : i32, i32, i32
  }
  func.func @transform_4(%arg0: i32) -> (i32, i32, i32) {
    %c0_i32 = arith.constant 0 : i32
    %c0_i32_0 = arith.constant 0 : i32
    %c0_i32_1 = arith.constant 0 : i32
    %c0_i32_2 = arith.constant 0 : i32
    return %c0_i32, %c0_i32_0, %c0_i32_1 : i32, i32, i32
  }
  func.func @transform_5(%arg0: i32) -> (i32, i32, i32) {
    %c0_i32 = arith.constant 0 : i32
    %c0_i32_0 = arith.constant 0 : i32
    %c0_i32_1 = arith.constant 0 : i32
    %c0_i32_2 = arith.constant 0 : i32
    return %c0_i32, %c0_i32_0, %c0_i32_1 : i32, i32, i32
  }
  func.func @transform_6(%arg0: i32) -> (i32, i32, i32) {
    %c0_i32 = arith.constant 0 : i32
    %c0_i32_0 = arith.constant 0 : i32
    %c0_i32_1 = arith.constant 0 : i32
    %c0_i32_2 = arith.constant 0 : i32
    return %c0_i32, %c0_i32_0, %c0_i32_1 : i32, i32, i32
  }
  func.func @transform_7(%arg0: i32) -> (i32, i32) {
    %c0_i32 = arith.constant 0 : i32
    %c0_i32_0 = arith.constant 0 : i32
    return %arg0, %c0_i32 : i32, i32
  }
}

</mosaic_0001>

<llo_original>
// kernel: tpu_custom_call.1
$region0: #{tpu_custom_call.1}
  #allocation0 [shape = 'u32[]', space=smem, size = 0x4, offset = 0x4, fixed_abs, tag = 'smem constant byte address 0x4 - core index']
  #allocation1 [shape = 'u32[144,128]{1,0:T(1,128)}', space=vmem, size = 0x12000, scoped, tag = 'internal scratch']
  %s0 = inlined_call_operand.vmem [shape: f32[16,32], index: 0, kind: input, shape index: {}]
  %s1 = inlined_call_operand.vmem [shape: f32[2,32,96], index: 1, kind: input, shape index: {}]
  %s2 = inlined_call_operand.vmem [shape: f32[2,32,32], index: 2, kind: input, shape index: {}]
  %s3 = inlined_call_operand.vmem [shape: f32[2,32,256], index: 3, kind: input, shape index: {}]
  %s4 = inlined_call_operand.vmem [shape: f32[2,1,256], index: 4, kind: input, shape index: {}]
  %s5 = inlined_call_operand.vmem [shape: f32[2,128,32], index: 5, kind: input, shape index: {}]
  %s6 = inlined_call_operand.vmem [shape: f32[2,6,32], index: 6, kind: input, shape index: {}]
  %s7 = inlined_call_operand.hbm [shape: f32[16,32], index: 7, kind: output, shape index: {}]
  %s8 = sld [smem:[#allocation0]]
  $region38: #{tpu_custom_call.1} parent=0
    _
  %s10 = ssub.s32 1, %s8
  %s11 = scalar_select 0, %s10, %s8
  $region1: #{tpu_custom_call.1} parent=0
    #allocation2 [shape = 'u8[8192]{0}', space=vmem, size = 0x2000, scoped, tag = 'output window, operand 0, single buffered']
    #allocation3 [shape = 's32[1]{0}', space=sflag, size = 0x4, scoped, tag = 'scoped memory for tpu_custom_call.1']
    %12 = vsyncpa [#allocation3], 0
    // Predicated region
    $region2: #{tpu_custom_call.1} parent=1 // pred_check
      _
    $region3: #{tpu_custom_call.1} parent=1 // pred_check_branch
      %14 = sbr.rel (0) target = $region5
    $region4: #{tpu_custom_call.1} parent=1 // pred_region
      _
    $region5: #{tpu_custom_call.1} parent=1 // pred_fallthru
      _
    // Predicated region
    $region6: #{tpu_custom_call.1} parent=1 // pred_check
      _
    $region7: #{tpu_custom_call.1} parent=1 // pred_check_branch
      %16 = sbr.rel (0) target = $region9
    $region8: #{tpu_custom_call.1} parent=1 // pred_region
      _
    $region9: #{tpu_custom_call.1} parent=1 // pred_fallthru
      _
    // Predicated region
    $region10: #{tpu_custom_call.1} parent=1 // pred_check
      _
    $region11: #{tpu_custom_call.1} parent=1 // pred_check_branch
      %18 = sbr.rel (0) target = $region13
    $region12: #{tpu_custom_call.1} parent=1 // pred_region
      _
    $region13: #{tpu_custom_call.1} parent=1 // pred_fallthru
      _
    // Predicated region
    $region14: #{tpu_custom_call.1} parent=1 // pred_check
      _
    $region15: #{tpu_custom_call.1} parent=1 // pred_check_branch
      %20 = sbr.rel (0) target = $region17
    $region16: #{tpu_custom_call.1} parent=1 // pred_region
      _
    $region17: #{tpu_custom_call.1} parent=1 // pred_fallthru
      _
    // Predicated region
    $region18: #{tpu_custom_call.1} parent=1 // pred_check
      _
    $region19: #{tpu_custom_call.1} parent=1 // pred_check_branch
      %22 = sbr.rel (0) target = $region21
    $region20: #{tpu_custom_call.1} parent=1 // pred_region
      _
    $region21: #{tpu_custom_call.1} parent=1 // pred_fallthru
      _
    // Predicated region
    $region22: #{tpu_custom_call.1} parent=1 // pred_check
      _
    $region23: #{tpu_custom_call.1} parent=1 // pred_check_branch
      %24 = sbr.rel (0) target = $region25
    $region24: #{tpu_custom_call.1} parent=1 // pred_region
      _
    $region25: #{tpu_custom_call.1} parent=1 // pred_fallthru
      _
    // Predicated region
    $region26: #{tpu_custom_call.1} parent=1 // pred_check
      _
    $region27: #{tpu_custom_call.1} parent=1 // pred_check_branch
      %26 = sbr.rel (0) target = $region29
    $region28: #{tpu_custom_call.1} parent=1 // pred_region
      _
    $region29: #{tpu_custom_call.1} parent=1 // pred_fallthru
      _
    %v27 = vld [vmem:[%s0] sm:$0xff]
    %v28 = vld [vmem:[%s0 + $0x8] sm:$0xff]
    %v29 = vld [vmem:[%s6] sm:$0x3f]
    %vm30 = vcmask 261120
    %v31 = vsel %vm30, %v27, 0.0
    %32 = vadd.xlane.f32.xlu0 %v31
    %v33 = vpop.xlane.xlu0 %32
    %v34 = vsel %vm30, %v28, 0.0
    %35 = vadd.xlane.f32.xlu0 %v34
    %v36 = vpop.xlane.xlu0 %35
    %v37 = vrcp.pop 32.0
    %v38 = vmul.f32 %v33, %v37
    %v39 = vmul.f32 %v36, %v37
    %v40 = vsub.f32 %v27, %v38
    %v41 = vsub.f32 %v28, %v39
    %v42 = vmul.f32 %v40, %v40
    %v43 = vmul.f32 %v41, %v41
    %v44 = vsel %vm30, %v42, 0.0
    %45 = vadd.xlane.f32.xlu0 %v44
    %v46 = vpop.xlane.xlu0 %45
    %v47 = vsel %vm30, %v43, 0.0
    %48 = vadd.xlane.f32.xlu0 %v47
    %v49 = vpop.xlane.xlu0 %48
    %v50 = vmul.f32 %v46, %v37
    %v51 = vmul.f32 %v49, %v37
    %v52 = vadd.f32 %v50, 1e-05
    %v53 = vadd.f32 %v51, 1e-05
    %v54 = vrsqrt.pop %v52
    %v55 = vrsqrt.pop %v53
    %v56 = vmul.f32 %v40, %v54
    %v57 = vmul.f32 %v41, %v55
    %v58 = vlaneseq
    %v59 = vshrl.u32 %v58, 7
    %v60 = vsub.s32 0, %v59
    %v61 = vrot.slane %v29, %v60
    %v62 = vmul.f32 %v56, %v61
    %v63 = vmul.f32 %v57, %v61
    %v64 = vlaneseq
    %v65 = vshrl.u32 %v64, 7
    %v66 = vsub.s32 1, %v65
    %v67 = vrot.slane %v29, %v66
    %v68 = vadd.f32 %v62, %v67
    %v69 = vadd.f32 %v63, %v67
    %v70 = vld [vmem:[%s1] sm:$0xff]
    %v71 = vld [vmem:[%s1 + $0x8] sm:$0xff]
    %v72 = vld [vmem:[%s1 + $0x10] sm:$0xff]
    %v73 = vld [vmem:[%s1 + $0x18] sm:$0xff]
    %v75 = vsel %vm30, %v68, 0
    %v78 = vsel %vm30, %v69, 0
    %80 = vmatprep.subr.mxu0 0.0
    %81 = vmatpush1.msra.mxu0 %v70
    %82 = vmatprep.subr.mxu0 0.0
    %83 = vmatpush1.msra.mxu0 %v71
    %84 = vmatprep.subr.mxu0 0.0
    %85 = vmatpush1.msra.mxu0 %v72
    %86 = vmatprep.subr.mxu0 0.0
    %87 = vmatpush1.msra.mxu0 %v73
    %88 = vmatprep.subr.mxu0 0.0
    %89 = vmatpush1.msra.mxu0 0.0
    %90 = vmatprep.subr.mxu0 0.0
    %91 = vmatpush1.msra.mxu0 0.0
    %92 = vmatprep.subr.mxu0 0.0
    %93 = vmatpush1.msra.mxu0 0.0
    %94 = vmatprep.subr.mxu0 0.0
    %95 = vmatpush1.msra.mxu0 0.0
    %96 = vmatprep.subr.mxu0 0.0
    %97 = vmatpush1.msra.mxu0 0.0
    %98 = vmatprep.subr.mxu0 0.0
    %99 = vmatpush1.msra.mxu0 0.0
    %100 = vmatprep.subr.mxu0 0.0
    %101 = vmatpush1.msra.mxu0 0.0
    %102 = vmatprep.subr.mxu0 0.0
    %103 = vmatpush1.msra.mxu0 0.0
    %104 = vmatprep.subr.mxu0 0.0
    %105 = vmatpush1.msra.mxu0 0.0
    %106 = vmatprep.subr.mxu0 0.0
    %107 = vmatpush1.msra.mxu0 0.0
    %108 = vmatprep.subr.mxu0 0.0
    %109 = vmatpush1.msra.mxu0 0.0
    %110 = vmatprep.subr.mxu0 0.0
    %111 = vmatpush1.msra.mxu0 0.0
    %112 = vmatprep.subr.mxu0 0.0
    %113 = vmatpush1.msra.mxu0 0.0
    %114 = vmatprep.subr.mxu0 0.0
    %115 = vmatpush1.msra.mxu0 0.0
    %116 = vmatprep.subr.mxu0 0.0
    %117 = vmatpush1.msra.mxu0 0.0
    %118 = vmatprep.subr.mxu0 0.0
    %119 = vmatpush1.msra.mxu0 0.0
    %120 = vmatprep.subr.mxu0 0.0
    %121 = vmatpush1.msra.mxu0 0.0
    %122 = vmatprep.subr.mxu0 0.0
    %123 = vmatpush1.msra.mxu0 0.0
    %124 = vmatprep.subr.mxu0 0.0
    %125 = vmatpush1.msra.mxu0 0.0
    %126 = vmatprep.subr.mxu0 0.0
    %127 = vmatpush1.msra.mxu0 0.0
    %128 = vmatprep.subr.mxu0 0.0
    %129 = vmatpush1.msra.mxu0 0.0
    %130 = vmatprep.subr.mxu0 0.0
    %131 = vmatpush1.msra.mxu0 0.0
    %132 = vmatprep.subr.mxu0 0.0
    %133 = vmatpush1.msra.mxu0 0.0
    %134 = vmatprep.subr.mxu0 0.0
    %135 = vmatpush1.msra.mxu0 0.0
    %136 = vmatprep.subr.mxu0 0.0
    %137 = vmatpush1.msra.mxu0 0.0
    %138 = vmatprep.subr.mxu0 0.0
    %139 = vmatpush1.msra.mxu0 0.0
    %140 = vmatprep.subr.mxu0 0.0
    %141 = vmatpush1.msra.mxu0 0.0
    %142 = vmatprep.subr.mxu0 0.0
    %143 = vmatpush1.msra.mxu0 0.0
    %144 = vmatprep.mubr.f32.mxu0 0.0
    %145 = vmatmul.mubr.f32.gmra.mrb[0].mxu0 %v75
    %v146 = vpop.f32.mrb[0].mxu0
    %v147 = vadd.f32 0.0, %v146
    %v148 = vpop.f32.mrb[0].mxu0
    %149 = vmatprep.mubr.f32.mxu0 0.0
    %150 = vmatmul.mubr.f32.gmra.mrb[0].mxu0 %v78
    %v151 = vpop.f32.mrb[0].mxu0
    %v152 = vadd.f32 0.0, %v151
    %v153 = vpop.f32.mrb[0].mxu0
    %154 = vdwg.mxu0
    %156 = vrot.lane.b32.xlu0 %v147, 96
    %v157 = vpop.permute.xlu0 %156
    %vm158 = vcmask 64512
    %v159 = vsel %vm158, %v147, 0
    %v161 = vsel %vm158, %v157, 0
    %163 = vmatprep.subr.mxu0 0.0
    %164 = vmatpush1.xpose.msra.mxu0 %v161
    %165 = vmatprep.subr.mxu0 0.0
    %166 = vmatpush1.xpose.msra.mxu0 0.0
    %167 = vmatprep.subr.mxu0 0.0
    %168 = vmatpush1.xpose.msra.mxu0 0.0
    %169 = vmatprep.subr.mxu0 0.0
    %170 = vmatpush1.xpose.msra.mxu0 0.0
    %171 = vmatprep.subr.mxu0 0.0
    %172 = vmatpush1.xpose.msra.mxu0 0.0
    %173 = vmatprep.subr.mxu0 0.0
    %174 = vmatpush1.xpose.msra.mxu0 0.0
    %175 = vmatprep.subr.mxu0 0.0
    %176 = vmatpush1.xpose.msra.mxu0 0.0
    %177 = vmatprep.subr.mxu0 0.0
    %178 = vmatpush1.xpose.msra.mxu0 0.0
    %179 = vmatprep.subr.mxu0 0.0
    %180 = vmatpush1.xpose.msra.mxu0 0.0
    %181 = vmatprep.subr.mxu0 0.0
    %182 = vmatpush1.xpose.msra.mxu0 0.0
    %183 = vmatprep.subr.mxu0 0.0
    %184 = vmatpush1.xpose.msra.mxu0 0.0
    %185 = vmatprep.subr.mxu0 0.0
    %186 = vmatpush1.xpose.msra.mxu0 0.0
    %187 = vmatprep.subr.mxu0 0.0
    %188 = vmatpush1.xpose.msra.mxu0 0.0
    %189 = vmatprep.subr.mxu0 0.0
    %190 = vmatpush1.xpose.msra.mxu0 0.0
    %191 = vmatprep.subr.mxu0 0.0
    %192 = vmatpush1.xpose.msra.mxu0 0.0
    %193 = vmatprep.subr.mxu0 0.0
    %194 = vmatpush1.xpose.msra.mxu0 0.0
    %195 = vmatprep.subr.mxu0 0.0
    %196 = vmatpush1.xpose.msra.mxu0 0.0
    %197 = vmatprep.subr.mxu0 0.0
    %198 = vmatpush1.xpose.msra.mxu0 0.0
    %199 = vmatprep.subr.mxu0 0.0
    %200 = vmatpush1.xpose.msra.mxu0 0.0
    %201 = vmatprep.subr.mxu0 0.0
    %202 = vmatpush1.xpose.msra.mxu0 0.0
    %203 = vmatprep.subr.mxu0 0.0
    %204 = vmatpush1.xpose.msra.mxu0 0.0
    %205 = vmatprep.subr.mxu0 0.0
    %206 = vmatpush1.xpose.msra.mxu0 0.0
    %207 = vmatprep.subr.mxu0 0.0
    %208 = vmatpush1.xpose.msra.mxu0 0.0
    %209 = vmatprep.subr.mxu0 0.0
    %210 = vmatpush1.xpose.msra.mxu0 0.0
    %211 = vmatprep.subr.mxu0 0.0
    %212 = vmatpush1.xpose.msra.mxu0 0.0
    %213 = vmatprep.subr.mxu0 0.0
    %214 = vmatpush1.xpose.msra.mxu0 0.0
    %215 = vmatprep.subr.mxu0 0.0
    %216 = vmatpush1.xpose.msra.mxu0 0.0
    %217 = vmatprep.subr.mxu0 0.0
    %218 = vmatpush1.xpose.msra.mxu0 0.0
    %219 = vmatprep.subr.mxu0 0.0
    %220 = vmatpush1.xpose.msra.mxu0 0.0
    %221 = vmatprep.subr.mxu0 0.0
    %222 = vmatpush1.xpose.msra.mxu0 0.0
    %223 = vmatprep.subr.mxu0 0.0
    %224 = vmatpush1.xpose.msra.mxu0 0.0
    %225 = vmatprep.subr.mxu0 0.0
    %226 = vmatpush1.xpose.msra.mxu0 0.0
    %227 = vmatprep.mubr.f32.mxu0 0.0
    %228 = vmatmul.mubr.f32.gmra.mrb[0].mxu0 %v159
    %v229 = vpop.f32.mrb[0].mxu0
    %v230 = vadd.f32 0.0, %v229
    %v231 = vpop.f32.mrb[0].mxu0
    %232 = vdwg.mxu0
    %233 = vrot.lane.b32.xlu0 %v147, 120
    %v234 = vpop.permute.xlu0 %233
    %235 = vrot.lane.b32.xlu0 %v147, 88
    %v236 = vpop.permute.xlu0 %235
    %v237 = vsel %vm158, %v234, 0
    %v239 = vsel %vm158, %v236, 0
    %241 = vmatprep.subr.mxu0 0.0
    %242 = vmatpush1.xpose.msra.mxu0 %v239
    %243 = vmatprep.subr.mxu0 0.0
    %244 = vmatpush1.xpose.msra.mxu0 0.0
    %245 = vmatprep.subr.mxu0 0.0
    %246 = vmatpush1.xpose.msra.mxu0 0.0
    %247 = vmatprep.subr.mxu0 0.0
    %248 = vmatpush1.xpose.msra.mxu0 0.0
    %249 = vmatprep.subr.mxu0 0.0
    %250 = vmatpush1.xpose.msra.mxu0 0.0
    %251 = vmatprep.subr.mxu0 0.0
    %252 = vmatpush1.xpose.msra.mxu0 0.0
    %253 = vmatprep.subr.mxu0 0.0
    %254 = vmatpush1.xpose.msra.mxu0 0.0
    %255 = vmatprep.subr.mxu0 0.0
    %256 = vmatpush1.xpose.msra.mxu0 0.0
    %257 = vmatprep.subr.mxu0 0.0
    %258 = vmatpush1.xpose.msra.mxu0 0.0
    %259 = vmatprep.subr.mxu0 0.0
    %260 = vmatpush1.xpose.msra.mxu0 0.0
    %261 = vmatprep.subr.mxu0 0.0
    %262 = vmatpush1.xpose.msra.mxu0 0.0
    %263 = vmatprep.subr.mxu0 0.0
    %264 = vmatpush1.xpose.msra.mxu0 0.0
    %265 = vmatprep.subr.mxu0 0.0
    %266 = vmatpush1.xpose.msra.mxu0 0.0
    %267 = vmatprep.subr.mxu0 0.0
    %268 = vmatpush1.xpose.msra.mxu0 0.0
    %269 = vmatprep.subr.mxu0 0.0
    %270 = vmatpush1.xpose.msra.mxu0 0.0
    %271 = vmatprep.subr.mxu0 0.0
    %272 = vmatpush1.xpose.msra.mxu0 0.0
    %273 = vmatprep.subr.mxu0 0.0
    %274 = vmatpush1.xpose.msra.mxu0 0.0
    %275 = vmatprep.subr.mxu0 0.0
    %276 = vmatpush1.xpose.msra.mxu0 0.0
    %277 = vmatprep.subr.mxu0 0.0
    %278 = vmatpush1.xpose.msra.mxu0 0.0
    %279 = vmatprep.subr.mxu0 0.0
    %280 = vmatpush1.xpose.msra.mxu0 0.0
    %281 = vmatprep.subr.mxu0 0.0
    %282 = vmatpush1.xpose.msra.mxu0 0.0
    %283 = vmatprep.subr.mxu0 0.0
    %284 = vmatpush1.xpose.msra.mxu0 0.0
    %285 = vmatprep.subr.mxu0 0.0
    %286 = vmatpush1.xpose.msra.mxu0 0.0
    %287 = vmatprep.subr.mxu0 0.0
    %288 = vmatpush1.xpose.msra.mxu0 0.0
    %289 = vmatprep.subr.mxu0 0.0
    %290 = vmatpush1.xpose.msra.mxu0 0.0
    %291 = vmatprep.subr.mxu0 0.0
    %292 = vmatpush1.xpose.msra.mxu0 0.0
    %293 = vmatprep.subr.mxu0 0.0
    %294 = vmatpush1.xpose.msra.mxu0 0.0
    %295 = vmatprep.subr.mxu0 0.0
    %296 = vmatpush1.xpose.msra.mxu0 0.0
    %297 = vmatprep.subr.mxu0 0.0
    %298 = vmatpush1.xpose.msra.mxu0 0.0
    %299 = vmatprep.subr.mxu0 0.0
    %300 = vmatpush1.xpose.msra.mxu0 0.0
    %301 = vmatprep.subr.mxu0 0.0
    %302 = vmatpush1.xpose.msra.mxu0 0.0
    %303 = vmatprep.subr.mxu0 0.0
    %304 = vmatpush1.xpose.msra.mxu0 0.0
    %305 = vmatprep.mubr.f32.mxu0 0.0
    %306 = vmatmul.mubr.f32.gmra.mrb[0].mxu0 %v237
    %v307 = vpop.f32.mrb[0].mxu0
    %v308 = vadd.f32 0.0, %v307
    %v309 = vpop.f32.mrb[0].mxu0
    %310 = vdwg.mxu0
    %311 = vrot.lane.b32.xlu0 %v147, 112
    %v312 = vpop.permute.xlu0 %311
    %313 = vrot.lane.b32.xlu0 %v147, 80
    %v314 = vpop.permute.xlu0 %313
    %v315 = vsel %vm158, %v312, 0
    %v317 = vsel %vm158, %v314, 0
    %319 = vmatprep.subr.mxu0 0.0
    %320 = vmatpush1.xpose.msra.mxu0 %v317
    %321 = vmatprep.subr.mxu0 0.0
    %322 = vmatpush1.xpose.msra.mxu0 0.0
    %323 = vmatprep.subr.mxu0 0.0
    %324 = vmatpush1.xpose.msra.mxu0 0.0
    %325 = vmatprep.subr.mxu0 0.0
    %326 = vmatpush1.xpose.msra.mxu0 0.0
    %327 = vmatprep.subr.mxu0 0.0
    %328 = vmatpush1.xpose.msra.mxu0 0.0
    %329 = vmatprep.subr.mxu0 0.0
    %330 = vmatpush1.xpose.msra.mxu0 0.0
    %331 = vmatprep.subr.mxu0 0.0
    %332 = vmatpush1.xpose.msra.mxu0 0.0
    %333 = vmatprep.subr.mxu0 0.0
    %334 = vmatpush1.xpose.msra.mxu0 0.0
    %335 = vmatprep.subr.mxu0 0.0
    %336 = vmatpush1.xpose.msra.mxu0 0.0
    %337 = vmatprep.subr.mxu0 0.0
    %338 = vmatpush1.xpose.msra.mxu0 0.0
    %339 = vmatprep.subr.mxu0 0.0
    %340 = vmatpush1.xpose.msra.mxu0 0.0
    %341 = vmatprep.subr.mxu0 0.0
    %342 = vmatpush1.xpose.msra.mxu0 0.0
    %343 = vmatprep.subr.mxu0 0.0
    %344 = vmatpush1.xpose.msra.mxu0 0.0
    %345 = vmatprep.subr.mxu0 0.0
    %346 = vmatpush1.xpose.msra.mxu0 0.0
    %347 = vmatprep.subr.mxu0 0.0
    %348 = vmatpush1.xpose.msra.mxu0 0.0
    %349 = vmatprep.subr.mxu0 0.0
    %350 = vmatpush1.xpose.msra.mxu0 0.0
    %351 = vmatprep.subr.mxu0 0.0
    %352 = vmatpush1.xpose.msra.mxu0 0.0
    %353 = vmatprep.subr.mxu0 0.0
    %354 = vmatpush1.xpose.msra.mxu0 0.0
    %355 = vmatprep.subr.mxu0 0.0
    %356 = vmatpush1.xpose.msra.mxu0 0.0
    %357 = vmatprep.subr.mxu0 0.0
    %358 = vmatpush1.xpose.msra.mxu0 0.0
    %359 = vmatprep.subr.mxu0 0.0
    %360 = vmatpush1.xpose.msra.mxu0 0.0
    %361 = vmatprep.subr.mxu0 0.0
    %362 = vmatpush1.xpose.msra.mxu0 0.0
    %363 = vmatprep.subr.mxu0 0.0
    %364 = vmatpush1.xpose.msra.mxu0 0.0
    %365 = vmatprep.subr.mxu0 0.0
    %366 = vmatpush1.xpose.msra.mxu0 0.0
    %367 = vmatprep.subr.mxu0 0.0
    %368 = vmatpush1.xpose.msra.mxu0 0.0
    %369 = vmatprep.subr.mxu0 0.0
    %370 = vmatpush1.xpose.msra.mxu0 0.0
    %371 = vmatprep.subr.mxu0 0.0
    %372 = vmatpush1.xpose.msra.mxu0 0.0
    %373 = vmatprep.subr.mxu0 0.0
    %374 = vmatpush1.xpose.msra.mxu0 0.0
    %375 = vmatprep.subr.mxu0 0.0
    %376 = vmatpush1.xpose.msra.mxu0 0.0
    %377 = vmatprep.subr.mxu0 0.0
    %378 = vmatpush1.xpose.msra.mxu0 0.0
    %379 = vmatprep.subr.mxu0 0.0
    %380 = vmatpush1.xpose.msra.mxu0 0.0
    %381 = vmatprep.subr.mxu0 0.0
    %382 = vmatpush1.xpose.msra.mxu0 0.0
    %383 = vmatprep.mubr.f32.mxu0 0.0
    %384 = vmatmul.mubr.f32.gmra.mrb[0].mxu0 %v315
    %v385 = vpop.f32.mrb[0].mxu0
    %v386 = vadd.f32 0.0, %v385
    %v387 = vpop.f32.mrb[0].mxu0
    %388 = vdwg.mxu0
    %389 = vrot.lane.b32.xlu0 %v147, 104
    %v390 = vpop.permute.xlu0 %389
    %391 = vrot.lane.b32.xlu0 %v147, 72
    %v392 = vpop.permute.xlu0 %391
    %v393 = vsel %vm158, %v390, 0
    %v395 = vsel %vm158, %v392, 0
    %397 = vmatprep.subr.mxu0 0.0
    %398 = vmatpush1.xpose.msra.mxu0 %v395
    %399 = vmatprep.subr.mxu0 0.0
    %400 = vmatpush1.xpose.msra.mxu0 0.0
    %401 = vmatprep.subr.mxu0 0.0
    %402 = vmatpush1.xpose.msra.mxu0 0.0
    %403 = vmatprep.subr.mxu0 0.0
    %404 = vmatpush1.xpose.msra.mxu0 0.0
    %405 = vmatprep.subr.mxu0 0.0
    %406 = vmatpush1.xpose.msra.mxu0 0.0
    %407 = vmatprep.subr.mxu0 0.0
    %408 = vmatpush1.xpose.msra.mxu0 0.0
    %409 = vmatprep.subr.mxu0 0.0
    %410 = vmatpush1.xpose.msra.mxu0 0.0
    %411 = vmatprep.subr.mxu0 0.0
    %412 = vmatpush1.xpose.msra.mxu0 0.0
    %413 = vmatprep.subr.mxu0 0.0
    %414 = vmatpush1.xpose.msra.mxu0 0.0
    %415 = vmatprep.subr.mxu0 0.0
    %416 = vmatpush1.xpose.msra.mxu0 0.0
    %417 = vmatprep.subr.mxu0 0.0
    %418 = vmatpush1.xpose.msra.mxu0 0.0
    %419 = vmatprep.subr.mxu0 0.0
    %420 = vmatpush1.xpose.msra.mxu0 0.0
    %421 = vmatprep.subr.mxu0 0.0
    %422 = vmatpush1.xpose.msra.mxu0 0.0
    %423 = vmatprep.subr.mxu0 0.0
    %424 = vmatpush1.xpose.msra.mxu0 0.0
    %425 = vmatprep.subr.mxu0 0.0
    %426 = vmatpush1.xpose.msra.mxu0 0.0
    %427 = vmatprep.subr.mxu0 0.0
    %428 = vmatpush1.xpose.msra.mxu0 0.0
    %429 = vmatprep.subr.mxu0 0.0
    %430 = vmatpush1.xpose.msra.mxu0 0.0
    %431 = vmatprep.subr.mxu0 0.0
    %432 = vmatpush1.xpose.msra.mxu0 0.0
    %433 = vmatprep.subr.mxu0 0.0
    %434 = vmatpush1.xpose.msra.mxu0 0.0
    %435 = vmatprep.subr.mxu0 0.0
    %436 = vmatpush1.xpose.msra.mxu0 0.0
    %437 = vmatprep.subr.mxu0 0.0
    %438 = vmatpush1.xpose.msra.mxu0 0.0
    %439 = vmatprep.subr.mxu0 0.0
    %440 = vmatpush1.xpose.msra.mxu0 0.0
    %441 = vmatprep.subr.mxu0 0.0
    %442 = vmatpush1.xpose.msra.mxu0 0.0
    %443 = vmatprep.subr.mxu0 0.0
    %444 = vmatpush1.xpose.msra.mxu0 0.0
    %445 = vmatprep.subr.mxu0 0.0
    %446 = vmatpush1.xpose.msra.mxu0 0.0
    %447 = vmatprep.subr.mxu0 0.0
    %448 = vmatpush1.xpose.msra.mxu0 0.0
    %449 = vmatprep.subr.mxu0 0.0
    %450 = vmatpush1.xpose.msra.mxu0 0.0
    %451 = vmatprep.subr.mxu0 0.0
    %452 = vmatpush1.xpose.msra.mxu0 0.0
    %453 = vmatprep.subr.mxu0 0.0
    %454 = vmatpush1.xpose.msra.mxu0 0.0
    %455 = vmatprep.subr.mxu0 0.0
    %456 = vmatpush1.xpose.msra.mxu0 0.0
    %457 = vmatprep.subr.mxu0 0.0
    %458 = vmatpush1.xpose.msra.mxu0 0.0
    %459 = vmatprep.subr.mxu0 0.0
    %460 = vmatpush1.xpose.msra.mxu0 0.0
    %461 = vmatprep.mubr.f32.mxu0 0.0
    %462 = vmatmul.mubr.f32.gmra.mrb[0].mxu0 %v393
    %v463 = vpop.f32.mrb[0].mxu0
    %v464 = vadd.f32 0.0, %v463
    %v465 = vpop.f32.mrb[0].mxu0
    %466 = vdwg.mxu0
    %468 = vrot.lane.b32.xlu0 %v152, 96
    %v469 = vpop.permute.xlu0 %468
    %v470 = vsel %vm158, %v152, 0
    %v472 = vsel %vm158, %v469, 0
    %474 = vmatprep.subr.mxu0 0.0
    %475 = vmatpush1.xpose.msra.mxu0 %v472
    %476 = vmatprep.subr.mxu0 0.0
    %477 = vmatpush1.xpose.msra.mxu0 0.0
    %478 = vmatprep.subr.mxu0 0.0
    %479 = vmatpush1.xpose.msra.mxu0 0.0
    %480 = vmatprep.subr.mxu0 0.0
    %481 = vmatpush1.xpose.msra.mxu0 0.0
    %482 = vmatprep.subr.mxu0 0.0
    %483 = vmatpush1.xpose.msra.mxu0 0.0
    %484 = vmatprep.subr.mxu0 0.0
    %485 = vmatpush1.xpose.msra.mxu0 0.0
    %486 = vmatprep.subr.mxu0 0.0
    %487 = vmatpush1.xpose.msra.mxu0 0.0
    %488 = vmatprep.subr.mxu0 0.0
    %489 = vmatpush1.xpose.msra.mxu0 0.0
    %490 = vmatprep.subr.mxu0 0.0
    %491 = vmatpush1.xpose.msra.mxu0 0.0
    %492 = vmatprep.subr.mxu0 0.0
    %493 = vmatpush1.xpose.msra.mxu0 0.0
    %494 = vmatprep.subr.mxu0 0.0
    %495 = vmatpush1.xpose.msra.mxu0 0.0
    %496 = vmatprep.subr.mxu0 0.0
    %497 = vmatpush1.xpose.msra.mxu0 0.0
    %498 = vmatprep.subr.mxu0 0.0
    %499 = vmatpush1.xpose.msra.mxu0 0.0
    %500 = vmatprep.subr.mxu0 0.0
    %501 = vmatpush1.xpose.msra.mxu0 0.0
    %502 = vmatprep.subr.mxu0 0.0
    %503 = vmatpush1.xpose.msra.mxu0 0.0
    %504 = vmatprep.subr.mxu0 0.0
    %505 = vmatpush1.xpose.msra.mxu0 0.0
    %506 = vmatprep.subr.mxu0 0.0
    %507 = vmatpush1.xpose.msra.mxu0 0.0
    %508 = vmatprep.subr.mxu0 0.0
    %509 = vmatpush1.xpose.msra.mxu0 0.0
    %510 = vmatprep.subr.mxu0 0.0
    %511 = vmatpush1.xpose.msra.mxu0 0.0
    %512 = vmatprep.subr.mxu0 0.0
    %513 = vmatpush1.xpose.msra.mxu0 0.0
    %514 = vmatprep.subr.mxu0 0.0
    %515 = vmatpush1.xpose.msra.mxu0 0.0
    %516 = vmatprep.subr.mxu0 0.0
    %517 = vmatpush1.xpose.msra.mxu0 0.0
    %518 = vmatprep.subr.mxu0 0.0
    %519 = vmatpush1.xpose.msra.mxu0 0.0
    %520 = vmatprep.subr.mxu0 0.0
    %521 = vmatpush1.xpose.msra.mxu0 0.0
    %522 = vmatprep.subr.mxu0 0.0
    %523 = vmatpush1.xpose.msra.mxu0 0.0
    %524 = vmatprep.subr.mxu0 0.0
    %525 = vmatpush1.xpose.msra.mxu0 0.0
    %526 = vmatprep.subr.mxu0 0.0
    %527 = vmatpush1.xpose.msra.mxu0 0.0
    %528 = vmatprep.subr.mxu0 0.0
    %529 = vmatpush1.xpose.msra.mxu0 0.0
    %530 = vmatprep.subr.mxu0 0.0
    %531 = vmatpush1.xpose.msra.mxu0 0.0
    %532 = vmatprep.subr.mxu0 0.0
    %533 = vmatpush1.xpose.msra.mxu0 0.0
    %534 = vmatprep.subr.mxu0 0.0
    %535 = vmatpush1.xpose.msra.mxu0 0.0
    %536 = vmatprep.subr.mxu0 0.0
    %537 = vmatpush1.xpose.msra.mxu0 0.0
    %538 = vmatprep.mubr.f32.mxu0 0.0
    %539 = vmatmul.mubr.f32.gmra.mrb[0].mxu0 %v470
    %v540 = vpop.f32.mrb[0].mxu0
    %v541 = vadd.f32 0.0, %v540
    %v542 = vpop.f32.mrb[0].mxu0
    %543 = vdwg.mxu0
    %544 = vrot.lane.b32.xlu0 %v152, 120
    %v545 = vpop.permute.xlu0 %544
    %546 = vrot.lane.b32.xlu0 %v152, 88
    %v547 = vpop.permute.xlu0 %546
    %v548 = vsel %vm158, %v545, 0
    %v550 = vsel %vm158, %v547, 0
    %552 = vmatprep.subr.mxu0 0.0
    %553 = vmatpush1.xpose.msra.mxu0 %v550
    %554 = vmatprep.subr.mxu0 0.0
    %555 = vmatpush1.xpose.msra.mxu0 0.0
    %556 = vmatprep.subr.mxu0 0.0
    %557 = vmatpush1.xpose.msra.mxu0 0.0
    %558 = vmatprep.subr.mxu0 0.0
    %559 = vmatpush1.xpose.msra.mxu0 0.0
    %560 = vmatprep.subr.mxu0 0.0
    %561 = vmatpush1.xpose.msra.mxu0 0.0
    %562 = vmatprep.subr.mxu0 0.0
    %563 = vmatpush1.xpose.msra.mxu0 0.0
    %564 = vmatprep.subr.mxu0 0.0
    %565 = vmatpush1.xpose.msra.mxu0 0.0
    %566 = vmatprep.subr.mxu0 0.0
    %567 = vmatpush1.xpose.msra.mxu0 0.0
    %568 = vmatprep.subr.mxu0 0.0
    %569 = vmatpush1.xpose.msra.mxu0 0.0
    %570 = vmatprep.subr.mxu0 0.0
    %571 = vmatpush1.xpose.msra.mxu0 0.0
    %572 = vmatprep.subr.mxu0 0.0
    %573 = vmatpush1.xpose.msra.mxu0 0.0
    %574 = vmatprep.subr.mxu0 0.0
    %575 = vmatpush1.xpose.msra.mxu0 0.0
    %576 = vmatprep.subr.mxu0 0.0
    %577 = vmatpush1.xpose.msra.mxu0 0.0
    %578 = vmatprep.subr.mxu0 0.0
    %579 = vmatpush1.xpose.msra.mxu0 0.0
    %580 = vmatprep.subr.mxu0 0.0
    %581 = vmatpush1.xpose.msra.mxu0 0.0
    %582 = vmatprep.subr.mxu0 0.0
    %583 = vmatpush1.xpose.msra.mxu0 0.0
    %584 = vmatprep.subr.mxu0 0.0
    %585 = vmatpush1.xpose.msra.mxu0 0.0
    %586 = vmatprep.subr.mxu0 0.0
    %587 = vmatpush1.xpose.msra.mxu0 0.0
    %588 = vmatprep.subr.mxu0 0.0
    %589 = vmatpush1.xpose.msra.mxu0 0.0
    %590 = vmatprep.subr.mxu0 0.0
    %591 = vmatpush1.xpose.msra.mxu0 0.0
    %592 = vmatprep.subr.mxu0 0.0
    %593 = vmatpush1.xpose.msra.mxu0 0.0
    %594 = vmatprep.subr.mxu0 0.0
    %595 = vmatpush1.xpose.msra.mxu0 0.0
    %596 = vmatprep.subr.mxu0 0.0
    %597 = vmatpush1.xpose.msra.mxu0 0.0
    %598 = vmatprep.subr.mxu0 0.0
    %599 = vmatpush1.xpose.msra.mxu0 0.0
    %600 = vmatprep.subr.mxu0 0.0
    %601 = vmatpush1.xpose.msra.mxu0 0.0
    %602 = vmatprep.subr.mxu0 0.0
    %603 = vmatpush1.xpose.msra.mxu0 0.0
    %604 = vmatprep.subr.mxu0 0.0
    %605 = vmatpush1.xpose.msra.mxu0 0.0
    %606 = vmatprep.subr.mxu0 0.0
    %607 = vmatpush1.xpose.msra.mxu0 0.0
    %608 = vmatprep.subr.mxu0 0.0
    %609 = vmatpush1.xpose.msra.mxu0 0.0
    %610 = vmatprep.subr.mxu0 0.0
    %611 = vmatpush1.xpose.msra.mxu0 0.0
    %612 = vmatprep.subr.mxu0 0.0
    %613 = vmatpush1.xpose.msra.mxu0 0.0
    %614 = vmatprep.subr.mxu0 0.0
    %615 = vmatpush1.xpose.msra.mxu0 0.0
    %616 = vmatprep.mubr.f32.mxu0 0.0
    %617 = vmatmul.mubr.f32.gmra.mrb[0].mxu0 %v548
    %v618 = vpop.f32.mrb[0].mxu0
    %v619 = vadd.f32 0.0, %v618
    %v620 = vpop.f32.mrb[0].mxu0
    %621 = vdwg.mxu0
    %622 = vrot.lane.b32.xlu0 %v152, 112
    %v623 = vpop.permute.xlu0 %622
    %624 = vrot.lane.b32.xlu0 %v152, 80
    %v625 = vpop.permute.xlu0 %624
    %v626 = vsel %vm158, %v623, 0
    %v628 = vsel %vm158, %v625, 0
    %630 = vmatprep.subr.mxu0 0.0
    %631 = vmatpush1.xpose.msra.mxu0 %v628
    %632 = vmatprep.subr.mxu0 0.0
    %633 = vmatpush1.xpose.msra.mxu0 0.0
    %634 = vmatprep.subr.mxu0 0.0
    %635 = vmatpush1.xpose.msra.mxu0 0.0
    %636 = vmatprep.subr.mxu0 0.0
    %637 = vmatpush1.xpose.msra.mxu0 0.0
    %638 = vmatprep.subr.mxu0 0.0
    %639 = vmatpush1.xpose.msra.mxu0 0.0
    %640 = vmatprep.subr.mxu0 0.0
    %641 = vmatpush1.xpose.msra.mxu0 0.0
    %642 = vmatprep.subr.mxu0 0.0
    %643 = vmatpush1.xpose.msra.mxu0 0.0
    %644 = vmatprep.subr.mxu0 0.0
    %645 = vmatpush1.xpose.msra.mxu0 0.0
    %646 = vmatprep.subr.mxu0 0.0
    %647 = vmatpush1.xpose.msra.mxu0 0.0
    %648 = vmatprep.subr.mxu0 0.0
    %649 = vmatpush1.xpose.msra.mxu0 0.0
    %650 = vmatprep.subr.mxu0 0.0
    %651 = vmatpush1.xpose.msra.mxu0 0.0
    %652 = vmatprep.subr.mxu0 0.0
    %653 = vmatpush1.xpose.msra.mxu0 0.0
    %654 = vmatprep.subr.mxu0 0.0
    %655 = vmatpush1.xpose.msra.mxu0 0.0
    %656 = vmatprep.subr.mxu0 0.0
    %657 = vmatpush1.xpose.msra.mxu0 0.0
    %658 = vmatprep.subr.mxu0 0.0
    %659 = vmatpush1.xpose.msra.mxu0 0.0
    %660 = vmatprep.subr.mxu0 0.0
    %661 = vmatpush1.xpose.msra.mxu0 0.0
    %662 = vmatprep.subr.mxu0 0.0
    %663 = vmatpush1.xpose.msra.mxu0 0.0
    %664 = vmatprep.subr.mxu0 0.0
    %665 = vmatpush1.xpose.msra.mxu0 0.0
    %666 = vmatprep.subr.mxu0 0.0
    %667 = vmatpush1.xpose.msra.mxu0 0.0
    %668 = vmatprep.subr.mxu0 0.0
    %669 = vmatpush1.xpose.msra.mxu0 0.0
    %670 = vmatprep.subr.mxu0 0.0
    %671 = vmatpush1.xpose.msra.mxu0 0.0
    %672 = vmatprep.subr.mxu0 0.0
    %673 = vmatpush1.xpose.msra.mxu0 0.0
    %674 = vmatprep.subr.mxu0 0.0
    %675 = vmatpush1.xpose.msra.mxu0 0.0
    %676 = vmatprep.subr.mxu0 0.0
    %677 = vmatpush1.xpose.msra.mxu0 0.0
    %678 = vmatprep.subr.mxu0 0.0
    %679 = vmatpush1.xpose.msra.mxu0 0.0
    %680 = vmatprep.subr.mxu0 0.0
    %681 = vmatpush1.xpose.msra.mxu0 0.0
    %682 = vmatprep.subr.mxu0 0.0
    %683 = vmatpush1.xpose.msra.mxu0 0.0
    %684 = vmatprep.subr.mxu0 0.0
    %685 = vmatpush1.xpose.msra.mxu0 0.0
    %686 = vmatprep.subr.mxu0 0.0
    %687 = vmatpush1.xpose.msra.mxu0 0.0
    %688 = vmatprep.subr.mxu0 0.0
    %689 = vmatpush1.xpose.msra.mxu0 0.0
    %690 = vmatprep.subr.mxu0 0.0
    %691 = vmatpush1.xpose.msra.mxu0 0.0
    %692 = vmatprep.subr.mxu0 0.0
    %693 = vmatpush1.xpose.msra.mxu0 0.0
    %694 = vmatprep.mubr.f32.mxu0 0.0
    %695 = vmatmul.mubr.f32.gmra.mrb[0].mxu0 %v626
    %v696 = vpop.f32.mrb[0].mxu0
    %v697 = vadd.f32 0.0, %v696
    %v698 = vpop.f32.mrb[0].mxu0
    %699 = vdwg.mxu0
    %700 = vrot.lane.b32.xlu0 %v152, 104
    %v701 = vpop.permute.xlu0 %700
    %702 = vrot.lane.b32.xlu0 %v152, 72
    %v703 = vpop.permute.xlu0 %702
    %v704 = vsel %vm158, %v701, 0
    %v706 = vsel %vm158, %v703, 0
    %708 = vmatprep.subr.mxu0 0.0
    %709 = vmatpush1.xpose.msra.mxu0 %v706
    %710 = vmatprep.subr.mxu0 0.0
    %711 = vmatpush1.xpose.msra.mxu0 0.0
    %712 = vmatprep.subr.mxu0 0.0
    %713 = vmatpush1.xpose.msra.mxu0 0.0
    %714 = vmatprep.subr.mxu0 0.0
    %715 = vmatpush1.xpose.msra.mxu0 0.0
    %716 = vmatprep.subr.mxu0 0.0
    %717 = vmatpush1.xpose.msra.mxu0 0.0
    %718 = vmatprep.subr.mxu0 0.0
    %719 = vmatpush1.xpose.msra.mxu0 0.0
    %720 = vmatprep.subr.mxu0 0.0
    %721 = vmatpush1.xpose.msra.mxu0 0.0
    %722 = vmatprep.subr.mxu0 0.0
    %723 = vmatpush1.xpose.msra.mxu0 0.0
    %724 = vmatprep.subr.mxu0 0.0
    %725 = vmatpush1.xpose.msra.mxu0 0.0
    %726 = vmatprep.subr.mxu0 0.0
    %727 = vmatpush1.xpose.msra.mxu0 0.0
    %728 = vmatprep.subr.mxu0 0.0
    %729 = vmatpush1.xpose.msra.mxu0 0.0
    %730 = vmatprep.subr.mxu0 0.0
    %731 = vmatpush1.xpose.msra.mxu0 0.0
    %732 = vmatprep.subr.mxu0 0.0
    %733 = vmatpush1.xpose.msra.mxu0 0.0
    %734 = vmatprep.subr.mxu0 0.0
    %735 = vmatpush1.xpose.msra.mxu0 0.0
    %736 = vmatprep.subr.mxu0 0.0
    %737 = vmatpush1.xpose.msra.mxu0 0.0
    %738 = vmatprep.subr.mxu0 0.0
    %739 = vmatpush1.xpose.msra.mxu0 0.0
    %740 = vmatprep.subr.mxu0 0.0
    %741 = vmatpush1.xpose.msra.mxu0 0.0
    %742 = vmatprep.subr.mxu0 0.0
    %743 = vmatpush1.xpose.msra.mxu0 0.0
    %744 = vmatprep.subr.mxu0 0.0
    %745 = vmatpush1.xpose.msra.mxu0 0.0
    %746 = vmatprep.subr.mxu0 0.0
    %747 = vmatpush1.xpose.msra.mxu0 0.0
    %748 = vmatprep.subr.mxu0 0.0
    %749 = vmatpush1.xpose.msra.mxu0 0.0
    %750 = vmatprep.subr.mxu0 0.0
    %751 = vmatpush1.xpose.msra.mxu0 0.0
    %752 = vmatprep.subr.mxu0 0.0
    %753 = vmatpush1.xpose.msra.mxu0 0.0
    %754 = vmatprep.subr.mxu0 0.0
    %755 = vmatpush1.xpose.msra.mxu0 0.0
    %756 = vmatprep.subr.mxu0 0.0
    %757 = vmatpush1.xpose.msra.mxu0 0.0
    %758 = vmatprep.subr.mxu0 0.0
    %759 = vmatpush1.xpose.msra.mxu0 0.0
    %760 = vmatprep.subr.mxu0 0.0
    %761 = vmatpush1.xpose.msra.mxu0 0.0
    %762 = vmatprep.subr.mxu0 0.0
    %763 = vmatpush1.xpose.msra.mxu0 0.0
    %764 = vmatprep.subr.mxu0 0.0
    %765 = vmatpush1.xpose.msra.mxu0 0.0
    %766 = vmatprep.subr.mxu0 0.0
    %767 = vmatpush1.xpose.msra.mxu0 0.0
    %768 = vmatprep.subr.mxu0 0.0
    %769 = vmatpush1.xpose.msra.mxu0 0.0
    %770 = vmatprep.subr.mxu0 0.0
    %771 = vmatpush1.xpose.msra.mxu0 0.0
    %772 = vmatprep.mubr.f32.mxu0 0.0
    %773 = vmatmul.mubr.f32.gmra.mrb[0].mxu0 %v704
    %v774 = vpop.f32.mrb[0].mxu0
    %v775 = vadd.f32 0.0, %v774
    %v776 = vpop.f32.mrb[0].mxu0
    %777 = vdwg.mxu0
    %v778 = vsel %vm158, %v230, -inf
    %779 = vmax.xlane.f32.xlu0 %v778
    %v780 = vpop.xlane.xlu0 %779
    %v781 = vsel %vm158, %v308, -inf
    %782 = vmax.xlane.f32.xlu0 %v781
    %v783 = vpop.xlane.xlu0 %782
    %v784 = vsel %vm158, %v386, -inf
    %785 = vmax.xlane.f32.xlu0 %v784
    %v786 = vpop.xlane.xlu0 %785
    %v787 = vsel %vm158, %v464, -inf
    %788 = vmax.xlane.f32.xlu0 %v787
    %v789 = vpop.xlane.xlu0 %788
    %v790 = vsel %vm158, %v541, -inf
    %791 = vmax.xlane.f32.xlu0 %v790
    %v792 = vpop.xlane.xlu0 %791
    %v793 = vsel %vm158, %v619, -inf
    %794 = vmax.xlane.f32.xlu0 %v793
    %v795 = vpop.xlane.xlu0 %794
    %v796 = vsel %vm158, %v697, -inf
    %797 = vmax.xlane.f32.xlu0 %v796
    %v798 = vpop.xlane.xlu0 %797
    %v799 = vsel %vm158, %v775, -inf
    %800 = vmax.xlane.f32.xlu0 %v799
    %v801 = vpop.xlane.xlu0 %800
    %v802 = vsub.f32 %v230, %v780
    %v803 = vsub.f32 %v308, %v783
    %v804 = vsub.f32 %v386, %v786
    %v805 = vsub.f32 %v464, %v789
    %v806 = vsub.f32 %v541, %v792
    %v807 = vsub.f32 %v619, %v795
    %v808 = vsub.f32 %v697, %v798
    %v809 = vsub.f32 %v775, %v801
    %v810 = vmul.f32 %v802, 1.442695
    %v811 = vpow.pop %v810
    %v812 = vmul.f32 %v803, 1.442695
    %v813 = vpow.pop %v812
    %v814 = vmul.f32 %v804, 1.442695
    %v815 = vpow.pop %v814
    %v816 = vmul.f32 %v805, 1.442695
    %v817 = vpow.pop %v816
    %v818 = vmul.f32 %v806, 1.442695
    %v819 = vpow.pop %v818
    %v820 = vmul.f32 %v807, 1.442695
    %v821 = vpow.pop %v820
    %v822 = vmul.f32 %v808, 1.442695
    %v823 = vpow.pop %v822
    %v824 = vmul.f32 %v809, 1.442695
    %v825 = vpow.pop %v824
    %v826 = vsel %vm158, %v811, 0.0
    %827 = vadd.xlane.f32.xlu0 %v826
    %v828 = vpop.xlane.xlu0 %827
    %v829 = vsel %vm158, %v813, 0.0
    %830 = vadd.xlane.f32.xlu0 %v829
    %v831 = vpop.xlane.xlu0 %830
    %v832 = vsel %vm158, %v815, 0.0
    %833 = vadd.xlane.f32.xlu0 %v832
    %v834 = vpop.xlane.xlu0 %833
    %v835 = vsel %vm158, %v817, 0.0
    %836 = vadd.xlane.f32.xlu0 %v835
    %v837 = vpop.xlane.xlu0 %836
    %v838 = vsel %vm158, %v819, 0.0
    %839 = vadd.xlane.f32.xlu0 %v838
    %v840 = vpop.xlane.xlu0 %839
    %v841 = vsel %vm158, %v821, 0.0
    %842 = vadd.xlane.f32.xlu0 %v841
    %v843 = vpop.xlane.xlu0 %842
    %v844 = vsel %vm158, %v823, 0.0
    %845 = vadd.xlane.f32.xlu0 %v844
    %v846 = vpop.xlane.xlu0 %845
    %v847 = vsel %vm158, %v825, 0.0
    %848 = vadd.xlane.f32.xlu0 %v847
    %v849 = vpop.xlane.xlu0 %848
    %v850 = vrcp.pop %v828
    %v851 = vrcp.pop %v831
    %v852 = vrcp.pop %v834
    %v853 = vrcp.pop %v837
    %v854 = vrcp.pop %v840
    %v855 = vrcp.pop %v843
    %v856 = vrcp.pop %v846
    %v857 = vrcp.pop %v849
    %v858 = vmul.f32 %v828, %v850
    %v859 = vmul.f32 %v831, %v851
    %v860 = vmul.f32 %v834, %v852
    %v861 = vmul.f32 %v837, %v853
    %v862 = vmul.f32 %v840, %v854
    %v863 = vmul.f32 %v843, %v855
    %v864 = vmul.f32 %v846, %v856
    %v865 = vmul.f32 %v849, %v857
    %v866 = vsub.f32 2.0, %v858
    %v867 = vsub.f32 2.0, %v859
    %v868 = vsub.f32 2.0, %v860
    %v869 = vsub.f32 2.0, %v861
    %v870 = vsub.f32 2.0, %v862
    %v871 = vsub.f32 2.0, %v863
    %v872 = vsub.f32 2.0, %v864
    %v873 = vsub.f32 2.0, %v865
    %v874 = vmul.f32 %v850, %v866
    %v875 = vmul.f32 %v851, %v867
    %v876 = vmul.f32 %v852, %v868
    %v877 = vmul.f32 %v853, %v869
    %v878 = vmul.f32 %v854, %v870
    %v879 = vmul.f32 %v855, %v871
    %v880 = vmul.f32 %v856, %v872
    %v881 = vmul.f32 %v857, %v873
    %v882 = vmul.f32 %v811, %v874
    %v883 = vmul.f32 %v813, %v875
    %v884 = vmul.f32 %v815, %v876
    %v885 = vmul.f32 %v817, %v877
    %v886 = vmul.f32 %v819, %v878
    %v887 = vmul.f32 %v821, %v879
    %v888 = vmul.f32 %v823, %v880
    %v889 = vmul.f32 %v825, %v881
    %890 = vrot.lane.b32.xlu0 %v147, 64
    %v891 = vpop.permute.xlu0 %890
    %v894 = vsel %vm158, %v882, 0
    %896 = vmatprep.subr.mxu0 0.0
    %897 = vmatpush1.msra.mxu0 %v891
    %898 = vmatprep.subr.mxu0 0.0
    %899 = vmatpush1.msra.mxu0 0.0
    %900 = vmatprep.subr.mxu0 0.0
    %901 = vmatpush1.msra.mxu0 0.0
    %902 = vmatprep.subr.mxu0 0.0
    %903 = vmatpush1.msra.mxu0 0.0
    %904 = vmatprep.subr.mxu0 0.0
    %905 = vmatpush1.msra.mxu0 0.0
    %906 = vmatprep.subr.mxu0 0.0
    %907 = vmatpush1.msra.mxu0 0.0
    %908 = vmatprep.subr.mxu0 0.0
    %909 = vmatpush1.msra.mxu0 0.0
    %910 = vmatprep.subr.mxu0 0.0
    %911 = vmatpush1.msra.mxu0 0.0
    %912 = vmatprep.subr.mxu0 0.0
    %913 = vmatpush1.msra.mxu0 0.0
    %914 = vmatprep.subr.mxu0 0.0
    %915 = vmatpush1.msra.mxu0 0.0
    %916 = vmatprep.subr.mxu0 0.0
    %917 = vmatpush1.msra.mxu0 0.0
    %918 = vmatprep.subr.mxu0 0.0
    %919 = vmatpush1.msra.mxu0 0.0
    %920 = vmatprep.subr.mxu0 0.0
    %921 = vmatpush1.msra.mxu0 0.0
    %922 = vmatprep.subr.mxu0 0.0
    %923 = vmatpush1.msra.mxu0 0.0
    %924 = vmatprep.subr.mxu0 0.0
    %925 = vmatpush1.msra.mxu0 0.0
    %926 = vmatprep.subr.mxu0 0.0
    %927 = vmatpush1.msra.mxu0 0.0
    %928 = vmatprep.subr.mxu0 0.0
    %929 = vmatpush1.msra.mxu0 0.0
    %930 = vmatprep.subr.mxu0 0.0
    %931 = vmatpush1.msra.mxu0 0.0
    %932 = vmatprep.subr.mxu0 0.0
    %933 = vmatpush1.msra.mxu0 0.0
    %934 = vmatprep.subr.mxu0 0.0
    %935 = vmatpush1.msra.mxu0 0.0
    %936 = vmatprep.subr.mxu0 0.0
    %937 = vmatpush1.msra.mxu0 0.0
    %938 = vmatprep.subr.mxu0 0.0
    %939 = vmatpush1.msra.mxu0 0.0
    %940 = vmatprep.subr.mxu0 0.0
    %941 = vmatpush1.msra.mxu0 0.0
    %942 = vmatprep.subr.mxu0 0.0
    %943 = vmatpush1.msra.mxu0 0.0
    %944 = vmatprep.subr.mxu0 0.0
    %945 = vmatpush1.msra.mxu0 0.0
    %946 = vmatprep.subr.mxu0 0.0
    %947 = vmatpush1.msra.mxu0 0.0
    %948 = vmatprep.subr.mxu0 0.0
    %949 = vmatpush1.msra.mxu0 0.0
    %950 = vmatprep.subr.mxu0 0.0
    %951 = vmatpush1.msra.mxu0 0.0
    %952 = vmatprep.subr.mxu0 0.0
    %953 = vmatpush1.msra.mxu0 0.0
    %954 = vmatprep.subr.mxu0 0.0
    %955 = vmatpush1.msra.mxu0 0.0
    %956 = vmatprep.subr.mxu0 0.0
    %957 = vmatpush1.msra.mxu0 0.0
    %958 = vmatprep.subr.mxu0 0.0
    %959 = vmatpush1.msra.mxu0 0.0
    %960 = vmatprep.mubr.f32.mxu0 0.0
    %961 = vmatmul.mubr.f32.gmra.mrb[0].mxu0 %v894
    %v962 = vpop.f32.mrb[0].mxu0
    %v963 = vadd.f32 0.0, %v962
    %v964 = vpop.f32.mrb[0].mxu0
    %965 = vdwg.mxu0
    %966 = vrot.lane.b32.xlu0 %v147, 56
    %v967 = vpop.permute.xlu0 %966
    %v970 = vsel %vm158, %v883, 0
    %972 = vmatprep.subr.mxu0 0.0
    %973 = vmatpush1.msra.mxu0 %v967
    %974 = vmatprep.subr.mxu0 0.0
    %975 = vmatpush1.msra.mxu0 0.0
    %976 = vmatprep.subr.mxu0 0.0
    %977 = vmatpush1.msra.mxu0 0.0
    %978 = vmatprep.subr.mxu0 0.0
    %979 = vmatpush1.msra.mxu0 0.0
    %980 = vmatprep.subr.mxu0 0.0
    %981 = vmatpush1.msra.mxu0 0.0
    %982 = vmatprep.subr.mxu0 0.0
    %983 = vmatpush1.msra.mxu0 0.0
    %984 = vmatprep.subr.mxu0 0.0
    %985 = vmatpush1.msra.mxu0 0.0
    %986 = vmatprep.subr.mxu0 0.0
    %987 = vmatpush1.msra.mxu0 0.0
    %988 = vmatprep.subr.mxu0 0.0
    %989 = vmatpush1.msra.mxu0 0.0
    %990 = vmatprep.subr.mxu0 0.0
    %991 = vmatpush1.msra.mxu0 0.0
    %992 = vmatprep.subr.mxu0 0.0
    %993 = vmatpush1.msra.mxu0 0.0
    %994 = vmatprep.subr.mxu0 0.0
    %995 = vmatpush1.msra.mxu0 0.0
    %996 = vmatprep.subr.mxu0 0.0
    %997 = vmatpush1.msra.mxu0 0.0
    %998 = vmatprep.subr.mxu0 0.0
    %999 = vmatpush1.msra.mxu0 0.0
    %1000 = vmatprep.subr.mxu0 0.0
    %1001 = vmatpush1.msra.mxu0 0.0
    %1002 = vmatprep.subr.mxu0 0.0
    %1003 = vmatpush1.msra.mxu0 0.0
    %1004 = vmatprep.subr.mxu0 0.0
    %1005 = vmatpush1.msra.mxu0 0.0
    %1006 = vmatprep.subr.mxu0 0.0
    %1007 = vmatpush1.msra.mxu0 0.0
    %1008 = vmatprep.subr.mxu0 0.0
    %1009 = vmatpush1.msra.mxu0 0.0
    %1010 = vmatprep.subr.mxu0 0.0
    %1011 = vmatpush1.msra.mxu0 0.0
    %1012 = vmatprep.subr.mxu0 0.0
    %1013 = vmatpush1.msra.mxu0 0.0
    %1014 = vmatprep.subr.mxu0 0.0
    %1015 = vmatpush1.msra.mxu0 0.0
    %1016 = vmatprep.subr.mxu0 0.0
    %1017 = vmatpush1.msra.mxu0 0.0
    %1018 = vmatprep.subr.mxu0 0.0
    %1019 = vmatpush1.msra.mxu0 0.0
    %1020 = vmatprep.subr.mxu0 0.0
    %1021 = vmatpush1.msra.mxu0 0.0
    %1022 = vmatprep.subr.mxu0 0.0
    %1023 = vmatpush1.msra.mxu0 0.0
    %1024 = vmatprep.subr.mxu0 0.0
    %1025 = vmatpush1.msra.mxu0 0.0
    %1026 = vmatprep.subr.mxu0 0.0
    %1027 = vmatpush1.msra.mxu0 0.0
    %1028 = vmatprep.subr.mxu0 0.0
    %1029 = vmatpush1.msra.mxu0 0.0
    %1030 = vmatprep.subr.mxu0 0.0
    %1031 = vmatpush1.msra.mxu0 0.0
    %1032 = vmatprep.subr.mxu0 0.0
    %1033 = vmatpush1.msra.mxu0 0.0
    %1034 = vmatprep.subr.mxu0 0.0
    %1035 = vmatpush1.msra.mxu0 0.0
    %1036 = vmatprep.mubr.f32.mxu0 0.0
    %1037 = vmatmul.mubr.f32.gmra.mrb[0].mxu0 %v970
    %v1038 = vpop.f32.mrb[0].mxu0
    %v1039 = vadd.f32 0.0, %v1038
    %v1040 = vpop.f32.mrb[0].mxu0
    %1041 = vdwg.mxu0
    %1042 = vrot.lane.b32.xlu0 %v147, 48
    %v1043 = vpop.permute.xlu0 %1042
    %v1046 = vsel %vm158, %v884, 0
    %1048 = vmatprep.subr.mxu0 0.0
    %1049 = vmatpush1.msra.mxu0 %v1043
    %1050 = vmatprep.subr.mxu0 0.0
    %1051 = vmatpush1.msra.mxu0 0.0
    %1052 = vmatprep.subr.mxu0 0.0
    %1053 = vmatpush1.msra.mxu0 0.0
    %1054 = vmatprep.subr.mxu0 0.0
    %1055 = vmatpush1.msra.mxu0 0.0
    %1056 = vmatprep.subr.mxu0 0.0
    %1057 = vmatpush1.msra.mxu0 0.0
    %1058 = vmatprep.subr.mxu0 0.0
    %1059 = vmatpush1.msra.mxu0 0.0
    %1060 = vmatprep.subr.mxu0 0.0
    %1061 = vmatpush1.msra.mxu0 0.0
    %1062 = vmatprep.subr.mxu0 0.0
    %1063 = vmatpush1.msra.mxu0 0.0
    %1064 = vmatprep.subr.mxu0 0.0
    %1065 = vmatpush1.msra.mxu0 0.0
    %1066 = vmatprep.subr.mxu0 0.0
    %1067 = vmatpush1.msra.mxu0 0.0
    %1068 = vmatprep.subr.mxu0 0.0
    %1069 = vmatpush1.msra.mxu0 0.0
    %1070 = vmatprep.subr.mxu0 0.0
    %1071 = vmatpush1.msra.mxu0 0.0
    %1072 = vmatprep.subr.mxu0 0.0
    %1073 = vmatpush1.msra.mxu0 0.0
    %1074 = vmatprep.subr.mxu0 0.0
    %1075 = vmatpush1.msra.mxu0 0.0
    %1076 = vmatprep.subr.mxu0 0.0
    %1077 = vmatpush1.msra.mxu0 0.0
    %1078 = vmatprep.subr.mxu0 0.0
    %1079 = vmatpush1.msra.mxu0 0.0
    %1080 = vmatprep.subr.mxu0 0.0
    %1081 = vmatpush1.msra.mxu0 0.0
    %1082 = vmatprep.subr.mxu0 0.0
    %1083 = vmatpush1.msra.mxu0 0.0
    %1084 = vmatprep.subr.mxu0 0.0
    %1085 = vmatpush1.msra.mxu0 0.0
    %1086 = vmatprep.subr.mxu0 0.0
    %1087 = vmatpush1.msra.mxu0 0.0
    %1088 = vmatprep.subr.mxu0 0.0
    %1089 = vmatpush1.msra.mxu0 0.0
    %1090 = vmatprep.subr.mxu0 0.0
    %1091 = vmatpush1.msra.mxu0 0.0
    %1092 = vmatprep.subr.mxu0 0.0
    %1093 = vmatpush1.msra.mxu0 0.0
    %1094 = vmatprep.subr.mxu0 0.0
    %1095 = vmatpush1.msra.mxu0 0.0
    %1096 = vmatprep.subr.mxu0 0.0
    %1097 = vmatpush1.msra.mxu0 0.0
    %1098 = vmatprep.subr.mxu0 0.0
    %1099 = vmatpush1.msra.mxu0 0.0
    %1100 = vmatprep.subr.mxu0 0.0
    %1101 = vmatpush1.msra.mxu0 0.0
    %1102 = vmatprep.subr.mxu0 0.0
    %1103 = vmatpush1.msra.mxu0 0.0
    %1104 = vmatprep.subr.mxu0 0.0
    %1105 = vmatpush1.msra.mxu0 0.0
    %1106 = vmatprep.subr.mxu0 0.0
    %1107 = vmatpush1.msra.mxu0 0.0
    %1108 = vmatprep.subr.mxu0 0.0
    %1109 = vmatpush1.msra.mxu0 0.0
    %1110 = vmatprep.subr.mxu0 0.0
    %1111 = vmatpush1.msra.mxu0 0.0
    %1112 = vmatprep.mubr.f32.mxu0 0.0
    %1113 = vmatmul.mubr.f32.gmra.mrb[0].mxu0 %v1046
    %v1114 = vpop.f32.mrb[0].mxu0
    %v1115 = vadd.f32 0.0, %v1114
    %v1116 = vpop.f32.mrb[0].mxu0
    %1117 = vdwg.mxu0
    %1118 = vrot.lane.b32.xlu0 %v147, 40
    %v1119 = vpop.permute.xlu0 %1118
    %v1122 = vsel %vm158, %v885, 0
    %1124 = vmatprep.subr.mxu0 0.0
    %1125 = vmatpush1.msra.mxu0 %v1119
    %1126 = vmatprep.subr.mxu0 0.0
    %1127 = vmatpush1.msra.mxu0 0.0
    %1128 = vmatprep.subr.mxu0 0.0
    %1129 = vmatpush1.msra.mxu0 0.0
    %1130 = vmatprep.subr.mxu0 0.0
    %1131 = vmatpush1.msra.mxu0 0.0
    %1132 = vmatprep.subr.mxu0 0.0
    %1133 = vmatpush1.msra.mxu0 0.0
    %1134 = vmatprep.subr.mxu0 0.0
    %1135 = vmatpush1.msra.mxu0 0.0
    %1136 = vmatprep.subr.mxu0 0.0
    %1137 = vmatpush1.msra.mxu0 0.0
    %1138 = vmatprep.subr.mxu0 0.0
    %1139 = vmatpush1.msra.mxu0 0.0
    %1140 = vmatprep.subr.mxu0 0.0
    %1141 = vmatpush1.msra.mxu0 0.0
    %1142 = vmatprep.subr.mxu0 0.0
    %1143 = vmatpush1.msra.mxu0 0.0
    %1144 = vmatprep.subr.mxu0 0.0
    %1145 = vmatpush1.msra.mxu0 0.0
    %1146 = vmatprep.subr.mxu0 0.0
    %1147 = vmatpush1.msra.mxu0 0.0
    %1148 = vmatprep.subr.mxu0 0.0
    %1149 = vmatpush1.msra.mxu0 0.0
    %1150 = vmatprep.subr.mxu0 0.0
    %1151 = vmatpush1.msra.mxu0 0.0
    %1152 = vmatprep.subr.mxu0 0.0
    %1153 = vmatpush1.msra.mxu0 0.0
    %1154 = vmatprep.subr.mxu0 0.0
    %1155 = vmatpush1.msra.mxu0 0.0
    %1156 = vmatprep.subr.mxu0 0.0
    %1157 = vmatpush1.msra.mxu0 0.0
    %1158 = vmatprep.subr.mxu0 0.0
    %1159 = vmatpush1.msra.mxu0 0.0
    %1160 = vmatprep.subr.mxu0 0.0
    %1161 = vmatpush1.msra.mxu0 0.0
    %1162 = vmatprep.subr.mxu0 0.0
    %1163 = vmatpush1.msra.mxu0 0.0
    %1164 = vmatprep.subr.mxu0 0.0
    %1165 = vmatpush1.msra.mxu0 0.0
    %1166 = vmatprep.subr.mxu0 0.0
    %1167 = vmatpush1.msra.mxu0 0.0
    %1168 = vmatprep.subr.mxu0 0.0
    %1169 = vmatpush1.msra.mxu0 0.0
    %1170 = vmatprep.subr.mxu0 0.0
    %1171 = vmatpush1.msra.mxu0 0.0
    %1172 = vmatprep.subr.mxu0 0.0
    %1173 = vmatpush1.msra.mxu0 0.0
    %1174 = vmatprep.subr.mxu0 0.0
    %1175 = vmatpush1.msra.mxu0 0.0
    %1176 = vmatprep.subr.mxu0 0.0
    %1177 = vmatpush1.msra.mxu0 0.0
    %1178 = vmatprep.subr.mxu0 0.0
    %1179 = vmatpush1.msra.mxu0 0.0
    %1180 = vmatprep.subr.mxu0 0.0
    %1181 = vmatpush1.msra.mxu0 0.0
    %1182 = vmatprep.subr.mxu0 0.0
    %1183 = vmatpush1.msra.mxu0 0.0
    %1184 = vmatprep.subr.mxu0 0.0
    %1185 = vmatpush1.msra.mxu0 0.0
    %1186 = vmatprep.subr.mxu0 0.0
    %1187 = vmatpush1.msra.mxu0 0.0
    %1188 = vmatprep.mubr.f32.mxu0 0.0
    %1189 = vmatmul.mubr.f32.gmra.mrb[0].mxu0 %v1122
    %v1190 = vpop.f32.mrb[0].mxu0
    %v1191 = vadd.f32 0.0, %v1190
    %v1192 = vpop.f32.mrb[0].mxu0
    %1193 = vdwg.mxu0
    %1195 = vrot.lane.b32.xlu0 %v1039, 8
    %v1196 = vpop.permute.xlu0 %1195
    %1199 = vrot.lane.b32.xlu0 %v1115, 16
    %v1200 = vpop.permute.xlu0 %1199
    %1203 = vrot.lane.b32.xlu0 %v1191, 24
    %v1204 = vpop.permute.xlu0 %1203
    %v1206 = vsel %vm158, %v963, %v1196
    %vm1207 = vcmask 130048
    %v1208 = vsel %vm1207, %v1206, %v1200
    %vm1209 = vcmask 195584
    %v1210 = vsel %vm1209, %v1208, %v1204
    %1211 = vrot.lane.b32.xlu0 %v152, 64
    %v1212 = vpop.permute.xlu0 %1211
    %v1215 = vsel %vm158, %v886, 0
    %1217 = vmatprep.subr.mxu0 0.0
    %1218 = vmatpush1.msra.mxu0 %v1212
    %1219 = vmatprep.subr.mxu0 0.0
    %1220 = vmatpush1.msra.mxu0 0.0
    %1221 = vmatprep.subr.mxu0 0.0
    %1222 = vmatpush1.msra.mxu0 0.0
    %1223 = vmatprep.subr.mxu0 0.0
    %1224 = vmatpush1.msra.mxu0 0.0
    %1225 = vmatprep.subr.mxu0 0.0
    %1226 = vmatpush1.msra.mxu0 0.0
    %1227 = vmatprep.subr.mxu0 0.0
    %1228 = vmatpush1.msra.mxu0 0.0
    %1229 = vmatprep.subr.mxu0 0.0
    %1230 = vmatpush1.msra.mxu0 0.0
    %1231 = vmatprep.subr.mxu0 0.0
    %1232 = vmatpush1.msra.mxu0 0.0
    %1233 = vmatprep.subr.mxu0 0.0
    %1234 = vmatpush1.msra.mxu0 0.0
    %1235 = vmatprep.subr.mxu0 0.0
    %1236 = vmatpush1.msra.mxu0 0.0
    %1237 = vmatprep.subr.mxu0 0.0
    %1238 = vmatpush1.msra.mxu0 0.0
    %1239 = vmatprep.subr.mxu0 0.0
    %1240 = vmatpush1.msra.mxu0 0.0
    %1241 = vmatprep.subr.mxu0 0.0
    %1242 = vmatpush1.msra.mxu0 0.0
    %1243 = vmatprep.subr.mxu0 0.0
    %1244 = vmatpush1.msra.mxu0 0.0
    %1245 = vmatprep.subr.mxu0 0.0
    %1246 = vmatpush1.msra.mxu0 0.0
    %1247 = vmatprep.subr.mxu0 0.0
    %1248 = vmatpush1.msra.mxu0 0.0
    %1249 = vmatprep.subr.mxu0 0.0
    %1250 = vmatpush1.msra.mxu0 0.0
    %1251 = vmatprep.subr.mxu0 0.0
    %1252 = vmatpush1.msra.mxu0 0.0
    %1253 = vmatprep.subr.mxu0 0.0
    %1254 = vmatpush1.msra.mxu0 0.0
    %1255 = vmatprep.subr.mxu0 0.0
    %1256 = vmatpush1.msra.mxu0 0.0
    %1257 = vmatprep.subr.mxu0 0.0
    %1258 = vmatpush1.msra.mxu0 0.0
    %1259 = vmatprep.subr.mxu0 0.0
    %1260 = vmatpush1.msra.mxu0 0.0
    %1261 = vmatprep.subr.mxu0 0.0
    %1262 = vmatpush1.msra.mxu0 0.0
    %1263 = vmatprep.subr.mxu0 0.0
    %1264 = vmatpush1.msra.mxu0 0.0
    %1265 = vmatprep.subr.mxu0 0.0
    %1266 = vmatpush1.msra.mxu0 0.0
    %1267 = vmatprep.subr.mxu0 0.0
    %1268 = vmatpush1.msra.mxu0 0.0
    %1269 = vmatprep.subr.mxu0 0.0
    %1270 = vmatpush1.msra.mxu0 0.0
    %1271 = vmatprep.subr.mxu0 0.0
    %1272 = vmatpush1.msra.mxu0 0.0
    %1273 = vmatprep.subr.mxu0 0.0
    %1274 = vmatpush1.msra.mxu0 0.0
    %1275 = vmatprep.subr.mxu0 0.0
    %1276 = vmatpush1.msra.mxu0 0.0
    %1277 = vmatprep.subr.mxu0 0.0
    %1278 = vmatpush1.msra.mxu0 0.0
    %1279 = vmatprep.subr.mxu0 0.0
    %1280 = vmatpush1.msra.mxu0 0.0
    %1281 = vmatprep.mubr.f32.mxu0 0.0
    %1282 = vmatmul.mubr.f32.gmra.mrb[0].mxu0 %v1215
    %v1283 = vpop.f32.mrb[0].mxu0
    %v1284 = vadd.f32 0.0, %v1283
    %v1285 = vpop.f32.mrb[0].mxu0
    %1286 = vdwg.mxu0
    %1287 = vrot.lane.b32.xlu0 %v152, 56
    %v1288 = vpop.permute.xlu0 %1287
    %v1291 = vsel %vm158, %v887, 0
    %1293 = vmatprep.subr.mxu0 0.0
    %1294 = vmatpush1.msra.mxu0 %v1288
    %1295 = vmatprep.subr.mxu0 0.0
    %1296 = vmatpush1.msra.mxu0 0.0
    %1297 = vmatprep.subr.mxu0 0.0
    %1298 = vmatpush1.msra.mxu0 0.0
    %1299 = vmatprep.subr.mxu0 0.0
    %1300 = vmatpush1.msra.mxu0 0.0
    %1301 = vmatprep.subr.mxu0 0.0
    %1302 = vmatpush1.msra.mxu0 0.0
    %1303 = vmatprep.subr.mxu0 0.0
    %1304 = vmatpush1.msra.mxu0 0.0
    %1305 = vmatprep.subr.mxu0 0.0
    %1306 = vmatpush1.msra.mxu0 0.0
    %1307 = vmatprep.subr.mxu0 0.0
    %1308 = vmatpush1.msra.mxu0 0.0
    %1309 = vmatprep.subr.mxu0 0.0
    %1310 = vmatpush1.msra.mxu0 0.0
    %1311 = vmatprep.subr.mxu0 0.0
    %1312 = vmatpush1.msra.mxu0 0.0
    %1313 = vmatprep.subr.mxu0 0.0
    %1314 = vmatpush1.msra.mxu0 0.0
    %1315 = vmatprep.subr.mxu0 0.0
    %1316 = vmatpush1.msra.mxu0 0.0
    %1317 = vmatprep.subr.mxu0 0.0
    %1318 = vmatpush1.msra.mxu0 0.0
    %1319 = vmatprep.subr.mxu0 0.0
    %1320 = vmatpush1.msra.mxu0 0.0
    %1321 = vmatprep.subr.mxu0 0.0
    %1322 = vmatpush1.msra.mxu0 0.0
    %1323 = vmatprep.subr.mxu0 0.0
    %1324 = vmatpush1.msra.mxu0 0.0
    %1325 = vmatprep.subr.mxu0 0.0
    %1326 = vmatpush1.msra.mxu0 0.0
    %1327 = vmatprep.subr.mxu0 0.0
    %1328 = vmatpush1.msra.mxu0 0.0
    %1329 = vmatprep.subr.mxu0 0.0
    %1330 = vmatpush1.msra.mxu0 0.0
    %1331 = vmatprep.subr.mxu0 0.0
    %1332 = vmatpush1.msra.mxu0 0.0
    %1333 = vmatprep.subr.mxu0 0.0
    %1334 = vmatpush1.msra.mxu0 0.0
    %1335 = vmatprep.subr.mxu0 0.0
    %1336 = vmatpush1.msra.mxu0 0.0
    %1337 = vmatprep.subr.mxu0 0.0
    %1338 = vmatpush1.msra.mxu0 0.0
    %1339 = vmatprep.subr.mxu0 0.0
    %1340 = vmatpush1.msra.mxu0 0.0
    %1341 = vmatprep.subr.mxu0 0.0
    %1342 = vmatpush1.msra.mxu0 0.0
    %1343 = vmatprep.subr.mxu0 0.0
    %1344 = vmatpush1.msra.mxu0 0.0
    %1345 = vmatprep.subr.mxu0 0.0
    %1346 = vmatpush1.msra.mxu0 0.0
    %1347 = vmatprep.subr.mxu0 0.0
    %1348 = vmatpush1.msra.mxu0 0.0
    %1349 = vmatprep.subr.mxu0 0.0
    %1350 = vmatpush1.msra.mxu0 0.0
    %1351 = vmatprep.subr.mxu0 0.0
    %1352 = vmatpush1.msra.mxu0 0.0
    %1353 = vmatprep.subr.mxu0 0.0
    %1354 = vmatpush1.msra.mxu0 0.0
    %1355 = vmatprep.subr.mxu0 0.0
    %1356 = vmatpush1.msra.mxu0 0.0
    %1357 = vmatprep.mubr.f32.mxu0 0.0
    %1358 = vmatmul.mubr.f32.gmra.mrb[0].mxu0 %v1291
    %v1359 = vpop.f32.mrb[0].mxu0
    %v1360 = vadd.f32 0.0, %v1359
    %v1361 = vpop.f32.mrb[0].mxu0
    %1362 = vdwg.mxu0
    %1363 = vrot.lane.b32.xlu0 %v152, 48
    %v1364 = vpop.permute.xlu0 %1363
    %v1367 = vsel %vm158, %v888, 0
    %1369 = vmatprep.subr.mxu0 0.0
    %1370 = vmatpush1.msra.mxu0 %v1364
    %1371 = vmatprep.subr.mxu0 0.0
    %1372 = vmatpush1.msra.mxu0 0.0
    %1373 = vmatprep.subr.mxu0 0.0
    %1374 = vmatpush1.msra.mxu0 0.0
    %1375 = vmatprep.subr.mxu0 0.0
    %1376 = vmatpush1.msra.mxu0 0.0
    %1377 = vmatprep.subr.mxu0 0.0
    %1378 = vmatpush1.msra.mxu0 0.0
    %1379 = vmatprep.subr.mxu0 0.0
    %1380 = vmatpush1.msra.mxu0 0.0
    %1381 = vmatprep.subr.mxu0 0.0
    %1382 = vmatpush1.msra.mxu0 0.0
    %1383 = vmatprep.subr.mxu0 0.0
    %1384 = vmatpush1.msra.mxu0 0.0
    %1385 = vmatprep.subr.mxu0 0.0
    %1386 = vmatpush1.msra.mxu0 0.0
    %1387 = vmatprep.subr.mxu0 0.0
    %1388 = vmatpush1.msra.mxu0 0.0
    %1389 = vmatprep.subr.mxu0 0.0
    %1390 = vmatpush1.msra.mxu0 0.0
    %1391 = vmatprep.subr.mxu0 0.0
    %1392 = vmatpush1.msra.mxu0 0.0
    %1393 = vmatprep.subr.mxu0 0.0
    %1394 = vmatpush1.msra.mxu0 0.0
    %1395 = vmatprep.subr.mxu0 0.0
    %1396 = vmatpush1.msra.mxu0 0.0
    %1397 = vmatprep.subr.mxu0 0.0
    %1398 = vmatpush1.msra.mxu0 0.0
    %1399 = vmatprep.subr.mxu0 0.0
    %1400 = vmatpush1.msra.mxu0 0.0
    %1401 = vmatprep.subr.mxu0 0.0
    %1402 = vmatpush1.msra.mxu0 0.0
    %1403 = vmatprep.subr.mxu0 0.0
    %1404 = vmatpush1.msra.mxu0 0.0
    %1405 = vmatprep.subr.mxu0 0.0
    %1406 = vmatpush1.msra.mxu0 0.0
    %1407 = vmatprep.subr.mxu0 0.0
    %1408 = vmatpush1.msra.mxu0 0.0
    %1409 = vmatprep.subr.mxu0 0.0
    %1410 = vmatpush1.msra.mxu0 0.0
    %1411 = vmatprep.subr.mxu0 0.0
    %1412 = vmatpush1.msra.mxu0 0.0
    %1413 = vmatprep.subr.mxu0 0.0
    %1414 = vmatpush1.msra.mxu0 0.0
    %1415 = vmatprep.subr.mxu0 0.0
    %1416 = vmatpush1.msra.mxu0 0.0
    %1417 = vmatprep.subr.mxu0 0.0
    %1418 = vmatpush1.msra.mxu0 0.0
    %1419 = vmatprep.subr.mxu0 0.0
    %1420 = vmatpush1.msra.mxu0 0.0
    %1421 = vmatprep.subr.mxu0 0.0
    %1422 = vmatpush1.msra.mxu0 0.0
    %1423 = vmatprep.subr.mxu0 0.0
    %1424 = vmatpush1.msra.mxu0 0.0
    %1425 = vmatprep.subr.mxu0 0.0
    %1426 = vmatpush1.msra.mxu0 0.0
    %1427 = vmatprep.subr.mxu0 0.0
    %1428 = vmatpush1.msra.mxu0 0.0
    %1429 = vmatprep.subr.mxu0 0.0
    %1430 = vmatpush1.msra.mxu0 0.0
    %1431 = vmatprep.subr.mxu0 0.0
    %1432 = vmatpush1.msra.mxu0 0.0
    %1433 = vmatprep.mubr.f32.mxu0 0.0
    %1434 = vmatmul.mubr.f32.gmra.mrb[0].mxu0 %v1367
    %v1435 = vpop.f32.mrb[0].mxu0
    %v1436 = vadd.f32 0.0, %v1435
    %v1437 = vpop.f32.mrb[0].mxu0
    %1438 = vdwg.mxu0
    %1439 = vrot.lane.b32.xlu0 %v152, 40
    %v1440 = vpop.permute.xlu0 %1439
    %v1443 = vsel %vm158, %v889, 0
    %1445 = vmatprep.subr.mxu0 0.0
    %1446 = vmatpush1.msra.mxu0 %v1440
    %1447 = vmatprep.subr.mxu0 0.0
    %1448 = vmatpush1.msra.mxu0 0.0
    %1449 = vmatprep.subr.mxu0 0.0
    %1450 = vmatpush1.msra.mxu0 0.0
    %1451 = vmatprep.subr.mxu0 0.0
    %1452 = vmatpush1.msra.mxu0 0.0
    %1453 = vmatprep.subr.mxu0 0.0
    %1454 = vmatpush1.msra.mxu0 0.0
    %1455 = vmatprep.subr.mxu0 0.0
    %1456 = vmatpush1.msra.mxu0 0.0
    %1457 = vmatprep.subr.mxu0 0.0
    %1458 = vmatpush1.msra.mxu0 0.0
    %1459 = vmatprep.subr.mxu0 0.0
    %1460 = vmatpush1.msra.mxu0 0.0
    %1461 = vmatprep.subr.mxu0 0.0
    %1462 = vmatpush1.msra.mxu0 0.0
    %1463 = vmatprep.subr.mxu0 0.0
    %1464 = vmatpush1.msra.mxu0 0.0
    %1465 = vmatprep.subr.mxu0 0.0
    %1466 = vmatpush1.msra.mxu0 0.0
    %1467 = vmatprep.subr.mxu0 0.0
    %1468 = vmatpush1.msra.mxu0 0.0
    %1469 = vmatprep.subr.mxu0 0.0
    %1470 = vmatpush1.msra.mxu0 0.0
    %1471 = vmatprep.subr.mxu0 0.0
    %1472 = vmatpush1.msra.mxu0 0.0
    %1473 = vmatprep.subr.mxu0 0.0
    %1474 = vmatpush1.msra.mxu0 0.0
    %1475 = vmatprep.subr.mxu0 0.0
    %1476 = vmatpush1.msra.mxu0 0.0
    %1477 = vmatprep.subr.mxu0 0.0
    %1478 = vmatpush1.msra.mxu0 0.0
    %1479 = vmatprep.subr.mxu0 0.0
    %1480 = vmatpush1.msra.mxu0 0.0
    %1481 = vmatprep.subr.mxu0 0.0
    %1482 = vmatpush1.msra.mxu0 0.0
    %1483 = vmatprep.subr.mxu0 0.0
    %1484 = vmatpush1.msra.mxu0 0.0
    %1485 = vmatprep.subr.mxu0 0.0
    %1486 = vmatpush1.msra.mxu0 0.0
    %1487 = vmatprep.subr.mxu0 0.0
    %1488 = vmatpush1.msra.mxu0 0.0
    %1489 = vmatprep.subr.mxu0 0.0
    %1490 = vmatpush1.msra.mxu0 0.0
    %1491 = vmatprep.subr.mxu0 0.0
    %1492 = vmatpush1.msra.mxu0 0.0
    %1493 = vmatprep.subr.mxu0 0.0
    %1494 = vmatpush1.msra.mxu0 0.0
    %1495 = vmatprep.subr.mxu0 0.0
    %1496 = vmatpush1.msra.mxu0 0.0
    %1497 = vmatprep.subr.mxu0 0.0
    %1498 = vmatpush1.msra.mxu0 0.0
    %1499 = vmatprep.subr.mxu0 0.0
    %1500 = vmatpush1.msra.mxu0 0.0
    %1501 = vmatprep.subr.mxu0 0.0
    %1502 = vmatpush1.msra.mxu0 0.0
    %1503 = vmatprep.subr.mxu0 0.0
    %1504 = vmatpush1.msra.mxu0 0.0
    %1505 = vmatprep.subr.mxu0 0.0
    %1506 = vmatpush1.msra.mxu0 0.0
    %1507 = vmatprep.subr.mxu0 0.0
    %1508 = vmatpush1.msra.mxu0 0.0
    %1509 = vmatprep.mubr.f32.mxu0 0.0
    %1510 = vmatmul.mubr.f32.gmra.mrb[0].mxu0 %v1443
    %v1511 = vpop.f32.mrb[0].mxu0
    %v1512 = vadd.f32 0.0, %v1511
    %v1513 = vpop.f32.mrb[0].mxu0
    %1514 = vdwg.mxu0
    %1516 = vrot.lane.b32.xlu0 %v1360, 8
    %v1517 = vpop.permute.xlu0 %1516
    %1520 = vrot.lane.b32.xlu0 %v1436, 16
    %v1521 = vpop.permute.xlu0 %1520
    %1524 = vrot.lane.b32.xlu0 %v1512, 24
    %v1525 = vpop.permute.xlu0 %1524
    %v1527 = vsel %vm158, %v1284, %v1517
    %v1528 = vsel %vm1207, %v1527, %v1521
    %v1529 = vsel %vm1209, %v1528, %v1525
    %v1530 = vld [vmem:[%s2] sm:$0xff]
    %v1531 = vld [vmem:[%s2 + $0x8] sm:$0xff]
    %v1532 = vld [vmem:[%s2 + $0x10] sm:$0xff]
    %v1533 = vld [vmem:[%s2 + $0x18] sm:$0xff]
    %v1535 = vsel %vm30, %v1210, 0
    %v1538 = vsel %vm30, %v1529, 0
    %1540 = vmatprep.subr.mxu0 0.0
    %1541 = vmatpush1.msra.mxu0 %v1530
    %1542 = vmatprep.subr.mxu0 0.0
    %1543 = vmatpush1.msra.mxu0 %v1531
    %1544 = vmatprep.subr.mxu0 0.0
    %1545 = vmatpush1.msra.mxu0 %v1532
    %1546 = vmatprep.subr.mxu0 0.0
    %1547 = vmatpush1.msra.mxu0 %v1533
    %1548 = vmatprep.subr.mxu0 0.0
    %1549 = vmatpush1.msra.mxu0 0.0
    %1550 = vmatprep.subr.mxu0 0.0
    %1551 = vmatpush1.msra.mxu0 0.0
    %1552 = vmatprep.subr.mxu0 0.0
    %1553 = vmatpush1.msra.mxu0 0.0
    %1554 = vmatprep.subr.mxu0 0.0
    %1555 = vmatpush1.msra.mxu0 0.0
    %1556 = vmatprep.subr.mxu0 0.0
    %1557 = vmatpush1.msra.mxu0 0.0
    %1558 = vmatprep.subr.mxu0 0.0
    %1559 = vmatpush1.msra.mxu0 0.0
    %1560 = vmatprep.subr.mxu0 0.0
    %1561 = vmatpush1.msra.mxu0 0.0
    %1562 = vmatprep.subr.mxu0 0.0
    %1563 = vmatpush1.msra.mxu0 0.0
    %1564 = vmatprep.subr.mxu0 0.0
    %1565 = vmatpush1.msra.mxu0 0.0
    %1566 = vmatprep.subr.mxu0 0.0
    %1567 = vmatpush1.msra.mxu0 0.0
    %1568 = vmatprep.subr.mxu0 0.0
    %1569 = vmatpush1.msra.mxu0 0.0
    %1570 = vmatprep.subr.mxu0 0.0
    %1571 = vmatpush1.msra.mxu0 0.0
    %1572 = vmatprep.subr.mxu0 0.0
    %1573 = vmatpush1.msra.mxu0 0.0
    %1574 = vmatprep.subr.mxu0 0.0
    %1575 = vmatpush1.msra.mxu0 0.0
    %1576 = vmatprep.subr.mxu0 0.0
    %1577 = vmatpush1.msra.mxu0 0.0
    %1578 = vmatprep.subr.mxu0 0.0
    %1579 = vmatpush1.msra.mxu0 0.0
    %1580 = vmatprep.subr.mxu0 0.0
    %1581 = vmatpush1.msra.mxu0 0.0
    %1582 = vmatprep.subr.mxu0 0.0
    %1583 = vmatpush1.msra.mxu0 0.0
    %1584 = vmatprep.subr.mxu0 0.0
    %1585 = vmatpush1.msra.mxu0 0.0
    %1586 = vmatprep.subr.mxu0 0.0
    %1587 = vmatpush1.msra.mxu0 0.0
    %1588 = vmatprep.subr.mxu0 0.0
    %1589 = vmatpush1.msra.mxu0 0.0
    %1590 = vmatprep.subr.mxu0 0.0
    %1591 = vmatpush1.msra.mxu0 0.0
    %1592 = vmatprep.subr.mxu0 0.0
    %1593 = vmatpush1.msra.mxu0 0.0
    %1594 = vmatprep.subr.mxu0 0.0
    %1595 = vmatpush1.msra.mxu0 0.0
    %1596 = vmatprep.subr.mxu0 0.0
    %1597 = vmatpush1.msra.mxu0 0.0
    %1598 = vmatprep.subr.mxu0 0.0
    %1599 = vmatpush1.msra.mxu0 0.0
    %1600 = vmatprep.subr.mxu0 0.0
    %1601 = vmatpush1.msra.mxu0 0.0
    %1602 = vmatprep.subr.mxu0 0.0
    %1603 = vmatpush1.msra.mxu0 0.0
    %1604 = vmatprep.mubr.f32.mxu0 0.0
    %1605 = vmatmul.mubr.f32.gmra.mrb[0].mxu0 %v1535
    %v1606 = vpop.f32.mrb[0].mxu0
    %v1607 = vadd.f32 0.0, %v1606
    %v1608 = vpop.f32.mrb[0].mxu0
    %1609 = vmatprep.mubr.f32.mxu0 0.0
    %1610 = vmatmul.mubr.f32.gmra.mrb[0].mxu0 %v1538
    %v1611 = vpop.f32.mrb[0].mxu0
    %v1612 = vadd.f32 0.0, %v1611
    %v1613 = vpop.f32.mrb[0].mxu0
    %1614 = vdwg.mxu0
    %v1615 = vadd.f32 %v27, %v1607
    %v1616 = vadd.f32 %v28, %v1612
    %v1617 = vlaneseq
    %v1618 = vshrl.u32 %v1617, 7
    %v1619 = vsub.s32 2, %v1618
    %v1620 = vrot.slane %v29, %v1619
    %v1621 = vadd.f32 %v1615, %v1620
    %v1622 = vadd.f32 %v1616, %v1620
    %v1623 = vsel %vm30, %v1621, 0.0
    %1624 = vadd.xlane.f32.xlu0 %v1623
    %v1625 = vpop.xlane.xlu0 %1624
    %v1626 = vsel %vm30, %v1622, 0.0
    %1627 = vadd.xlane.f32.xlu0 %v1626
    %v1628 = vpop.xlane.xlu0 %1627
    %v1629 = vmul.f32 %v1625, %v37
    %v1630 = vmul.f32 %v1628, %v37
    %v1631 = vsub.f32 %v1621, %v1629
    %v1632 = vsub.f32 %v1622, %v1630
    %v1633 = vmul.f32 %v1631, %v1631
    %v1634 = vmul.f32 %v1632, %v1632
    %v1635 = vsel %vm30, %v1633, 0.0
    %1636 = vadd.xlane.f32.xlu0 %v1635
    %v1637 = vpop.xlane.xlu0 %1636
    %v1638 = vsel %vm30, %v1634, 0.0
    %1639 = vadd.xlane.f32.xlu0 %v1638
    %v1640 = vpop.xlane.xlu0 %1639
    %v1641 = vmul.f32 %v1637, %v37
    %v1642 = vmul.f32 %v1640, %v37
    %v1643 = vadd.f32 %v1641, 1e-05
    %v1644 = vadd.f32 %v1642, 1e-05
    %v1645 = vrsqrt.pop %v1643
    %v1646 = vrsqrt.pop %v1644
    %v1647 = vmul.f32 %v1631, %v1645
    %v1648 = vmul.f32 %v1632, %v1646
    %v1649 = vlaneseq
    %v1650 = vshrl.u32 %v1649, 7
    %v1651 = vsub.s32 3, %v1650
    %v1652 = vrot.slane %v29, %v1651
    %v1653 = vmul.f32 %v1647, %v1652
    %v1654 = vmul.f32 %v1648, %v1652
    %v1655 = vlaneseq
    %v1656 = vshrl.u32 %v1655, 7
    %v1657 = vsub.s32 4, %v1656
    %v1658 = vrot.slane %v29, %v1657
    %v1659 = vadd.f32 %v1653, %v1658
    %v1660 = vadd.f32 %v1654, %v1658
    %v1661 = vld [vmem:[%s3] sm:$0xff]
    %v1662 = vld [vmem:[%s3 + $0x8] sm:$0xff]
    %v1663 = vld [vmem:[%s3 + $0x10] sm:$0xff]
    %v1664 = vld [vmem:[%s3 + $0x18] sm:$0xff]
    %v1665 = vld [vmem:[%s3 + $0x20] sm:$0xff]
    %v1666 = vld [vmem:[%s3 + $0x28] sm:$0xff]
    %v1667 = vld [vmem:[%s3 + $0x30] sm:$0xff]
    %v1668 = vld [vmem:[%s3 + $0x38] sm:$0xff]
    %v1669 = vld [vmem:[%s4] sm:$0x3]
    %v1671 = vlaneseq
    %v1672 = vshrl.u32 %v1671, 7
    %v1673 = vsub.s32 0, %v1672
    %v1674 = vrot.slane %v1669, %v1673
    %v1675 = vlaneseq
    %v1676 = vshrl.u32 %v1675, 7
    %v1677 = vsub.s32 1, %v1676
    %v1678 = vrot.slane %v1669, %v1677
    %v1682 = vsel %vm30, %v1659, 0
    %v1685 = vsel %vm30, %v1660, 0
    %1687 = vmatprep.subr.mxu0 %v1662
    %1688 = vmatpush1.msra.mxu0 %v1661
    %1689 = vmatprep.subr.mxu0 %v1664
    %1690 = vmatpush1.msra.mxu0 %v1663
    %1691 = vmatprep.subr.mxu0 %v1666
    %1692 = vmatpush1.msra.mxu0 %v1665
    %1693 = vmatprep.subr.mxu0 %v1668
    %1694 = vmatpush1.msra.mxu0 %v1667
    %1695 = vmatprep.subr.mxu0 0.0
    %1696 = vmatpush1.msra.mxu0 0.0
    %1697 = vmatprep.subr.mxu0 0.0
    %1698 = vmatpush1.msra.mxu0 0.0
    %1699 = vmatprep.subr.mxu0 0.0
    %1700 = vmatpush1.msra.mxu0 0.0
    %1701 = vmatprep.subr.mxu0 0.0
    %1702 = vmatpush1.msra.mxu0 0.0
    %1703 = vmatprep.subr.mxu0 0.0
    %1704 = vmatpush1.msra.mxu0 0.0
    %1705 = vmatprep.subr.mxu0 0.0
    %1706 = vmatpush1.msra.mxu0 0.0
    %1707 = vmatprep.subr.mxu0 0.0
    %1708 = vmatpush1.msra.mxu0 0.0
    %1709 = vmatprep.subr.mxu0 0.0
    %1710 = vmatpush1.msra.mxu0 0.0
    %1711 = vmatprep.subr.mxu0 0.0
    %1712 = vmatpush1.msra.mxu0 0.0
    %1713 = vmatprep.subr.mxu0 0.0
    %1714 = vmatpush1.msra.mxu0 0.0
    %1715 = vmatprep.subr.mxu0 0.0
    %1716 = vmatpush1.msra.mxu0 0.0
    %1717 = vmatprep.subr.mxu0 0.0
    %1718 = vmatpush1.msra.mxu0 0.0
    %1719 = vmatprep.subr.mxu0 0.0
    %1720 = vmatpush1.msra.mxu0 0.0
    %1721 = vmatprep.subr.mxu0 0.0
    %1722 = vmatpush1.msra.mxu0 0.0
    %1723 = vmatprep.subr.mxu0 0.0
    %1724 = vmatpush1.msra.mxu0 0.0
    %1725 = vmatprep.subr.mxu0 0.0
    %1726 = vmatpush1.msra.mxu0 0.0
    %1727 = vmatprep.subr.mxu0 0.0
    %1728 = vmatpush1.msra.mxu0 0.0
    %1729 = vmatprep.subr.mxu0 0.0
    %1730 = vmatpush1.msra.mxu0 0.0
    %1731 = vmatprep.subr.mxu0 0.0
    %1732 = vmatpush1.msra.mxu0 0.0
    %1733 = vmatprep.subr.mxu0 0.0
    %1734 = vmatpush1.msra.mxu0 0.0
    %1735 = vmatprep.subr.mxu0 0.0
    %1736 = vmatpush1.msra.mxu0 0.0
    %1737 = vmatprep.subr.mxu0 0.0
    %1738 = vmatpush1.msra.mxu0 0.0
    %1739 = vmatprep.subr.mxu0 0.0
    %1740 = vmatpush1.msra.mxu0 0.0
    %1741 = vmatprep.subr.mxu0 0.0
    %1742 = vmatpush1.msra.mxu0 0.0
    %1743 = vmatprep.subr.mxu0 0.0
    %1744 = vmatpush1.msra.mxu0 0.0
    %1745 = vmatprep.subr.mxu0 0.0
    %1746 = vmatpush1.msra.mxu0 0.0
    %1747 = vmatprep.subr.mxu0 0.0
    %1748 = vmatpush1.msra.mxu0 0.0
    %1749 = vmatprep.subr.mxu0 0.0
    %1750 = vmatpush1.msra.mxu0 0.0
    %1751 = vmatprep.mubr.f32.mxu0 0.0
    %1752 = vmatmul.mubr.f32.gmra.mrb[0].mxu0 %v1682
    %v1753 = vpop.f32.mrb[0].mxu0
    %v1754 = vadd.f32 %v1674, %v1753
    %v1755 = vpop.f32.mrb[0].mxu0
    %v1756 = vadd.f32 %v1678, %v1755
    %1757 = vmatprep.mubr.f32.mxu0 0.0
    %1758 = vmatmul.mubr.f32.gmra.mrb[0].mxu0 %v1685
    %v1759 = vpop.f32.mrb[0].mxu0
    %v1760 = vadd.f32 %v1674, %v1759
    %v1761 = vpop.f32.mrb[0].mxu0
    %v1762 = vadd.f32 %v1678, %v1761
    %1763 = vdwg.mxu0
    %v1764 = vmul.f32 %v1756, 0.5
    %v1765 = vmul.f32 %v1762, 0.5
    %v1766 = vmul.f32 %v1756, 0.70710677
    %v1767 = vmul.f32 %v1762, 0.70710677
    %vm1768 = vcmp.lt.f32.partialorder %v1766, 0.0
    %vm1769 = vcmp.lt.f32.partialorder %v1767, 0.0
    %v1770 = vsel %vm1768, -1.0, 1.0
    %v1771 = vsel %vm1769, -1.0, 1.0
    %v1772 = vand.u32 2147483647, %v1766
    %v1773 = vand.u32 2147483647, %v1767
    %v1774 = vmul.f32 %v1772, 0.3275911
    %v1775 = vmul.f32 %v1773, 0.3275911
    %v1776 = vadd.f32 %v1774, 1.0
    %v1777 = vadd.f32 %v1775, 1.0
    %v1778 = vrcp.pop %v1776
    %v1779 = vrcp.pop %v1777
    %v1780 = vmul.f32 %v1776, %v1778
    %v1781 = vmul.f32 %v1777, %v1779
    %v1782 = vsub.f32 2.0, %v1780
    %v1783 = vsub.f32 2.0, %v1781
    %v1784 = vmul.f32 %v1778, %v1782
    %v1785 = vmul.f32 %v1779, %v1783
    %v1786 = vmul.f32 %v1784, 1.0614054
    %v1787 = vmul.f32 %v1785, 1.0614054
    %v1788 = vadd.f32 %v1786, -1.4531521
    %v1789 = vadd.f32 %v1787, -1.4531521
    %v1790 = vmul.f32 %v1788, %v1784
    %v1791 = vmul.f32 %v1789, %v1785
    %v1792 = vadd.f32 %v1790, 1.4214138
    %v1793 = vadd.f32 %v1791, 1.4214138
    %v1794 = vmul.f32 %v1792, %v1784
    %v1795 = vmul.f32 %v1793, %v1785
    %v1796 = vadd.f32 %v1794, -0.28449672
    %v1797 = vadd.f32 %v1795, -0.28449672
    %v1798 = vmul.f32 %v1796, %v1784
    %v1799 = vmul.f32 %v1797, %v1785
    %v1800 = vadd.f32 %v1798, 0.2548296
    %v1801 = vadd.f32 %v1799, 0.2548296
    %v1802 = vmul.f32 %v1800, %v1784
    %v1803 = vmul.f32 %v1801, %v1785
    %v1804 = vsub.f32 0.0, %v1772
    %v1805 = vsub.f32 0.0, %v1773
    %v1806 = vmul.f32 %v1804, %v1772
    %v1807 = vmul.f32 %v1805, %v1773
    %v1808 = vmul.f32 %v1806, 1.442695
    %v1809 = vpow.pop %v1808
    %v1810 = vmul.f32 %v1807, 1.442695
    %v1811 = vpow.pop %v1810
    %v1812 = vmul.f32 %v1802, %v1809
    %v1813 = vmul.f32 %v1803, %v1811
    %v1814 = vsub.f32 1.0, %v1812
    %v1815 = vsub.f32 1.0, %v1813
    %v1816 = vmul.f32 %v1770, %v1814
    %v1817 = vmul.f32 %v1771, %v1815
    %v1818 = vadd.f32 %v1816, 1.0
    %v1819 = vadd.f32 %v1817, 1.0
    %v1820 = vmul.f32 %v1764, %v1818
    %v1821 = vmul.f32 %v1765, %v1819
    %v1822 = vmul.f32 %v1754, %v1820
    %v1823 = vmul.f32 %v1760, %v1821
    %v1824 = vld [vmem:[%s5] sm:$0xff]
    %v1825 = vld [vmem:[%s5 + $0x8] sm:$0xff]
    %v1826 = vld [vmem:[%s5 + $0x10] sm:$0xff]
    %v1827 = vld [vmem:[%s5 + $0x18] sm:$0xff]
    %v1828 = vld [vmem:[%s5 + $0x20] sm:$0xff]
    %v1829 = vld [vmem:[%s5 + $0x28] sm:$0xff]
    %v1830 = vld [vmem:[%s5 + $0x30] sm:$0xff]
    %v1831 = vld [vmem:[%s5 + $0x38] sm:$0xff]
    %v1832 = vld [vmem:[%s5 + $0x40] sm:$0xff]
    %v1833 = vld [vmem:[%s5 + $0x48] sm:$0xff]
    %v1834 = vld [vmem:[%s5 + $0x50] sm:$0xff]
    %v1835 = vld [vmem:[%s5 + $0x58] sm:$0xff]
    %v1836 = vld [vmem:[%s5 + $0x60] sm:$0xff]
    %v1837 = vld [vmem:[%s5 + $0x68] sm:$0xff]
    %v1838 = vld [vmem:[%s5 + $0x70] sm:$0xff]
    %v1839 = vld [vmem:[%s5 + $0x78] sm:$0xff]
    %1840 = vmatprep.subr.mxu0 0.0
    %1841 = vmatpush1.msra.mxu0 %v1824
    %1842 = vmatprep.subr.mxu0 0.0
    %1843 = vmatpush1.msra.mxu0 %v1825
    %1844 = vmatprep.subr.mxu0 0.0
    %1845 = vmatpush1.msra.mxu0 %v1826
    %1846 = vmatprep.subr.mxu0 0.0
    %1847 = vmatpush1.msra.mxu0 %v1827
    %1848 = vmatprep.subr.mxu0 0.0
    %1849 = vmatpush1.msra.mxu0 %v1828
    %1850 = vmatprep.subr.mxu0 0.0
    %1851 = vmatpush1.msra.mxu0 %v1829
    %1852 = vmatprep.subr.mxu0 0.0
    %1853 = vmatpush1.msra.mxu0 %v1830
    %1854 = vmatprep.subr.mxu0 0.0
    %1855 = vmatpush1.msra.mxu0 %v1831
    %1856 = vmatprep.subr.mxu0 0.0
    %1857 = vmatpush1.msra.mxu0 %v1832
    %1858 = vmatprep.subr.mxu0 0.0
    %1859 = vmatpush1.msra.mxu0 %v1833
    %1860 = vmatprep.subr.mxu0 0.0
    %1861 = vmatpush1.msra.mxu0 %v1834
    %1862 = vmatprep.subr.mxu0 0.0
    %1863 = vmatpush1.msra.mxu0 %v1835
    %1864 = vmatprep.subr.mxu0 0.0
    %1865 = vmatpush1.msra.mxu0 %v1836
    %1866 = vmatprep.subr.mxu0 0.0
    %1867 = vmatpush1.msra.mxu0 %v1837
    %1868 = vmatprep.subr.mxu0 0.0
    %1869 = vmatpush1.msra.mxu0 %v1838
    %1870 = vmatprep.subr.mxu0 0.0
    %1871 = vmatpush1.msra.mxu0 %v1839
    %1872 = vmatprep.subr.mxu0 0.0
    %1873 = vmatpush1.msra.mxu0 0.0
    %1874 = vmatprep.subr.mxu0 0.0
    %1875 = vmatpush1.msra.mxu0 0.0
    %1876 = vmatprep.subr.mxu0 0.0
    %1877 = vmatpush1.msra.mxu0 0.0
    %1878 = vmatprep.subr.mxu0 0.0
    %1879 = vmatpush1.msra.mxu0 0.0
    %1880 = vmatprep.subr.mxu0 0.0
    %1881 = vmatpush1.msra.mxu0 0.0
    %1882 = vmatprep.subr.mxu0 0.0
    %1883 = vmatpush1.msra.mxu0 0.0
    %1884 = vmatprep.subr.mxu0 0.0
    %1885 = vmatpush1.msra.mxu0 0.0
    %1886 = vmatprep.subr.mxu0 0.0
    %1887 = vmatpush1.msra.mxu0 0.0
    %1888 = vmatprep.subr.mxu0 0.0
    %1889 = vmatpush1.msra.mxu0 0.0
    %1890 = vmatprep.subr.mxu0 0.0
    %1891 = vmatpush1.msra.mxu0 0.0
    %1892 = vmatprep.subr.mxu0 0.0
    %1893 = vmatpush1.msra.mxu0 0.0
    %1894 = vmatprep.subr.mxu0 0.0
    %1895 = vmatpush1.msra.mxu0 0.0
    %1896 = vmatprep.subr.mxu0 0.0
    %1897 = vmatpush1.msra.mxu0 0.0
    %1898 = vmatprep.subr.mxu0 0.0
    %1899 = vmatpush1.msra.mxu0 0.0
    %1900 = vmatprep.subr.mxu0 0.0
    %1901 = vmatpush1.msra.mxu0 0.0
    %1902 = vmatprep.subr.mxu0 0.0
    %1903 = vmatpush1.msra.mxu0 0.0
    %1904 = vmatprep.mubr.f32.mxu0 0.0
    %1905 = vmatmul.mubr.f32.gmra.mrb[0].mxu0 %v1822
    %v1906 = vpop.f32.mrb[0].mxu0
    %v1907 = vadd.f32 0.0, %v1906
    %v1908 = vpop.f32.mrb[0].mxu0
    %1909 = vmatprep.mubr.f32.mxu0 0.0
    %1910 = vmatmul.mubr.f32.gmra.mrb[0].mxu0 %v1823
    %v1911 = vpop.f32.mrb[0].mxu0
    %v1912 = vadd.f32 0.0, %v1911
    %v1913 = vpop.f32.mrb[0].mxu0
    %1914 = vdwg.mxu0
    %v1915 = vadd.f32 %v1621, %v1907
    %v1916 = vadd.f32 %v1622, %v1912
    %v1917 = vlaneseq
    %v1918 = vshrl.u32 %v1917, 7
    %v1919 = vsub.s32 5, %v1918
    %v1920 = vrot.slane %v29, %v1919
    %v1921 = vadd.f32 %v1915, %v1920
    %v1922 = vadd.f32 %v1916, %v1920
    %s1923 = scalar_lea.vmem %s6, 8
    %v1924 = vld [vmem:[%s1923] sm:$0x3f]
    %v1925 = vsel %vm30, %v1921, 0.0
    %1926 = vadd.xlane.f32.xlu0 %v1925
    %v1927 = vpop.xlane.xlu0 %1926
    %v1928 = vsel %vm30, %v1922, 0.0
    %1929 = vadd.xlane.f32.xlu0 %v1928
    %v1930 = vpop.xlane.xlu0 %1929
    %v1931 = vmul.f32 %v1927, %v37
    %v1932 = vmul.f32 %v1930, %v37
    %v1933 = vsub.f32 %v1921, %v1931
    %v1934 = vsub.f32 %v1922, %v1932
    %v1935 = vmul.f32 %v1933, %v1933
    %v1936 = vmul.f32 %v1934, %v1934
    %v1937 = vsel %vm30, %v1935, 0.0
    %1938 = vadd.xlane.f32.xlu0 %v1937
    %v1939 = vpop.xlane.xlu0 %1938
    %v1940 = vsel %vm30, %v1936, 0.0
    %1941 = vadd.xlane.f32.xlu0 %v1940
    %v1942 = vpop.xlane.xlu0 %1941
    %v1943 = vmul.f32 %v1939, %v37
    %v1944 = vmul.f32 %v1942, %v37
    %v1945 = vadd.f32 %v1943, 1e-05
    %v1946 = vadd.f32 %v1944, 1e-05
    %v1947 = vrsqrt.pop %v1945
    %v1948 = vrsqrt.pop %v1946
    %v1949 = vmul.f32 %v1933, %v1947
    %v1950 = vmul.f32 %v1934, %v1948
    %v1951 = vlaneseq
    %v1952 = vshrl.u32 %v1951, 7
    %v1953 = vsub.s32 0, %v1952
    %v1954 = vrot.slane %v1924, %v1953
    %v1955 = vmul.f32 %v1949, %v1954
    %v1956 = vmul.f32 %v1950, %v1954
    %v1957 = vlaneseq
    %v1958 = vshrl.u32 %v1957, 7
    %v1959 = vsub.s32 1, %v1958
    %v1960 = vrot.slane %v1924, %v1959
    %v1961 = vadd.f32 %v1955, %v1960
    %v1962 = vadd.f32 %v1956, %v1960
    %s1963 = scalar_lea.vmem %s1, 32
    %v1964 = vld [vmem:[%s1963] sm:$0xff]
    %v1965 = vld [vmem:[%s1963 + $0x8] sm:$0xff]
    %v1966 = vld [vmem:[%s1963 + $0x10] sm:$0xff]
    %v1967 = vld [vmem:[%s1963 + $0x18] sm:$0xff]
    %v1969 = vsel %vm30, %v1961, 0
    %v1972 = vsel %vm30, %v1962, 0
    %1974 = vmatprep.subr.mxu0 0.0
    %1975 = vmatpush1.msra.mxu0 %v1964
    %1976 = vmatprep.subr.mxu0 0.0
    %1977 = vmatpush1.msra.mxu0 %v1965
    %1978 = vmatprep.subr.mxu0 0.0
    %1979 = vmatpush1.msra.mxu0 %v1966
    %1980 = vmatprep.subr.mxu0 0.0
    %1981 = vmatpush1.msra.mxu0 %v1967
    %1982 = vmatprep.subr.mxu0 0.0
    %1983 = vmatpush1.msra.mxu0 0.0
    %1984 = vmatprep.subr.mxu0 0.0
    %1985 = vmatpush1.msra.mxu0 0.0
    %1986 = vmatprep.subr.mxu0 0.0
    %1987 = vmatpush1.msra.mxu0 0.0
    %1988 = vmatprep.subr.mxu0 0.0
    %1989 = vmatpush1.msra.mxu0 0.0
    %1990 = vmatprep.subr.mxu0 0.0
    %1991 = vmatpush1.msra.mxu0 0.0
    %1992 = vmatprep.subr.mxu0 0.0
    %1993 = vmatpush1.msra.mxu0 0.0
    %1994 = vmatprep.subr.mxu0 0.0
    %1995 = vmatpush1.msra.mxu0 0.0
    %1996 = vmatprep.subr.mxu0 0.0
    %1997 = vmatpush1.msra.mxu0 0.0
    %1998 = vmatprep.subr.mxu0 0.0
    %1999 = vmatpush1.msra.mxu0 0.0
    %2000 = vmatprep.subr.mxu0 0.0
    %2001 = vmatpush1.msra.mxu0 0.0
    %2002 = vmatprep.subr.mxu0 0.0
    %2003 = vmatpush1.msra.mxu0 0.0
    %2004 = vmatprep.subr.mxu0 0.0
    %2005 = vmatpush1.msra.mxu0 0.0
    %2006 = vmatprep.subr.mxu0 0.0
    %2007 = vmatpush1.msra.mxu0 0.0
    %2008 = vmatprep.subr.mxu0 0.0
    %2009 = vmatpush1.msra.mxu0 0.0
    %2010 = vmatprep.subr.mxu0 0.0
    %2011 = vmatpush1.msra.mxu0 0.0
    %2012 = vmatprep.subr.mxu0 0.0
    %2013 = vmatpush1.msra.mxu0 0.0
    %2014 = vmatprep.subr.mxu0 0.0
    %2015 = vmatpush1.msra.mxu0 0.0
    %2016 = vmatprep.subr.mxu0 0.0
    %2017 = vmatpush1.msra.mxu0 0.0
    %2018 = vmatprep.subr.mxu0 0.0
    %2019 = vmatpush1.msra.mxu0 0.0
    %2020 = vmatprep.subr.mxu0 0.0
    %2021 = vmatpush1.msra.mxu0 0.0
    %2022 = vmatprep.subr.mxu0 0.0
    %2023 = vmatpush1.msra.mxu0 0.0
    %2024 = vmatprep.subr.mxu0 0.0
    %2025 = vmatpush1.msra.mxu0 0.0
    %2026 = vmatprep.subr.mxu0 0.0
    %2027 = vmatpush1.msra.mxu0 0.0
    %2028 = vmatprep.subr.mxu0 0.0
    %2029 = vmatpush1.msra.mxu0 0.0
    %2030 = vmatprep.subr.mxu0 0.0
    %2031 = vmatpush1.msra.mxu0 0.0
    %2032 = vmatprep.subr.mxu0 0.0
    %2033 = vmatpush1.msra.mxu0 0.0
    %2034 = vmatprep.subr.mxu0 0.0
    %2035 = vmatpush1.msra.mxu0 0.0
    %2036 = vmatprep.subr.mxu0 0.0
    %2037 = vmatpush1.msra.mxu0 0.0
    %2038 = vmatprep.mubr.f32.mxu0 0.0
    %2039 = vmatmul.mubr.f32.gmra.mrb[0].mxu0 %v1969
    %v2040 = vpop.f32.mrb[0].mxu0
    %v2041 = vadd.f32 0.0, %v2040
    %v2042 = vpop.f32.mrb[0].mxu0
    %2043 = vmatprep.mubr.f32.mxu0 0.0
    %2044 = vmatmul.mubr.f32.gmra.mrb[0].mxu0 %v1972
    %v2045 = vpop.f32.mrb[0].mxu0
    %v2046 = vadd.f32 0.0, %v2045
    %v2047 = vpop.f32.mrb[0].mxu0
    %2048 = vdwg.mxu0
    %2050 = vrot.lane.b32.xlu0 %v2041, 96
    %v2051 = vpop.permute.xlu0 %2050
    %v2052 = vsel %vm158, %v2041, 0
    %v2054 = vsel %vm158, %v2051, 0
    %2056 = vmatprep.subr.mxu0 0.0
    %2057 = vmatpush1.xpose.msra.mxu0 %v2054
    %2058 = vmatprep.subr.mxu0 0.0
    %2059 = vmatpush1.xpose.msra.mxu0 0.0
    %2060 = vmatprep.subr.mxu0 0.0
    %2061 = vmatpush1.xpose.msra.mxu0 0.0
    %2062 = vmatprep.subr.mxu0 0.0
    %2063 = vmatpush1.xpose.msra.mxu0 0.0
    %2064 = vmatprep.subr.mxu0 0.0
    %2065 = vmatpush1.xpose.msra.mxu0 0.0
    %2066 = vmatprep.subr.mxu0 0.0
    %2067 = vmatpush1.xpose.msra.mxu0 0.0
    %2068 = vmatprep.subr.mxu0 0.0
    %2069 = vmatpush1.xpose.msra.mxu0 0.0
    %2070 = vmatprep.subr.mxu0 0.0
    %2071 = vmatpush1.xpose.msra.mxu0 0.0
    %2072 = vmatprep.subr.mxu0 0.0
    %2073 = vmatpush1.xpose.msra.mxu0 0.0
    %2074 = vmatprep.subr.mxu0 0.0
    %2075 = vmatpush1.xpose.msra.mxu0 0.0
    %2076 = vmatprep.subr.mxu0 0.0
    %2077 = vmatpush1.xpose.msra.mxu0 0.0
    %2078 = vmatprep.subr.mxu0 0.0
    %2079 = vmatpush1.xpose.msra.mxu0 0.0
    %2080 = vmatprep.subr.mxu0 0.0
    %2081 = vmatpush1.xpose.msra.mxu0 0.0
    %2082 = vmatprep.subr.mxu0 0.0
    %2083 = vmatpush1.xpose.msra.mxu0 0.0
    %2084 = vmatprep.subr.mxu0 0.0
    %2085 = vmatpush1.xpose.msra.mxu0 0.0
    %2086 = vmatprep.subr.mxu0 0.0
    %2087 = vmatpush1.xpose.msra.mxu0 0.0
    %2088 = vmatprep.subr.mxu0 0.0
    %2089 = vmatpush1.xpose.msra.mxu0 0.0
    %2090 = vmatprep.subr.mxu0 0.0
    %2091 = vmatpush1.xpose.msra.mxu0 0.0
    %2092 = vmatprep.subr.mxu0 0.0
    %2093 = vmatpush1.xpose.msra.mxu0 0.0
    %2094 = vmatprep.subr.mxu0 0.0
    %2095 = vmatpush1.xpose.msra.mxu0 0.0
    %2096 = vmatprep.subr.mxu0 0.0
    %2097 = vmatpush1.xpose.msra.mxu0 0.0
    %2098 = vmatprep.subr.mxu0 0.0
    %2099 = vmatpush1.xpose.msra.mxu0 0.0
    %2100 = vmatprep.subr.mxu0 0.0
    %2101 = vmatpush1.xpose.msra.mxu0 0.0
    %2102 = vmatprep.subr.mxu0 0.0
    %2103 = vmatpush1.xpose.msra.mxu0 0.0
    %2104 = vmatprep.subr.mxu0 0.0
    %2105 = vmatpush1.xpose.msra.mxu0 0.0
    %2106 = vmatprep.subr.mxu0 0.0
    %2107 = vmatpush1.xpose.msra.mxu0 0.0
    %2108 = vmatprep.subr.mxu0 0.0
    %2109 = vmatpush1.xpose.msra.mxu0 0.0
    %2110 = vmatprep.subr.mxu0 0.0
    %2111 = vmatpush1.xpose.msra.mxu0 0.0
    %2112 = vmatprep.subr.mxu0 0.0
    %2113 = vmatpush1.xpose.msra.mxu0 0.0
    %2114 = vmatprep.subr.mxu0 0.0
    %2115 = vmatpush1.xpose.msra.mxu0 0.0
    %2116 = vmatprep.subr.mxu0 0.0
    %2117 = vmatpush1.xpose.msra.mxu0 0.0
    %2118 = vmatprep.subr.mxu0 0.0
    %2119 = vmatpush1.xpose.msra.mxu0 0.0
    %2120 = vmatprep.mubr.f32.mxu0 0.0
    %2121 = vmatmul.mubr.f32.gmra.mrb[0].mxu0 %v2052
    %v2122 = vpop.f32.mrb[0].mxu0
    %v2123 = vadd.f32 0.0, %v2122
    %v2124 = vpop.f32.mrb[0].mxu0
    %2125 = vdwg.mxu0
    %2126 = vrot.lane.b32.xlu0 %v2041, 120
    %v2127 = vpop.permute.xlu0 %2126
    %2128 = vrot.lane.b32.xlu0 %v2041, 88
    %v2129 = vpop.permute.xlu0 %2128
    %v2130 = vsel %vm158, %v2127, 0
    %v2132 = vsel %vm158, %v2129, 0
    %2134 = vmatprep.subr.mxu0 0.0
    %2135 = vmatpush1.xpose.msra.mxu0 %v2132
    %2136 = vmatprep.subr.mxu0 0.0
    %2137 = vmatpush1.xpose.msra.mxu0 0.0
    %2138 = vmatprep.subr.mxu0 0.0
    %2139 = vmatpush1.xpose.msra.mxu0 0.0
    %2140 = vmatprep.subr.mxu0 0.0
    %2141 = vmatpush1.xpose.msra.mxu0 0.0
    %2142 = vmatprep.subr.mxu0 0.0
    %2143 = vmatpush1.xpose.msra.mxu0 0.0
    %2144 = vmatprep.subr.mxu0 0.0
    %2145 = vmatpush1.xpose.msra.mxu0 0.0
    %2146 = vmatprep.subr.mxu0 0.0
    %2147 = vmatpush1.xpose.msra.mxu0 0.0
    %2148 = vmatprep.subr.mxu0 0.0
    %2149 = vmatpush1.xpose.msra.mxu0 0.0
    %2150 = vmatprep.subr.mxu0 0.0
    %2151 = vmatpush1.xpose.msra.mxu0 0.0
    %2152 = vmatprep.subr.mxu0 0.0
    %2153 = vmatpush1.xpose.msra.mxu0 0.0
    %2154 = vmatprep.subr.mxu0 0.0
    %2155 = vmatpush1.xpose.msra.mxu0 0.0
    %2156 = vmatprep.subr.mxu0 0.0
    %2157 = vmatpush1.xpose.msra.mxu0 0.0
    %2158 = vmatprep.subr.mxu0 0.0
    %2159 = vmatpush1.xpose.msra.mxu0 0.0
    %2160 = vmatprep.subr.mxu0 0.0
    %2161 = vmatpush1.xpose.msra.mxu0 0.0
    %2162 = vmatprep.subr.mxu0 0.0
    %2163 = vmatpush1.xpose.msra.mxu0 0.0
    %2164 = vmatprep.subr.mxu0 0.0
    %2165 = vmatpush1.xpose.msra.mxu0 0.0
    %2166 = vmatprep.subr.mxu0 0.0
    %2167 = vmatpush1.xpose.msra.mxu0 0.0
    %2168 = vmatprep.subr.mxu0 0.0
    %2169 = vmatpush1.xpose.msra.mxu0 0.0
    %2170 = vmatprep.subr.mxu0 0.0
    %2171 = vmatpush1.xpose.msra.mxu0 0.0
    %2172 = vmatprep.subr.mxu0 0.0
    %2173 = vmatpush1.xpose.msra.mxu0 0.0
    %2174 = vmatprep.subr.mxu0 0.0
    %2175 = vmatpush1.xpose.msra.mxu0 0.0
    %2176 = vmatprep.subr.mxu0 0.0
    %2177 = vmatpush1.xpose.msra.mxu0 0.0
    %2178 = vmatprep.subr.mxu0 0.0
    %2179 = vmatpush1.xpose.msra.mxu0 0.0
    %2180 = vmatprep.subr.mxu0 0.0
    %2181 = vmatpush1.xpose.msra.mxu0 0.0
    %2182 = vmatprep.subr.mxu0 0.0
    %2183 = vmatpush1.xpose.msra.mxu0 0.0
    %2184 = vmatprep.subr.mxu0 0.0
    %2185 = vmatpush1.xpose.msra.mxu0 0.0
    %2186 = vmatprep.subr.mxu0 0.0
    %2187 = vmatpush1.xpose.msra.mxu0 0.0
    %2188 = vmatprep.subr.mxu0 0.0
    %2189 = vmatpush1.xpose.msra.mxu0 0.0
    %2190 = vmatprep.subr.mxu0 0.0
    %2191 = vmatpush1.xpose.msra.mxu0 0.0
    %2192 = vmatprep.subr.mxu0 0.0
    %2193 = vmatpush1.xpose.msra.mxu0 0.0
    %2194 = vmatprep.subr.mxu0 0.0
    %2195 = vmatpush1.xpose.msra.mxu0 0.0
    %2196 = vmatprep.subr.mxu0 0.0
    %2197 = vmatpush1.xpose.msra.mxu0 0.0
    %2198 = vmatprep.mubr.f32.mxu0 0.0
    %2199 = vmatmul.mubr.f32.gmra.mrb[0].mxu0 %v2130
    %v2200 = vpop.f32.mrb[0].mxu0
    %v2201 = vadd.f32 0.0, %v2200
    %v2202 = vpop.f32.mrb[0].mxu0
    %2203 = vdwg.mxu0
    %2204 = vrot.lane.b32.xlu0 %v2041, 112
    %v2205 = vpop.permute.xlu0 %2204
    %2206 = vrot.lane.b32.xlu0 %v2041, 80
    %v2207 = vpop.permute.xlu0 %2206
    %v2208 = vsel %vm158, %v2205, 0
    %v2210 = vsel %vm158, %v2207, 0
    %2212 = vmatprep.subr.mxu0 0.0
    %2213 = vmatpush1.xpose.msra.mxu0 %v2210
    %2214 = vmatprep.subr.mxu0 0.0
    %2215 = vmatpush1.xpose.msra.mxu0 0.0
    %2216 = vmatprep.subr.mxu0 0.0
    %2217 = vmatpush1.xpose.msra.mxu0 0.0
    %2218 = vmatprep.subr.mxu0 0.0
    %2219 = vmatpush1.xpose.msra.mxu0 0.0
    %2220 = vmatprep.subr.mxu0 0.0
    %2221 = vmatpush1.xpose.msra.mxu0 0.0
    %2222 = vmatprep.subr.mxu0 0.0
    %2223 = vmatpush1.xpose.msra.mxu0 0.0
    %2224 = vmatprep.subr.mxu0 0.0
    %2225 = vmatpush1.xpose.msra.mxu0 0.0
    %2226 = vmatprep.subr.mxu0 0.0
    %2227 = vmatpush1.xpose.msra.mxu0 0.0
    %2228 = vmatprep.subr.mxu0 0.0
    %2229 = vmatpush1.xpose.msra.mxu0 0.0
    %2230 = vmatprep.subr.mxu0 0.0
    %2231 = vmatpush1.xpose.msra.mxu0 0.0
    %2232 = vmatprep.subr.mxu0 0.0
    %2233 = vmatpush1.xpose.msra.mxu0 0.0
    %2234 = vmatprep.subr.mxu0 0.0
    %2235 = vmatpush1.xpose.msra.mxu0 0.0
    %2236 = vmatprep.subr.mxu0 0.0
    %2237 = vmatpush1.xpose.msra.mxu0 0.0
    %2238 = vmatprep.subr.mxu0 0.0
    %2239 = vmatpush1.xpose.msra.mxu0 0.0
    %2240 = vmatprep.subr.mxu0 0.0
    %2241 = vmatpush1.xpose.msra.mxu0 0.0
    %2242 = vmatprep.subr.mxu0 0.0
    %2243 = vmatpush1.xpose.msra.mxu0 0.0
    %2244 = vmatprep.subr.mxu0 0.0
    %2245 = vmatpush1.xpose.msra.mxu0 0.0
    %2246 = vmatprep.subr.mxu0 0.0
    %2247 = vmatpush1.xpose.msra.mxu0 0.0
    %2248 = vmatprep.subr.mxu0 0.0
    %2249 = vmatpush1.xpose.msra.mxu0 0.0
    %2250 = vmatprep.subr.mxu0 0.0
    %2251 = vmatpush1.xpose.msra.mxu0 0.0
    %2252 = vmatprep.subr.mxu0 0.0
    %2253 = vmatpush1.xpose.msra.mxu0 0.0
    %2254 = vmatprep.subr.mxu0 0.0
    %2255 = vmatpush1.xpose.msra.mxu0 0.0
    %2256 = vmatprep.subr.mxu0 0.0
    %2257 = vmatpush1.xpose.msra.mxu0 0.0
    %2258 = vmatprep.subr.mxu0 0.0
    %2259 = vmatpush1.xpose.msra.mxu0 0.0
    %2260 = vmatprep.subr.mxu0 0.0
    %2261 = vmatpush1.xpose.msra.mxu0 0.0
    %2262 = vmatprep.subr.mxu0 0.0
    %2263 = vmatpush1.xpose.msra.mxu0 0.0
    %2264 = vmatprep.subr.mxu0 0.0
    %2265 = vmatpush1.xpose.msra.mxu0 0.0
    %2266 = vmatprep.subr.mxu0 0.0
    %2267 = vmatpush1.xpose.msra.mxu0 0.0
    %2268 = vmatprep.subr.mxu0 0.0
    %2269 = vmatpush1.xpose.msra.mxu0 0.0
    %2270 = vmatprep.subr.mxu0 0.0
    %2271 = vmatpush1.xpose.msra.mxu0 0.0
    %2272 = vmatprep.subr.mxu0 0.0
    %2273 = vmatpush1.xpose.msra.mxu0 0.0
    %2274 = vmatprep.subr.mxu0 0.0
    %2275 = vmatpush1.xpose.msra.mxu0 0.0
    %2276 = vmatprep.mubr.f32.mxu0 0.0
    %2277 = vmatmul.mubr.f32.gmra.mrb[0].mxu0 %v2208
    %v2278 = vpop.f32.mrb[0].mxu0
    %v2279 = vadd.f32 0.0, %v2278
    %v2280 = vpop.f32.mrb[0].mxu0
    %2281 = vdwg.mxu0
    %2282 = vrot.lane.b32.xlu0 %v2041, 104
    %v2283 = vpop.permute.xlu0 %2282
    %2284 = vrot.lane.b32.xlu0 %v2041, 72
    %v2285 = vpop.permute.xlu0 %2284
    %v2286 = vsel %vm158, %v2283, 0
    %v2288 = vsel %vm158, %v2285, 0
    %2290 = vmatprep.subr.mxu0 0.0
    %2291 = vmatpush1.xpose.msra.mxu0 %v2288
    %2292 = vmatprep.subr.mxu0 0.0
    %2293 = vmatpush1.xpose.msra.mxu0 0.0
    %2294 = vmatprep.subr.mxu0 0.0
    %2295 = vmatpush1.xpose.msra.mxu0 0.0
    %2296 = vmatprep.subr.mxu0 0.0
    %2297 = vmatpush1.xpose.msra.mxu0 0.0
    %2298 = vmatprep.subr.mxu0 0.0
    %2299 = vmatpush1.xpose.msra.mxu0 0.0
    %2300 = vmatprep.subr.mxu0 0.0
    %2301 = vmatpush1.xpose.msra.mxu0 0.0
    %2302 = vmatprep.subr.mxu0 0.0
    %2303 = vmatpush1.xpose.msra.mxu0 0.0
    %2304 = vmatprep.subr.mxu0 0.0
    %2305 = vmatpush1.xpose.msra.mxu0 0.0
    %2306 = vmatprep.subr.mxu0 0.0
    %2307 = vmatpush1.xpose.msra.mxu0 0.0
    %2308 = vmatprep.subr.mxu0 0.0
    %2309 = vmatpush1.xpose.msra.mxu0 0.0
    %2310 = vmatprep.subr.mxu0 0.0
    %2311 = vmatpush1.xpose.msra.mxu0 0.0
    %2312 = vmatprep.subr.mxu0 0.0
    %2313 = vmatpush1.xpose.msra.mxu0 0.0
    %2314 = vmatprep.subr.mxu0 0.0
    %2315 = vmatpush1.xpose.msra.mxu0 0.0
    %2316 = vmatprep.subr.mxu0 0.0
    %2317 = vmatpush1.xpose.msra.mxu0 0.0
    %2318 = vmatprep.subr.mxu0 0.0
    %2319 = vmatpush1.xpose.msra.mxu0 0.0
    %2320 = vmatprep.subr.mxu0 0.0
    %2321 = vmatpush1.xpose.msra.mxu0 0.0
    %2322 = vmatprep.subr.mxu0 0.0
    %2323 = vmatpush1.xpose.msra.mxu0 0.0
    %2324 = vmatprep.subr.mxu0 0.0
    %2325 = vmatpush1.xpose.msra.mxu0 0.0
    %2326 = vmatprep.subr.mxu0 0.0
    %2327 = vmatpush1.xpose.msra.mxu0 0.0
    %2328 = vmatprep.subr.mxu0 0.0
    %2329 = vmatpush1.xpose.msra.mxu0 0.0
    %2330 = vmatprep.subr.mxu0 0.0
    %2331 = vmatpush1.xpose.msra.mxu0 0.0
    %2332 = vmatprep.subr.mxu0 0.0
    %2333 = vmatpush1.xpose.msra.mxu0 0.0
    %2334 = vmatprep.subr.mxu0 0.0
    %2335 = vmatpush1.xpose.msra.mxu0 0.0
    %2336 = vmatprep.subr.mxu0 0.0
    %2337 = vmatpush1.xpose.msra.mxu0 0.0
    %2338 = vmatprep.subr.mxu0 0.0
    %2339 = vmatpush1.xpose.msra.mxu0 0.0
    %2340 = vmatprep.subr.mxu0 0.0
    %2341 = vmatpush1.xpose.msra.mxu0 0.0
    %2342 = vmatprep.subr.mxu0 0.0
    %2343 = vmatpush1.xpose.msra.mxu0 0.0
    %2344 = vmatprep.subr.mxu0 0.0
    %2345 = vmatpush1.xpose.msra.mxu0 0.0
    %2346 = vmatprep.subr.mxu0 0.0
    %2347 = vmatpush1.xpose.msra.mxu0 0.0
    %2348 = vmatprep.subr.mxu0 0.0
    %2349 = vmatpush1.xpose.msra.mxu0 0.0
    %2350 = vmatprep.subr.mxu0 0.0
    %2351 = vmatpush1.xpose.msra.mxu0 0.0
    %2352 = vmatprep.subr.mxu0 0.0
    %2353 = vmatpush1.xpose.msra.mxu0 0.0
    %2354 = vmatprep.mubr.f32.mxu0 0.0
    %2355 = vmatmul.mubr.f32.gmra.mrb[0].mxu0 %v2286
    %v2356 = vpop.f32.mrb[0].mxu0
    %v2357 = vadd.f32 0.0, %v2356
    %v2358 = vpop.f32.mrb[0].mxu0
    %2359 = vdwg.mxu0
    %2361 = vrot.lane.b32.xlu0 %v2046, 96
    %v2362 = vpop.permute.xlu0 %2361
    %v2363 = vsel %vm158, %v2046, 0
    %v2365 = vsel %vm158, %v2362, 0
    %2367 = vmatprep.subr.mxu0 0.0
    %2368 = vmatpush1.xpose.msra.mxu0 %v2365
    %2369 = vmatprep.subr.mxu0 0.0
    %2370 = vmatpush1.xpose.msra.mxu0 0.0
    %2371 = vmatprep.subr.mxu0 0.0
    %2372 = vmatpush1.xpose.msra.mxu0 0.0
    %2373 = vmatprep.subr.mxu0 0.0
    %2374 = vmatpush1.xpose.msra.mxu0 0.0
    %2375 = vmatprep.subr.mxu0 0.0
    %2376 = vmatpush1.xpose.msra.mxu0 0.0
    %2377 = vmatprep.subr.mxu0 0.0
    %2378 = vmatpush1.xpose.msra.mxu0 0.0
    %2379 = vmatprep.subr.mxu0 0.0
    %2380 = vmatpush1.xpose.msra.mxu0 0.0
    %2381 = vmatprep.subr.mxu0 0.0
    %2382 = vmatpush1.xpose.msra.mxu0 0.0
    %2383 = vmatprep.subr.mxu0 0.0
    %2384 = vmatpush1.xpose.msra.mxu0 0.0
    %2385 = vmatprep.subr.mxu0 0.0
    %2386 = vmatpush1.xpose.msra.mxu0 0.0
    %2387 = vmatprep.subr.mxu0 0.0
    %2388 = vmatpush1.xpose.msra.mxu0 0.0
    %2389 = vmatprep.subr.mxu0 0.0
    %2390 = vmatpush1.xpose.msra.mxu0 0.0
    %2391 = vmatprep.subr.mxu0 0.0
    %2392 = vmatpush1.xpose.msra.mxu0 0.0
    %2393 = vmatprep.subr.mxu0 0.0
    %2394 = vmatpush1.xpose.msra.mxu0 0.0
    %2395 = vmatprep.subr.mxu0 0.0
    %2396 = vmatpush1.xpose.msra.mxu0 0.0
    %2397 = vmatprep.subr.mxu0 0.0
    %2398 = vmatpush1.xpose.msra.mxu0 0.0
    %2399 = vmatprep.subr.mxu0 0.0
    %2400 = vmatpush1.xpose.msra.mxu0 0.0
    %2401 = vmatprep.subr.mxu0 0.0
    %2402 = vmatpush1.xpose.msra.mxu0 0.0
    %2403 = vmatprep.subr.mxu0 0.0
    %2404 = vmatpush1.xpose.msra.mxu0 0.0
    %2405 = vmatprep.subr.mxu0 0.0
    %2406 = vmatpush1.xpose.msra.mxu0 0.0
    %2407 = vmatprep.subr.mxu0 0.0
    %2408 = vmatpush1.xpose.msra.mxu0 0.0
    %2409 = vmatprep.subr.mxu0 0.0
    %2410 = vmatpush1.xpose.msra.mxu0 0.0
    %2411 = vmatprep.subr.mxu0 0.0
    %2412 = vmatpush1.xpose.msra.mxu0 0.0
    %2413 = vmatprep.subr.mxu0 0.0
    %2414 = vmatpush1.xpose.msra.mxu0 0.0
    %2415 = vmatprep.subr.mxu0 0.0
    %2416 = vmatpush1.xpose.msra.mxu0 0.0
    %2417 = vmatprep.subr.mxu0 0.0
    %2418 = vmatpush1.xpose.msra.mxu0 0.0
    %2419 = vmatprep.subr.mxu0 0.0
    %2420 = vmatpush1.xpose.msra.mxu0 0.0
    %2421 = vmatprep.subr.mxu0 0.0
    %2422 = vmatpush1.xpose.msra.mxu0 0.0
    %2423 = vmatprep.subr.mxu0 0.0
    %2424 = vmatpush1.xpose.msra.mxu0 0.0
    %2425 = vmatprep.subr.mxu0 0.0
    %2426 = vmatpush1.xpose.msra.mxu0 0.0
    %2427 = vmatprep.subr.mxu0 0.0
    %2428 = vmatpush1.xpose.msra.mxu0 0.0
    %2429 = vmatprep.subr.mxu0 0.0
    %2430 = vmatpush1.xpose.msra.mxu0 0.0
    %2431 = vmatprep.mubr.f32.mxu0 0.0
    %2432 = vmatmul.mubr.f32.gmra.mrb[0].mxu0 %v2363
    %v2433 = vpop.f32.mrb[0].mxu0
    %v2434 = vadd.f32 0.0, %v2433
    %v2435 = vpop.f32.mrb[0].mxu0
    %2436 = vdwg.mxu0
    %2437 = vrot.lane.b32.xlu0 %v2046, 120
    %v2438 = vpop.permute.xlu0 %2437
    %2439 = vrot.lane.b32.xlu0 %v2046, 88
    %v2440 = vpop.permute.xlu0 %2439
    %v2441 = vsel %vm158, %v2438, 0
    %v2443 = vsel %vm158, %v2440, 0
    %2445 = vmatprep.subr.mxu0 0.0
    %2446 = vmatpush1.xpose.msra.mxu0 %v2443
    %2447 = vmatprep.subr.mxu0 0.0
    %2448 = vmatpush1.xpose.msra.mxu0 0.0
    %2449 = vmatprep.subr.mxu0 0.0
    %2450 = vmatpush1.xpose.msra.mxu0 0.0
    %2451 = vmatprep.subr.mxu0 0.0
    %2452 = vmatpush1.xpose.msra.mxu0 0.0
    %2453 = vmatprep.subr.mxu0 0.0
    %2454 = vmatpush1.xpose.msra.mxu0 0.0
    %2455 = vmatprep.subr.mxu0 0.0
    %2456 = vmatpush1.xpose.msra.mxu0 0.0
    %2457 = vmatprep.subr.mxu0 0.0
    %2458 = vmatpush1.xpose.msra.mxu0 0.0
    %2459 = vmatprep.subr.mxu0 0.0
    %2460 = vmatpush1.xpose.msra.mxu0 0.0
    %2461 = vmatprep.subr.mxu0 0.0
    %2462 = vmatpush1.xpose.msra.mxu0 0.0
    %2463 = vmatprep.subr.mxu0 0.0
    %2464 = vmatpush1.xpose.msra.mxu0 0.0
    %2465 = vmatprep.subr.mxu0 0.0
    %2466 = vmatpush1.xpose.msra.mxu0 0.0
    %2467 = vmatprep.subr.mxu0 0.0
    %2468 = vmatpush1.xpose.msra.mxu0 0.0
    %2469 = vmatprep.subr.mxu0 0.0
    %2470 = vmatpush1.xpose.msra.mxu0 0.0
    %2471 = vmatprep.subr.mxu0 0.0
    %2472 = vmatpush1.xpose.msra.mxu0 0.0
    %2473 = vmatprep.subr.mxu0 0.0
    %2474 = vmatpush1.xpose.msra.mxu0 0.0
    %2475 = vmatprep.subr.mxu0 0.0
    %2476 = vmatpush1.xpose.msra.mxu0 0.0
    %2477 = vmatprep.subr.mxu0 0.0
    %2478 = vmatpush1.xpose.msra.mxu0 0.0
    %2479 = vmatprep.subr.mxu0 0.0
    %2480 = vmatpush1.xpose.msra.mxu0 0.0
    %2481 = vmatprep.subr.mxu0 0.0
    %2482 = vmatpush1.xpose.msra.mxu0 0.0
    %2483 = vmatprep.subr.mxu0 0.0
    %2484 = vmatpush1.xpose.msra.mxu0 0.0
    %2485 = vmatprep.subr.mxu0 0.0
    %2486 = vmatpush1.xpose.msra.mxu0 0.0
    %2487 = vmatprep.subr.mxu0 0.0
    %2488 = vmatpush1.xpose.msra.mxu0 0.0
    %2489 = vmatprep.subr.mxu0 0.0
    %2490 = vmatpush1.xpose.msra.mxu0 0.0
    %2491 = vmatprep.subr.mxu0 0.0
    %2492 = vmatpush1.xpose.msra.mxu0 0.0
    %2493 = vmatprep.subr.mxu0 0.0
    %2494 = vmatpush1.xpose.msra.mxu0 0.0
    %2495 = vmatprep.subr.mxu0 0.0
    %2496 = vmatpush1.xpose.msra.mxu0 0.0
    %2497 = vmatprep.subr.mxu0 0.0
    %2498 = vmatpush1.xpose.msra.mxu0 0.0
    %2499 = vmatprep.subr.mxu0 0.0
    %2500 = vmatpush1.xpose.msra.mxu0 0.0
    %2501 = vmatprep.subr.mxu0 0.0
    %2502 = vmatpush1.xpose.msra.mxu0 0.0
    %2503 = vmatprep.subr.mxu0 0.0
    %2504 = vmatpush1.xpose.msra.mxu0 0.0
    %2505 = vmatprep.subr.mxu0 0.0
    %2506 = vmatpush1.xpose.msra.mxu0 0.0
    %2507 = vmatprep.subr.mxu0 0.0
    %2508 = vmatpush1.xpose.msra.mxu0 0.0
    %2509 = vmatprep.mubr.f32.mxu0 0.0
    %2510 = vmatmul.mubr.f32.gmra.mrb[0].mxu0 %v2441
    %v2511 = vpop.f32.mrb[0].mxu0
    %v2512 = vadd.f32 0.0, %v2511
    %v2513 = vpop.f32.mrb[0].mxu0
    %2514 = vdwg.mxu0
    %2515 = vrot.lane.b32.xlu0 %v2046, 112
    %v2516 = vpop.permute.xlu0 %2515
    %2517 = vrot.lane.b32.xlu0 %v2046, 80
    %v2518 = vpop.permute.xlu0 %2517
    %v2519 = vsel %vm158, %v2516, 0
    %v2521 = vsel %vm158, %v2518, 0
    %2523 = vmatprep.subr.mxu0 0.0
    %2524 = vmatpush1.xpose.msra.mxu0 %v2521
    %2525 = vmatprep.subr.mxu0 0.0
    %2526 = vmatpush1.xpose.msra.mxu0 0.0
    %2527 = vmatprep.subr.mxu0 0.0
    %2528 = vmatpush1.xpose.msra.mxu0 0.0
    %2529 = vmatprep.subr.mxu0 0.0
    %2530 = vmatpush1.xpose.msra.mxu0 0.0
    %2531 = vmatprep.subr.mxu0 0.0
    %2532 = vmatpush1.xpose.msra.mxu0 0.0
    %2533 = vmatprep.subr.mxu0 0.0
    %2534 = vmatpush1.xpose.msra.mxu0 0.0
    %2535 = vmatprep.subr.mxu0 0.0
    %2536 = vmatpush1.xpose.msra.mxu0 0.0
    %2537 = vmatprep.subr.mxu0 0.0
    %2538 = vmatpush1.xpose.msra.mxu0 0.0
    %2539 = vmatprep.subr.mxu0 0.0
    %2540 = vmatpush1.xpose.msra.mxu0 0.0
    %2541 = vmatprep.subr.mxu0 0.0
    %2542 = vmatpush1.xpose.msra.mxu0 0.0
    %2543 = vmatprep.subr.mxu0 0.0
    %2544 = vmatpush1.xpose.msra.mxu0 0.0
    %2545 = vmatprep.subr.mxu0 0.0
    %2546 = vmatpush1.xpose.msra.mxu0 0.0
    %2547 = vmatprep.subr.mxu0 0.0
    %2548 = vmatpush1.xpose.msra.mxu0 0.0
    %2549 = vmatprep.subr.mxu0 0.0
    %2550 = vmatpush1.xpose.msra.mxu0 0.0
    %2551 = vmatprep.subr.mxu0 0.0
    %2552 = vmatpush1.xpose.msra.mxu0 0.0
    %2553 = vmatprep.subr.mxu0 0.0
    %2554 = vmatpush1.xpose.msra.mxu0 0.0
    %2555 = vmatprep.subr.mxu0 0.0
    %2556 = vmatpush1.xpose.msra.mxu0 0.0
    %2557 = vmatprep.subr.mxu0 0.0
    %2558 = vmatpush1.xpose.msra.mxu0 0.0
    %2559 = vmatprep.subr.mxu0 0.0
    %2560 = vmatpush1.xpose.msra.mxu0 0.0
    %2561 = vmatprep.subr.mxu0 0.0
    %2562 = vmatpush1.xpose.msra.mxu0 0.0
    %2563 = vmatprep.subr.mxu0 0.0
    %2564 = vmatpush1.xpose.msra.mxu0 0.0
    %2565 = vmatprep.subr.mxu0 0.0
    %2566 = vmatpush1.xpose.msra.mxu0 0.0
    %2567 = vmatprep.subr.mxu0 0.0
    %2568 = vmatpush1.xpose.msra.mxu0 0.0
    %2569 = vmatprep.subr.mxu0 0.0
    %2570 = vmatpush1.xpose.msra.mxu0 0.0
    %2571 = vmatprep.subr.mxu0 0.0
    %2572 = vmatpush1.xpose.msra.mxu0 0.0
    %2573 = vmatprep.subr.mxu0 0.0
    %2574 = vmatpush1.xpose.msra.mxu0 0.0
    %2575 = vmatprep.subr.mxu0 0.0
    %2576 = vmatpush1.xpose.msra.mxu0 0.0
    %2577 = vmatprep.subr.mxu0 0.0
    %2578 = vmatpush1.xpose.msra.mxu0 0.0
    %2579 = vmatprep.subr.mxu0 0.0
    %2580 = vmatpush1.xpose.msra.mxu0 0.0
    %2581 = vmatprep.subr.mxu0 0.0
    %2582 = vmatpush1.xpose.msra.mxu0 0.0
    %2583 = vmatprep.subr.mxu0 0.0
    %2584 = vmatpush1.xpose.msra.mxu0 0.0
    %2585 = vmatprep.subr.mxu0 0.0
    %2586 = vmatpush1.xpose.msra.mxu0 0.0
    %2587 = vmatprep.mubr.f32.mxu0 0.0
    %2588 = vmatmul.mubr.f32.gmra.mrb[0].mxu0 %v2519
    %v2589 = vpop.f32.mrb[0].mxu0
    %v2590 = vadd.f32 0.0, %v2589
    %v2591 = vpop.f32.mrb[0].mxu0
    %2592 = vdwg.mxu0
    %2593 = vrot.lane.b32.xlu0 %v2046, 104
    %v2594 = vpop.permute.xlu0 %2593
    %2595 = vrot.lane.b32.xlu0 %v2046, 72
    %v2596 = vpop.permute.xlu0 %2595
    %v2597 = vsel %vm158, %v2594, 0
    %v2599 = vsel %vm158, %v2596, 0
    %2601 = vmatprep.subr.mxu0 0.0
    %2602 = vmatpush1.xpose.msra.mxu0 %v2599
    %2603 = vmatprep.subr.mxu0 0.0
    %2604 = vmatpush1.xpose.msra.mxu0 0.0
    %2605 = vmatprep.subr.mxu0 0.0
    %2606 = vmatpush1.xpose.msra.mxu0 0.0
    %2607 = vmatprep.subr.mxu0 0.0
    %2608 = vmatpush1.xpose.msra.mxu0 0.0
    %2609 = vmatprep.subr.mxu0 0.0
    %2610 = vmatpush1.xpose.msra.mxu0 0.0
    %2611 = vmatprep.subr.mxu0 0.0
    %2612 = vmatpush1.xpose.msra.mxu0 0.0
    %2613 = vmatprep.subr.mxu0 0.0
    %2614 = vmatpush1.xpose.msra.mxu0 0.0
    %2615 = vmatprep.subr.mxu0 0.0
    %2616 = vmatpush1.xpose.msra.mxu0 0.0
    %2617 = vmatprep.subr.mxu0 0.0
    %2618 = vmatpush1.xpose.msra.mxu0 0.0
    %2619 = vmatprep.subr.mxu0 0.0
    %2620 = vmatpush1.xpose.msra.mxu0 0.0
    %2621 = vmatprep.subr.mxu0 0.0
    %2622 = vmatpush1.xpose.msra.mxu0 0.0
    %2623 = vmatprep.subr.mxu0 0.0
    %2624 = vmatpush1.xpose.msra.mxu0 0.0
    %2625 = vmatprep.subr.mxu0 0.0
    %2626 = vmatpush1.xpose.msra.mxu0 0.0
    %2627 = vmatprep.subr.mxu0 0.0
    %2628 = vmatpush1.xpose.msra.mxu0 0.0
    %2629 = vmatprep.subr.mxu0 0.0
    %2630 = vmatpush1.xpose.msra.mxu0 0.0
    %2631 = vmatprep.subr.mxu0 0.0
    %2632 = vmatpush1.xpose.msra.mxu0 0.0
    %2633 = vmatprep.subr.mxu0 0.0
    %2634 = vmatpush1.xpose.msra.mxu0 0.0
    %2635 = vmatprep.subr.mxu0 0.0
    %2636 = vmatpush1.xpose.msra.mxu0 0.0
    %2637 = vmatprep.subr.mxu0 0.0
    %2638 = vmatpush1.xpose.msra.mxu0 0.0
    %2639 = vmatprep.subr.mxu0 0.0
    %2640 = vmatpush1.xpose.msra.mxu0 0.0
    %2641 = vmatprep.subr.mxu0 0.0
    %2642 = vmatpush1.xpose.msra.mxu0 0.0
    %2643 = vmatprep.subr.mxu0 0.0
    %2644 = vmatpush1.xpose.msra.mxu0 0.0
    %2645 = vmatprep.subr.mxu0 0.0
    %2646 = vmatpush1.xpose.msra.mxu0 0.0
    %2647 = vmatprep.subr.mxu0 0.0
    %2648 = vmatpush1.xpose.msra.mxu0 0.0
    %2649 = vmatprep.subr.mxu0 0.0
    %2650 = vmatpush1.xpose.msra.mxu0 0.0
    %2651 = vmatprep.subr.mxu0 0.0
    %2652 = vmatpush1.xpose.msra.mxu0 0.0
    %2653 = vmatprep.subr.mxu0 0.0
    %2654 = vmatpush1.xpose.msra.mxu0 0.0
    %2655 = vmatprep.subr.mxu0 0.0
    %2656 = vmatpush1.xpose.msra.mxu0 0.0
    %2657 = vmatprep.subr.mxu0 0.0
    %2658 = vmatpush1.xpose.msra.mxu0 0.0
    %2659 = vmatprep.subr.mxu0 0.0
    %2660 = vmatpush1.xpose.msra.mxu0 0.0
    %2661 = vmatprep.subr.mxu0 0.0
    %2662 = vmatpush1.xpose.msra.mxu0 0.0
    %2663 = vmatprep.subr.mxu0 0.0
    %2664 = vmatpush1.xpose.msra.mxu0 0.0
    %2665 = vmatprep.mubr.f32.mxu0 0.0
    %2666 = vmatmul.mubr.f32.gmra.mrb[0].mxu0 %v2597
    %v2667 = vpop.f32.mrb[0].mxu0
    %v2668 = vadd.f32 0.0, %v2667
    %v2669 = vpop.f32.mrb[0].mxu0
    %2670 = vdwg.mxu0
    %v2671 = vsel %vm158, %v2123, -inf
    %2672 = vmax.xlane.f32.xlu0 %v2671
    %v2673 = vpop.xlane.xlu0 %2672
    %v2674 = vsel %vm158, %v2201, -inf
    %2675 = vmax.xlane.f32.xlu0 %v2674
    %v2676 = vpop.xlane.xlu0 %2675
    %v2677 = vsel %vm158, %v2279, -inf
    %2678 = vmax.xlane.f32.xlu0 %v2677
    %v2679 = vpop.xlane.xlu0 %2678
    %v2680 = vsel %vm158, %v2357, -inf
    %2681 = vmax.xlane.f32.xlu0 %v2680
    %v2682 = vpop.xlane.xlu0 %2681
    %v2683 = vsel %vm158, %v2434, -inf
    %2684 = vmax.xlane.f32.xlu0 %v2683
    %v2685 = vpop.xlane.xlu0 %2684
    %v2686 = vsel %vm158, %v2512, -inf
    %2687 = vmax.xlane.f32.xlu0 %v2686
    %v2688 = vpop.xlane.xlu0 %2687
    %v2689 = vsel %vm158, %v2590, -inf
    %2690 = vmax.xlane.f32.xlu0 %v2689
    %v2691 = vpop.xlane.xlu0 %2690
    %v2692 = vsel %vm158, %v2668, -inf
    %2693 = vmax.xlane.f32.xlu0 %v2692
    %v2694 = vpop.xlane.xlu0 %2693
    %v2695 = vsub.f32 %v2123, %v2673
    %v2696 = vsub.f32 %v2201, %v2676
    %v2697 = vsub.f32 %v2279, %v2679
    %v2698 = vsub.f32 %v2357, %v2682
    %v2699 = vsub.f32 %v2434, %v2685
    %v2700 = vsub.f32 %v2512, %v2688
    %v2701 = vsub.f32 %v2590, %v2691
    %v2702 = vsub.f32 %v2668, %v2694
    %v2703 = vmul.f32 %v2695, 1.442695
    %v2704 = vpow.pop %v2703
    %v2705 = vmul.f32 %v2696, 1.442695
    %v2706 = vpow.pop %v2705
    %v2707 = vmul.f32 %v2697, 1.442695
    %v2708 = vpow.pop %v2707
    %v2709 = vmul.f32 %v2698, 1.442695
    %v2710 = vpow.pop %v2709
    %v2711 = vmul.f32 %v2699, 1.442695
    %v2712 = vpow.pop %v2711
    %v2713 = vmul.f32 %v2700, 1.442695
    %v2714 = vpow.pop %v2713
    %v2715 = vmul.f32 %v2701, 1.442695
    %v2716 = vpow.pop %v2715
    %v2717 = vmul.f32 %v2702, 1.442695
    %v2718 = vpow.pop %v2717
    %v2719 = vsel %vm158, %v2704, 0.0
    %2720 = vadd.xlane.f32.xlu0 %v2719
    %v2721 = vpop.xlane.xlu0 %2720
    %v2722 = vsel %vm158, %v2706, 0.0
    %2723 = vadd.xlane.f32.xlu0 %v2722
    %v2724 = vpop.xlane.xlu0 %2723
    %v2725 = vsel %vm158, %v2708, 0.0
    %2726 = vadd.xlane.f32.xlu0 %v2725
    %v2727 = vpop.xlane.xlu0 %2726
    %v2728 = vsel %vm158, %v2710, 0.0
    %2729 = vadd.xlane.f32.xlu0 %v2728
    %v2730 = vpop.xlane.xlu0 %2729
    %v2731 = vsel %vm158, %v2712, 0.0
    %2732 = vadd.xlane.f32.xlu0 %v2731
    %v2733 = vpop.xlane.xlu0 %2732
    %v2734 = vsel %vm158, %v2714, 0.0
    %2735 = vadd.xlane.f32.xlu0 %v2734
    %v2736 = vpop.xlane.xlu0 %2735
    %v2737 = vsel %vm158, %v2716, 0.0
    %2738 = vadd.xlane.f32.xlu0 %v2737
    %v2739 = vpop.xlane.xlu0 %2738
    %v2740 = vsel %vm158, %v2718, 0.0
    %2741 = vadd.xlane.f32.xlu0 %v2740
    %v2742 = vpop.xlane.xlu0 %2741
    %v2743 = vrcp.pop %v2721
    %v2744 = vrcp.pop %v2724
    %v2745 = vrcp.pop %v2727
    %v2746 = vrcp.pop %v2730
    %v2747 = vrcp.pop %v2733
    %v2748 = vrcp.pop %v2736
    %v2749 = vrcp.pop %v2739
    %v2750 = vrcp.pop %v2742
    %v2751 = vmul.f32 %v2721, %v2743
    %v2752 = vmul.f32 %v2724, %v2744
    %v2753 = vmul.f32 %v2727, %v2745
    %v2754 = vmul.f32 %v2730, %v2746
    %v2755 = vmul.f32 %v2733, %v2747
    %v2756 = vmul.f32 %v2736, %v2748
    %v2757 = vmul.f32 %v2739, %v2749
    %v2758 = vmul.f32 %v2742, %v2750
    %v2759 = vsub.f32 2.0, %v2751
    %v2760 = vsub.f32 2.0, %v2752
    %v2761 = vsub.f32 2.0, %v2753
    %v2762 = vsub.f32 2.0, %v2754
    %v2763 = vsub.f32 2.0, %v2755
    %v2764 = vsub.f32 2.0, %v2756
    %v2765 = vsub.f32 2.0, %v2757
    %v2766 = vsub.f32 2.0, %v2758
    %v2767 = vmul.f32 %v2743, %v2759
    %v2768 = vmul.f32 %v2744, %v2760
    %v2769 = vmul.f32 %v2745, %v2761
    %v2770 = vmul.f32 %v2746, %v2762
    %v2771 = vmul.f32 %v2747, %v2763
    %v2772 = vmul.f32 %v2748, %v2764
    %v2773 = vmul.f32 %v2749, %v2765
    %v2774 = vmul.f32 %v2750, %v2766
    %v2775 = vmul.f32 %v2704, %v2767
    %v2776 = vmul.f32 %v2706, %v2768
    %v2777 = vmul.f32 %v2708, %v2769
    %v2778 = vmul.f32 %v2710, %v2770
    %v2779 = vmul.f32 %v2712, %v2771
    %v2780 = vmul.f32 %v2714, %v2772
    %v2781 = vmul.f32 %v2716, %v2773
    %v2782 = vmul.f32 %v2718, %v2774
    %2783 = vrot.lane.b32.xlu0 %v2041, 64
    %v2784 = vpop.permute.xlu0 %2783
    %v2787 = vsel %vm158, %v2775, 0
    %2789 = vmatprep.subr.mxu0 0.0
    %2790 = vmatpush1.msra.mxu0 %v2784
    %2791 = vmatprep.subr.mxu0 0.0
    %2792 = vmatpush1.msra.mxu0 0.0
    %2793 = vmatprep.subr.mxu0 0.0
    %2794 = vmatpush1.msra.mxu0 0.0
    %2795 = vmatprep.subr.mxu0 0.0
    %2796 = vmatpush1.msra.mxu0 0.0
    %2797 = vmatprep.subr.mxu0 0.0
    %2798 = vmatpush1.msra.mxu0 0.0
    %2799 = vmatprep.subr.mxu0 0.0
    %2800 = vmatpush1.msra.mxu0 0.0
    %2801 = vmatprep.subr.mxu0 0.0
    %2802 = vmatpush1.msra.mxu0 0.0
    %2803 = vmatprep.subr.mxu0 0.0
    %2804 = vmatpush1.msra.mxu0 0.0
    %2805 = vmatprep.subr.mxu0 0.0
    %2806 = vmatpush1.msra.mxu0 0.0
    %2807 = vmatprep.subr.mxu0 0.0
    %2808 = vmatpush1.msra.mxu0 0.0
    %2809 = vmatprep.subr.mxu0 0.0
    %2810 = vmatpush1.msra.mxu0 0.0
    %2811 = vmatprep.subr.mxu0 0.0
    %2812 = vmatpush1.msra.mxu0 0.0
    %2813 = vmatprep.subr.mxu0 0.0
    %2814 = vmatpush1.msra.mxu0 0.0
    %2815 = vmatprep.subr.mxu0 0.0
    %2816 = vmatpush1.msra.mxu0 0.0
    %2817 = vmatprep.subr.mxu0 0.0
    %2818 = vmatpush1.msra.mxu0 0.0
    %2819 = vmatprep.subr.mxu0 0.0
    %2820 = vmatpush1.msra.mxu0 0.0
    %2821 = vmatprep.subr.mxu0 0.0
    %2822 = vmatpush1.msra.mxu0 0.0
    %2823 = vmatprep.subr.mxu0 0.0
    %2824 = vmatpush1.msra.mxu0 0.0
    %2825 = vmatprep.subr.mxu0 0.0
    %2826 = vmatpush1.msra.mxu0 0.0
    %2827 = vmatprep.subr.mxu0 0.0
    %2828 = vmatpush1.msra.mxu0 0.0
    %2829 = vmatprep.subr.mxu0 0.0
    %2830 = vmatpush1.msra.mxu0 0.0
    %2831 = vmatprep.subr.mxu0 0.0
    %2832 = vmatpush1.msra.mxu0 0.0
    %2833 = vmatprep.subr.mxu0 0.0
    %2834 = vmatpush1.msra.mxu0 0.0
    %2835 = vmatprep.subr.mxu0 0.0
    %2836 = vmatpush1.msra.mxu0 0.0
    %2837 = vmatprep.subr.mxu0 0.0
    %2838 = vmatpush1.msra.mxu0 0.0
    %2839 = vmatprep.subr.mxu0 0.0
    %2840 = vmatpush1.msra.mxu0 0.0
    %2841 = vmatprep.subr.mxu0 0.0
    %2842 = vmatpush1.msra.mxu0 0.0
    %2843 = vmatprep.subr.mxu0 0.0
    %2844 = vmatpush1.msra.mxu0 0.0
    %2845 = vmatprep.subr.mxu0 0.0
    %2846 = vmatpush1.msra.mxu0 0.0
    %2847 = vmatprep.subr.mxu0 0.0
    %2848 = vmatpush1.msra.mxu0 0.0
    %2849 = vmatprep.subr.mxu0 0.0
    %2850 = vmatpush1.msra.mxu0 0.0
    %2851 = vmatprep.subr.mxu0 0.0
    %2852 = vmatpush1.msra.mxu0 0.0
    %2853 = vmatprep.mubr.f32.mxu0 0.0
    %2854 = vmatmul.mubr.f32.gmra.mrb[0].mxu0 %v2787
    %v2855 = vpop.f32.mrb[0].mxu0
    %v2856 = vadd.f32 0.0, %v2855
    %v2857 = vpop.f32.mrb[0].mxu0
    %2858 = vdwg.mxu0
    %2859 = vrot.lane.b32.xlu0 %v2041, 56
    %v2860 = vpop.permute.xlu0 %2859
    %v2863 = vsel %vm158, %v2776, 0
    %2865 = vmatprep.subr.mxu0 0.0
    %2866 = vmatpush1.msra.mxu0 %v2860
    %2867 = vmatprep.subr.mxu0 0.0
    %2868 = vmatpush1.msra.mxu0 0.0
    %2869 = vmatprep.subr.mxu0 0.0
    %2870 = vmatpush1.msra.mxu0 0.0
    %2871 = vmatprep.subr.mxu0 0.0
    %2872 = vmatpush1.msra.mxu0 0.0
    %2873 = vmatprep.subr.mxu0 0.0
    %2874 = vmatpush1.msra.mxu0 0.0
    %2875 = vmatprep.subr.mxu0 0.0
    %2876 = vmatpush1.msra.mxu0 0.0
    %2877 = vmatprep.subr.mxu0 0.0
    %2878 = vmatpush1.msra.mxu0 0.0
    %2879 = vmatprep.subr.mxu0 0.0
    %2880 = vmatpush1.msra.mxu0 0.0
    %2881 = vmatprep.subr.mxu0 0.0
    %2882 = vmatpush1.msra.mxu0 0.0
    %2883 = vmatprep.subr.mxu0 0.0
    %2884 = vmatpush1.msra.mxu0 0.0
    %2885 = vmatprep.subr.mxu0 0.0
    %2886 = vmatpush1.msra.mxu0 0.0
    %2887 = vmatprep.subr.mxu0 0.0
    %2888 = vmatpush1.msra.mxu0 0.0
    %2889 = vmatprep.subr.mxu0 0.0
    %2890 = vmatpush1.msra.mxu0 0.0
    %2891 = vmatprep.subr.mxu0 0.0
    %2892 = vmatpush1.msra.mxu0 0.0
    %2893 = vmatprep.subr.mxu0 0.0
    %2894 = vmatpush1.msra.mxu0 0.0
    %2895 = vmatprep.subr.mxu0 0.0
    %2896 = vmatpush1.msra.mxu0 0.0
    %2897 = vmatprep.subr.mxu0 0.0
    %2898 = vmatpush1.msra.mxu0 0.0
    %2899 = vmatprep.subr.mxu0 0.0
    %2900 = vmatpush1.msra.mxu0 0.0
    %2901 = vmatprep.subr.mxu0 0.0
    %2902 = vmatpush1.msra.mxu0 0.0
    %2903 = vmatprep.subr.mxu0 0.0
    %2904 = vmatpush1.msra.mxu0 0.0
    %2905 = vmatprep.subr.mxu0 0.0
    %2906 = vmatpush1.msra.mxu0 0.0
    %2907 = vmatprep.subr.mxu0 0.0
    %2908 = vmatpush1.msra.mxu0 0.0
    %2909 = vmatprep.subr.mxu0 0.0
    %2910 = vmatpush1.msra.mxu0 0.0
    %2911 = vmatprep.subr.mxu0 0.0
    %2912 = vmatpush1.msra.mxu0 0.0
    %2913 = vmatprep.subr.mxu0 0.0
    %2914 = vmatpush1.msra.mxu0 0.0
    %2915 = vmatprep.subr.mxu0 0.0
    %2916 = vmatpush1.msra.mxu0 0.0
    %2917 = vmatprep.subr.mxu0 0.0
    %2918 = vmatpush1.msra.mxu0 0.0
    %2919 = vmatprep.subr.mxu0 0.0
    %2920 = vmatpush1.msra.mxu0 0.0
    %2921 = vmatprep.subr.mxu0 0.0
    %2922 = vmatpush1.msra.mxu0 0.0
    %2923 = vmatprep.subr.mxu0 0.0
    %2924 = vmatpush1.msra.mxu0 0.0
    %2925 = vmatprep.subr.mxu0 0.0
    %2926 = vmatpush1.msra.mxu0 0.0
    %2927 = vmatprep.subr.mxu0 0.0
    %2928 = vmatpush1.msra.mxu0 0.0
    %2929 = vmatprep.mubr.f32.mxu0 0.0
    %2930 = vmatmul.mubr.f32.gmra.mrb[0].mxu0 %v2863
    %v2931 = vpop.f32.mrb[0].mxu0
    %v2932 = vadd.f32 0.0, %v2931
    %v2933 = vpop.f32.mrb[0].mxu0
    %2934 = vdwg.mxu0
    %2935 = vrot.lane.b32.xlu0 %v2041, 48
    %v2936 = vpop.permute.xlu0 %2935
    %v2939 = vsel %vm158, %v2777, 0
    %2941 = vmatprep.subr.mxu0 0.0
    %2942 = vmatpush1.msra.mxu0 %v2936
    %2943 = vmatprep.subr.mxu0 0.0
    %2944 = vmatpush1.msra.mxu0 0.0
    %2945 = vmatprep.subr.mxu0 0.0
    %2946 = vmatpush1.msra.mxu0 0.0
    %2947 = vmatprep.subr.mxu0 0.0
    %2948 = vmatpush1.msra.mxu0 0.0
    %2949 = vmatprep.subr.mxu0 0.0
    %2950 = vmatpush1.msra.mxu0 0.0
    %2951 = vmatprep.subr.mxu0 0.0
    %2952 = vmatpush1.msra.mxu0 0.0
    %2953 = vmatprep.subr.mxu0 0.0
    %2954 = vmatpush1.msra.mxu0 0.0
    %2955 = vmatprep.subr.mxu0 0.0
    %2956 = vmatpush1.msra.mxu0 0.0
    %2957 = vmatprep.subr.mxu0 0.0
    %2958 = vmatpush1.msra.mxu0 0.0
    %2959 = vmatprep.subr.mxu0 0.0
    %2960 = vmatpush1.msra.mxu0 0.0
    %2961 = vmatprep.subr.mxu0 0.0
    %2962 = vmatpush1.msra.mxu0 0.0
    %2963 = vmatprep.subr.mxu0 0.0
    %2964 = vmatpush1.msra.mxu0 0.0
    %2965 = vmatprep.subr.mxu0 0.0
    %2966 = vmatpush1.msra.mxu0 0.0
    %2967 = vmatprep.subr.mxu0 0.0
    %2968 = vmatpush1.msra.mxu0 0.0
    %2969 = vmatprep.subr.mxu0 0.0
    %2970 = vmatpush1.msra.mxu0 0.0
    %2971 = vmatprep.subr.mxu0 0.0
    %2972 = vmatpush1.msra.mxu0 0.0
    %2973 = vmatprep.subr.mxu0 0.0
    %2974 = vmatpush1.msra.mxu0 0.0
    %2975 = vmatprep.subr.mxu0 0.0
    %2976 = vmatpush1.msra.mxu0 0.0
    %2977 = vmatprep.subr.mxu0 0.0
    %2978 = vmatpush1.msra.mxu0 0.0
    %2979 = vmatprep.subr.mxu0 0.0
    %2980 = vmatpush1.msra.mxu0 0.0
    %2981 = vmatprep.subr.mxu0 0.0
    %2982 = vmatpush1.msra.mxu0 0.0
    %2983 = vmatprep.subr.mxu0 0.0
    %2984 = vmatpush1.msra.mxu0 0.0
    %2985 = vmatprep.subr.mxu0 0.0
    %2986 = vmatpush1.msra.mxu0 0.0
    %2987 = vmatprep.subr.mxu0 0.0
    %2988 = vmatpush1.msra.mxu0 0.0
    %2989 = vmatprep.subr.mxu0 0.0
    %2990 = vmatpush1.msra.mxu0 0.0
    %2991 = vmatprep.subr.mxu0 0.0
    %2992 = vmatpush1.msra.mxu0 0.0
    %2993 = vmatprep.subr.mxu0 0.0
    %2994 = vmatpush1.msra.mxu0 0.0
    %2995 = vmatprep.subr.mxu0 0.0
    %2996 = vmatpush1.msra.mxu0 0.0
    %2997 = vmatprep.subr.mxu0 0.0
    %2998 = vmatpush1.msra.mxu0 0.0
    %2999 = vmatprep.subr.mxu0 0.0
    %3000 = vmatpush1.msra.mxu0 0.0
    %3001 = vmatprep.subr.mxu0 0.0
    %3002 = vmatpush1.msra.mxu0 0.0
    %3003 = vmatprep.subr.mxu0 0.0
    %3004 = vmatpush1.msra.mxu0 0.0
    %3005 = vmatprep.mubr.f32.mxu0 0.0
    %3006 = vmatmul.mubr.f32.gmra.mrb[0].mxu0 %v2939
    %v3007 = vpop.f32.mrb[0].mxu0
    %v3008 = vadd.f32 0.0, %v3007
    %v3009 = vpop.f32.mrb[0].mxu0
    %3010 = vdwg.mxu0
    %3011 = vrot.lane.b32.xlu0 %v2041, 40
    %v3012 = vpop.permute.xlu0 %3011
    %v3015 = vsel %vm158, %v2778, 0
    %3017 = vmatprep.subr.mxu0 0.0
    %3018 = vmatpush1.msra.mxu0 %v3012
    %3019 = vmatprep.subr.mxu0 0.0
    %3020 = vmatpush1.msra.mxu0 0.0
    %3021 = vmatprep.subr.mxu0 0.0
    %3022 = vmatpush1.msra.mxu0 0.0
    %3023 = vmatprep.subr.mxu0 0.0
    %3024 = vmatpush1.msra.mxu0 0.0
    %3025 = vmatprep.subr.mxu0 0.0
    %3026 = vmatpush1.msra.mxu0 0.0
    %3027 = vmatprep.subr.mxu0 0.0
    %3028 = vmatpush1.msra.mxu0 0.0
    %3029 = vmatprep.subr.mxu0 0.0
    %3030 = vmatpush1.msra.mxu0 0.0
    %3031 = vmatprep.subr.mxu0 0.0
    %3032 = vmatpush1.msra.mxu0 0.0
    %3033 = vmatprep.subr.mxu0 0.0
    %3034 = vmatpush1.msra.mxu0 0.0
    %3035 = vmatprep.subr.mxu0 0.0
    %3036 = vmatpush1.msra.mxu0 0.0
    %3037 = vmatprep.subr.mxu0 0.0
    %3038 = vmatpush1.msra.mxu0 0.0
    %3039 = vmatprep.subr.mxu0 0.0
    %3040 = vmatpush1.msra.mxu0 0.0
    %3041 = vmatprep.subr.mxu0 0.0
    %3042 = vmatpush1.msra.mxu0 0.0
    %3043 = vmatprep.subr.mxu0 0.0
    %3044 = vmatpush1.msra.mxu0 0.0
    %3045 = vmatprep.subr.mxu0 0.0
    %3046 = vmatpush1.msra.mxu0 0.0
    %3047 = vmatprep.subr.mxu0 0.0
    %3048 = vmatpush1.msra.mxu0 0.0
    %3049 = vmatprep.subr.mxu0 0.0
    %3050 = vmatpush1.msra.mxu0 0.0
    %3051 = vmatprep.subr.mxu0 0.0
    %3052 = vmatpush1.msra.mxu0 0.0
    %3053 = vmatprep.subr.mxu0 0.0
    %3054 = vmatpush1.msra.mxu0 0.0
    %3055 = vmatprep.subr.mxu0 0.0
    %3056 = vmatpush1.msra.mxu0 0.0
    %3057 = vmatprep.subr.mxu0 0.0
    %3058 = vmatpush1.msra.mxu0 0.0
    %3059 = vmatprep.subr.mxu0 0.0
    %3060 = vmatpush1.msra.mxu0 0.0
    %3061 = vmatprep.subr.mxu0 0.0
    %3062 = vmatpush1.msra.mxu0 0.0
    %3063 = vmatprep.subr.mxu0 0.0
    %3064 = vmatpush1.msra.mxu0 0.0
    %3065 = vmatprep.subr.mxu0 0.0
    %3066 = vmatpush1.msra.mxu0 0.0
    %3067 = vmatprep.subr.mxu0 0.0
    %3068 = vmatpush1.msra.mxu0 0.0
    %3069 = vmatprep.subr.mxu0 0.0
    %3070 = vmatpush1.msra.mxu0 0.0
    %3071 = vmatprep.subr.mxu0 0.0
    %3072 = vmatpush1.msra.mxu0 0.0
    %3073 = vmatprep.subr.mxu0 0.0
    %3074 = vmatpush1.msra.mxu0 0.0
    %3075 = vmatprep.subr.mxu0 0.0
    %3076 = vmatpush1.msra.mxu0 0.0
    %3077 = vmatprep.subr.mxu0 0.0
    %3078 = vmatpush1.msra.mxu0 0.0
    %3079 = vmatprep.subr.mxu0 0.0
    %3080 = vmatpush1.msra.mxu0 0.0
    %3081 = vmatprep.mubr.f32.mxu0 0.0
    %3082 = vmatmul.mubr.f32.gmra.mrb[0].mxu0 %v3015
    %v3083 = vpop.f32.mrb[0].mxu0
    %v3084 = vadd.f32 0.0, %v3083
    %v3085 = vpop.f32.mrb[0].mxu0
    %3086 = vdwg.mxu0
    %3088 = vrot.lane.b32.xlu0 %v2932, 8
    %v3089 = vpop.permute.xlu0 %3088
    %3092 = vrot.lane.b32.xlu0 %v3008, 16
    %v3093 = vpop.permute.xlu0 %3092
    %3096 = vrot.lane.b32.xlu0 %v3084, 24
    %v3097 = vpop.permute.xlu0 %3096
    %v3099 = vsel %vm158, %v2856, %v3089
    %v3100 = vsel %vm1207, %v3099, %v3093
    %v3101 = vsel %vm1209, %v3100, %v3097
    %3102 = vrot.lane.b32.xlu0 %v2046, 64
    %v3103 = vpop.permute.xlu0 %3102
    %v3106 = vsel %vm158, %v2779, 0
    %3108 = vmatprep.subr.mxu0 0.0
    %3109 = vmatpush1.msra.mxu0 %v3103
    %3110 = vmatprep.subr.mxu0 0.0
    %3111 = vmatpush1.msra.mxu0 0.0
    %3112 = vmatprep.subr.mxu0 0.0
    %3113 = vmatpush1.msra.mxu0 0.0
    %3114 = vmatprep.subr.mxu0 0.0
    %3115 = vmatpush1.msra.mxu0 0.0
    %3116 = vmatprep.subr.mxu0 0.0
    %3117 = vmatpush1.msra.mxu0 0.0
    %3118 = vmatprep.subr.mxu0 0.0
    %3119 = vmatpush1.msra.mxu0 0.0
    %3120 = vmatprep.subr.mxu0 0.0
    %3121 = vmatpush1.msra.mxu0 0.0
    %3122 = vmatprep.subr.mxu0 0.0
    %3123 = vmatpush1.msra.mxu0 0.0
    %3124 = vmatprep.subr.mxu0 0.0
    %3125 = vmatpush1.msra.mxu0 0.0
    %3126 = vmatprep.subr.mxu0 0.0
    %3127 = vmatpush1.msra.mxu0 0.0
    %3128 = vmatprep.subr.mxu0 0.0
    %3129 = vmatpush1.msra.mxu0 0.0
    %3130 = vmatprep.subr.mxu0 0.0
    %3131 = vmatpush1.msra.mxu0 0.0
    %3132 = vmatprep.subr.mxu0 0.0
    %3133 = vmatpush1.msra.mxu0 0.0
    %3134 = vmatprep.subr.mxu0 0.0
    %3135 = vmatpush1.msra.mxu0 0.0
    %3136 = vmatprep.subr.mxu0 0.0
    %3137 = vmatpush1.msra.mxu0 0.0
    %3138 = vmatprep.subr.mxu0 0.0
    %3139 = vmatpush1.msra.mxu0 0.0
    %3140 = vmatprep.subr.mxu0 0.0
    %3141 = vmatpush1.msra.mxu0 0.0
    %3142 = vmatprep.subr.mxu0 0.0
    %3143 = vmatpush1.msra.mxu0 0.0
    %3144 = vmatprep.subr.mxu0 0.0
    %3145 = vmatpush1.msra.mxu0 0.0
    %3146 = vmatprep.subr.mxu0 0.0
    %3147 = vmatpush1.msra.mxu0 0.0
    %3148 = vmatprep.subr.mxu0 0.0
    %3149 = vmatpush1.msra.mxu0 0.0
    %3150 = vmatprep.subr.mxu0 0.0
    %3151 = vmatpush1.msra.mxu0 0.0
    %3152 = vmatprep.subr.mxu0 0.0
    %3153 = vmatpush1.msra.mxu0 0.0
    %3154 = vmatprep.subr.mxu0 0.0
    %3155 = vmatpush1.msra.mxu0 0.0
    %3156 = vmatprep.subr.mxu0 0.0
    %3157 = vmatpush1.msra.mxu0 0.0
    %3158 = vmatprep.subr.mxu0 0.0
    %3159 = vmatpush1.msra.mxu0 0.0
    %3160 = vmatprep.subr.mxu0 0.0
    %3161 = vmatpush1.msra.mxu0 0.0
    %3162 = vmatprep.subr.mxu0 0.0
    %3163 = vmatpush1.msra.mxu0 0.0
    %3164 = vmatprep.subr.mxu0 0.0
    %3165 = vmatpush1.msra.mxu0 0.0
    %3166 = vmatprep.subr.mxu0 0.0
    %3167 = vmatpush1.msra.mxu0 0.0
    %3168 = vmatprep.subr.mxu0 0.0
    %3169 = vmatpush1.msra.mxu0 0.0
    %3170 = vmatprep.subr.mxu0 0.0
    %3171 = vmatpush1.msra.mxu0 0.0
    %3172 = vmatprep.mubr.f32.mxu0 0.0
    %3173 = vmatmul.mubr.f32.gmra.mrb[0].mxu0 %v3106
    %v3174 = vpop.f32.mrb[0].mxu0
    %v3175 = vadd.f32 0.0, %v3174
    %v3176 = vpop.f32.mrb[0].mxu0
    %3177 = vdwg.mxu0
    %3178 = vrot.lane.b32.xlu0 %v2046, 56
    %v3179 = vpop.permute.xlu0 %3178
    %v3182 = vsel %vm158, %v2780, 0
    %3184 = vmatprep.subr.mxu0 0.0
    %3185 = vmatpush1.msra.mxu0 %v3179
    %3186 = vmatprep.subr.mxu0 0.0
    %3187 = vmatpush1.msra.mxu0 0.0
    %3188 = vmatprep.subr.mxu0 0.0
    %3189 = vmatpush1.msra.mxu0 0.0
    %3190 = vmatprep.subr.mxu0 0.0
    %3191 = vmatpush1.msra.mxu0 0.0
    %3192 = vmatprep.subr.mxu0 0.0
    %3193 = vmatpush1.msra.mxu0 0.0
    %3194 = vmatprep.subr.mxu0 0.0
    %3195 = vmatpush1.msra.mxu0 0.0
    %3196 = vmatprep.subr.mxu0 0.0
    %3197 = vmatpush1.msra.mxu0 0.0
    %3198 = vmatprep.subr.mxu0 0.0
    %3199 = vmatpush1.msra.mxu0 0.0
    %3200 = vmatprep.subr.mxu0 0.0
    %3201 = vmatpush1.msra.mxu0 0.0
    %3202 = vmatprep.subr.mxu0 0.0
    %3203 = vmatpush1.msra.mxu0 0.0
    %3204 = vmatprep.subr.mxu0 0.0
    %3205 = vmatpush1.msra.mxu0 0.0
    %3206 = vmatprep.subr.mxu0 0.0
    %3207 = vmatpush1.msra.mxu0 0.0
    %3208 = vmatprep.subr.mxu0 0.0
    %3209 = vmatpush1.msra.mxu0 0.0
    %3210 = vmatprep.subr.mxu0 0.0
    %3211 = vmatpush1.msra.mxu0 0.0
    %3212 = vmatprep.subr.mxu0 0.0
    %3213 = vmatpush1.msra.mxu0 0.0
    %3214 = vmatprep.subr.mxu0 0.0
    %3215 = vmatpush1.msra.mxu0 0.0
    %3216 = vmatprep.subr.mxu0 0.0
    %3217 = vmatpush1.msra.mxu0 0.0
    %3218 = vmatprep.subr.mxu0 0.0
    %3219 = vmatpush1.msra.mxu0 0.0
    %3220 = vmatprep.subr.mxu0 0.0
    %3221 = vmatpush1.msra.mxu0 0.0
    %3222 = vmatprep.subr.mxu0 0.0
    %3223 = vmatpush1.msra.mxu0 0.0
    %3224 = vmatprep.subr.mxu0 0.0
    %3225 = vmatpush1.msra.mxu0 0.0
    %3226 = vmatprep.subr.mxu0 0.0
    %3227 = vmatpush1.msra.mxu0 0.0
    %3228 = vmatprep.subr.mxu0 0.0
    %3229 = vmatpush1.msra.mxu0 0.0
    %3230 = vmatprep.subr.mxu0 0.0
    %3231 = vmatpush1.msra.mxu0 0.0
    %3232 = vmatprep.subr.mxu0 0.0
    %3233 = vmatpush1.msra.mxu0 0.0
    %3234 = vmatprep.subr.mxu0 0.0
    %3235 = vmatpush1.msra.mxu0 0.0
    %3236 = vmatprep.subr.mxu0 0.0
    %3237 = vmatpush1.msra.mxu0 0.0
    %3238 = vmatprep.subr.mxu0 0.0
    %3239 = vmatpush1.msra.mxu0 0.0
    %3240 = vmatprep.subr.mxu0 0.0
    %3241 = vmatpush1.msra.mxu0 0.0
    %3242 = vmatprep.subr.mxu0 0.0
    %3243 = vmatpush1.msra.mxu0 0.0
    %3244 = vmatprep.subr.mxu0 0.0
    %3245 = vmatpush1.msra.mxu0 0.0
    %3246 = vmatprep.subr.mxu0 0.0
    %3247 = vmatpush1.msra.mxu0 0.0
    %3248 = vmatprep.mubr.f32.mxu0 0.0
    %3249 = vmatmul.mubr.f32.gmra.mrb[0].mxu0 %v3182
    %v3250 = vpop.f32.mrb[0].mxu0
    %v3251 = vadd.f32 0.0, %v3250
    %v3252 = vpop.f32.mrb[0].mxu0
    %3253 = vdwg.mxu0
    %3254 = vrot.lane.b32.xlu0 %v2046, 48
    %v3255 = vpop.permute.xlu0 %3254
    %v3258 = vsel %vm158, %v2781, 0
    %3260 = vmatprep.subr.mxu0 0.0
    %3261 = vmatpush1.msra.mxu0 %v3255
    %3262 = vmatprep.subr.mxu0 0.0
    %3263 = vmatpush1.msra.mxu0 0.0
    %3264 = vmatprep.subr.mxu0 0.0
    %3265 = vmatpush1.msra.mxu0 0.0
    %3266 = vmatprep.subr.mxu0 0.0
    %3267 = vmatpush1.msra.mxu0 0.0
    %3268 = vmatprep.subr.mxu0 0.0
    %3269 = vmatpush1.msra.mxu0 0.0
    %3270 = vmatprep.subr.mxu0 0.0
    %3271 = vmatpush1.msra.mxu0 0.0
    %3272 = vmatprep.subr.mxu0 0.0
    %3273 = vmatpush1.msra.mxu0 0.0
    %3274 = vmatprep.subr.mxu0 0.0
    %3275 = vmatpush1.msra.mxu0 0.0
    %3276 = vmatprep.subr.mxu0 0.0
    %3277 = vmatpush1.msra.mxu0 0.0
    %3278 = vmatprep.subr.mxu0 0.0
    %3279 = vmatpush1.msra.mxu0 0.0
    %3280 = vmatprep.subr.mxu0 0.0
    %3281 = vmatpush1.msra.mxu0 0.0
    %3282 = vmatprep.subr.mxu0 0.0
    %3283 = vmatpush1.msra.mxu0 0.0
    %3284 = vmatprep.subr.mxu0 0.0
    %3285 = vmatpush1.msra.mxu0 0.0
    %3286 = vmatprep.subr.mxu0 0.0
    %3287 = vmatpush1.msra.mxu0 0.0
    %3288 = vmatprep.subr.mxu0 0.0
    %3289 = vmatpush1.msra.mxu0 0.0
    %3290 = vmatprep.subr.mxu0 0.0
    %3291 = vmatpush1.msra.mxu0 0.0
    %3292 = vmatprep.subr.mxu0 0.0
    %3293 = vmatpush1.msra.mxu0 0.0
    %3294 = vmatprep.subr.mxu0 0.0
    %3295 = vmatpush1.msra.mxu0 0.0
    %3296 = vmatprep.subr.mxu0 0.0
    %3297 = vmatpush1.msra.mxu0 0.0
    %3298 = vmatprep.subr.mxu0 0.0
    %3299 = vmatpush1.msra.mxu0 0.0
    %3300 = vmatprep.subr.mxu0 0.0
    %3301 = vmatpush1.msra.mxu0 0.0
    %3302 = vmatprep.subr.mxu0 0.0
    %3303 = vmatpush1.msra.mxu0 0.0
    %3304 = vmatprep.subr.mxu0 0.0
    %3305 = vmatpush1.msra.mxu0 0.0
    %3306 = vmatprep.subr.mxu0 0.0
    %3307 = vmatpush1.msra.mxu0 0.0
    %3308 = vmatprep.subr.mxu0 0.0
    %3309 = vmatpush1.msra.mxu0 0.0
    %3310 = vmatprep.subr.mxu0 0.0
    %3311 = vmatpush1.msra.mxu0 0.0
    %3312 = vmatprep.subr.mxu0 0.0
    %3313 = vmatpush1.msra.mxu0 0.0
    %3314 = vmatprep.subr.mxu0 0.0
    %3315 = vmatpush1.msra.mxu0 0.0
    %3316 = vmatprep.subr.mxu0 0.0
    %3317 = vmatpush1.msra.mxu0 0.0
    %3318 = vmatprep.subr.mxu0 0.0
    %3319 = vmatpush1.msra.mxu0 0.0
    %3320 = vmatprep.subr.mxu0 0.0
    %3321 = vmatpush1.msra.mxu0 0.0
    %3322 = vmatprep.subr.mxu0 0.0
    %3323 = vmatpush1.msra.mxu0 0.0
    %3324 = vmatprep.mubr.f32.mxu0 0.0
    %3325 = vmatmul.mubr.f32.gmra.mrb[0].mxu0 %v3258
    %v3326 = vpop.f32.mrb[0].mxu0
    %v3327 = vadd.f32 0.0, %v3326
    %v3328 = vpop.f32.mrb[0].mxu0
    %3329 = vdwg.mxu0
    %3330 = vrot.lane.b32.xlu0 %v2046, 40
    %v3331 = vpop.permute.xlu0 %3330
    %v3334 = vsel %vm158, %v2782, 0
    %3336 = vmatprep.subr.mxu0 0.0
    %3337 = vmatpush1.msra.mxu0 %v3331
    %3338 = vmatprep.subr.mxu0 0.0
    %3339 = vmatpush1.msra.mxu0 0.0
    %3340 = vmatprep.subr.mxu0 0.0
    %3341 = vmatpush1.msra.mxu0 0.0
    %3342 = vmatprep.subr.mxu0 0.0
    %3343 = vmatpush1.msra.mxu0 0.0
    %3344 = vmatprep.subr.mxu0 0.0
    %3345 = vmatpush1.msra.mxu0 0.0
    %3346 = vmatprep.subr.mxu0 0.0
    %3347 = vmatpush1.msra.mxu0 0.0
    %3348 = vmatprep.subr.mxu0 0.0
    %3349 = vmatpush1.msra.mxu0 0.0
    %3350 = vmatprep.subr.mxu0 0.0
    %3351 = vmatpush1.msra.mxu0 0.0
    %3352 = vmatprep.subr.mxu0 0.0
    %3353 = vmatpush1.msra.mxu0 0.0
    %3354 = vmatprep.subr.mxu0 0.0
    %3355 = vmatpush1.msra.mxu0 0.0
    %3356 = vmatprep.subr.mxu0 0.0
    %3357 = vmatpush1.msra.mxu0 0.0
    %3358 = vmatprep.subr.mxu0 0.0
    %3359 = vmatpush1.msra.mxu0 0.0
    %3360 = vmatprep.subr.mxu0 0.0
    %3361 = vmatpush1.msra.mxu0 0.0
    %3362 = vmatprep.subr.mxu0 0.0
    %3363 = vmatpush1.msra.mxu0 0.0
    %3364 = vmatprep.subr.mxu0 0.0
    %3365 = vmatpush1.msra.mxu0 0.0
    %3366 = vmatprep.subr.mxu0 0.0
    %3367 = vmatpush1.msra.mxu0 0.0
    %3368 = vmatprep.subr.mxu0 0.0
    %3369 = vmatpush1.msra.mxu0 0.0
    %3370 = vmatprep.subr.mxu0 0.0
    %3371 = vmatpush1.msra.mxu0 0.0
    %3372 = vmatprep.subr.mxu0 0.0
    %3373 = vmatpush1.msra.mxu0 0.0
    %3374 = vmatprep.subr.mxu0 0.0
    %3375 = vmatpush1.msra.mxu0 0.0
    %3376 = vmatprep.subr.mxu0 0.0
    %3377 = vmatpush1.msra.mxu0 0.0
    %3378 = vmatprep.subr.mxu0 0.0
    %3379 = vmatpush1.msra.mxu0 0.0
    %3380 = vmatprep.subr.mxu0 0.0
    %3381 = vmatpush1.msra.mxu0 0.0
    %3382 = vmatprep.subr.mxu0 0.0
    %3383 = vmatpush1.msra.mxu0 0.0
    %3384 = vmatprep.subr.mxu0 0.0
    %3385 = vmatpush1.msra.mxu0 0.0
    %3386 = vmatprep.subr.mxu0 0.0
    %3387 = vmatpush1.msra.mxu0 0.0
    %3388 = vmatprep.subr.mxu0 0.0
    %3389 = vmatpush1.msra.mxu0 0.0
    %3390 = vmatprep.subr.mxu0 0.0
    %3391 = vmatpush1.msra.mxu0 0.0
    %3392 = vmatprep.subr.mxu0 0.0
    %3393 = vmatpush1.msra.mxu0 0.0
    %3394 = vmatprep.subr.mxu0 0.0
    %3395 = vmatpush1.msra.mxu0 0.0
    %3396 = vmatprep.subr.mxu0 0.0
    %3397 = vmatpush1.msra.mxu0 0.0
    %3398 = vmatprep.subr.mxu0 0.0
    %3399 = vmatpush1.msra.mxu0 0.0
    %3400 = vmatprep.mubr.f32.mxu0 0.0
    %3401 = vmatmul.mubr.f32.gmra.mrb[0].mxu0 %v3334
    %v3402 = vpop.f32.mrb[0].mxu0
    %v3403 = vadd.f32 0.0, %v3402
    %v3404 = vpop.f32.mrb[0].mxu0
    %3405 = vdwg.mxu0
    %3407 = vrot.lane.b32.xlu0 %v3251, 8
    %v3408 = vpop.permute.xlu0 %3407
    %3411 = vrot.lane.b32.xlu0 %v3327, 16
    %v3412 = vpop.permute.xlu0 %3411
    %3415 = vrot.lane.b32.xlu0 %v3403, 24
    %v3416 = vpop.permute.xlu0 %3415
    %v3418 = vsel %vm158, %v3175, %v3408
    %v3419 = vsel %vm1207, %v3418, %v3412
    %v3420 = vsel %vm1209, %v3419, %v3416
    %s3421 = scalar_lea.vmem %s2, 32
    %v3422 = vld [vmem:[%s3421] sm:$0xff]
    %v3423 = vld [vmem:[%s3421 + $0x8] sm:$0xff]
    %v3424 = vld [vmem:[%s3421 + $0x10] sm:$0xff]
    %v3425 = vld [vmem:[%s3421 + $0x18] sm:$0xff]
    %v3427 = vsel %vm30, %v3101, 0
    %v3430 = vsel %vm30, %v3420, 0
    %3432 = vmatprep.subr.mxu0 0.0
    %3433 = vmatpush1.msra.mxu0 %v3422
    %3434 = vmatprep.subr.mxu0 0.0
    %3435 = vmatpush1.msra.mxu0 %v3423
    %3436 = vmatprep.subr.mxu0 0.0
    %3437 = vmatpush1.msra.mxu0 %v3424
    %3438 = vmatprep.subr.mxu0 0.0
    %3439 = vmatpush1.msra.mxu0 %v3425
    %3440 = vmatprep.subr.mxu0 0.0
    %3441 = vmatpush1.msra.mxu0 0.0
    %3442 = vmatprep.subr.mxu0 0.0
    %3443 = vmatpush1.msra.mxu0 0.0
    %3444 = vmatprep.subr.mxu0 0.0
    %3445 = vmatpush1.msra.mxu0 0.0
    %3446 = vmatprep.subr.mxu0 0.0
    %3447 = vmatpush1.msra.mxu0 0.0
    %3448 = vmatprep.subr.mxu0 0.0
    %3449 = vmatpush1.msra.mxu0 0.0
    %3450 = vmatprep.subr.mxu0 0.0
    %3451 = vmatpush1.msra.mxu0 0.0
    %3452 = vmatprep.subr.mxu0 0.0
    %3453 = vmatpush1.msra.mxu0 0.0
    %3454 = vmatprep.subr.mxu0 0.0
    %3455 = vmatpush1.msra.mxu0 0.0
    %3456 = vmatprep.subr.mxu0 0.0
    %3457 = vmatpush1.msra.mxu0 0.0
    %3458 = vmatprep.subr.mxu0 0.0
    %3459 = vmatpush1.msra.mxu0 0.0
    %3460 = vmatprep.subr.mxu0 0.0
    %3461 = vmatpush1.msra.mxu0 0.0
    %3462 = vmatprep.subr.mxu0 0.0
    %3463 = vmatpush1.msra.mxu0 0.0
    %3464 = vmatprep.subr.mxu0 0.0
    %3465 = vmatpush1.msra.mxu0 0.0
    %3466 = vmatprep.subr.mxu0 0.0
    %3467 = vmatpush1.msra.mxu0 0.0
    %3468 = vmatprep.subr.mxu0 0.0
    %3469 = vmatpush1.msra.mxu0 0.0
    %3470 = vmatprep.subr.mxu0 0.0
    %3471 = vmatpush1.msra.mxu0 0.0
    %3472 = vmatprep.subr.mxu0 0.0
    %3473 = vmatpush1.msra.mxu0 0.0
    %3474 = vmatprep.subr.mxu0 0.0
    %3475 = vmatpush1.msra.mxu0 0.0
    %3476 = vmatprep.subr.mxu0 0.0
    %3477 = vmatpush1.msra.mxu0 0.0
    %3478 = vmatprep.subr.mxu0 0.0
    %3479 = vmatpush1.msra.mxu0 0.0
    %3480 = vmatprep.subr.mxu0 0.0
    %3481 = vmatpush1.msra.mxu0 0.0
    %3482 = vmatprep.subr.mxu0 0.0
    %3483 = vmatpush1.msra.mxu0 0.0
    %3484 = vmatprep.subr.mxu0 0.0
    %3485 = vmatpush1.msra.mxu0 0.0
    %3486 = vmatprep.subr.mxu0 0.0
    %3487 = vmatpush1.msra.mxu0 0.0
    %3488 = vmatprep.subr.mxu0 0.0
    %3489 = vmatpush1.msra.mxu0 0.0
    %3490 = vmatprep.subr.mxu0 0.0
    %3491 = vmatpush1.msra.mxu0 0.0
    %3492 = vmatprep.subr.mxu0 0.0
    %3493 = vmatpush1.msra.mxu0 0.0
    %3494 = vmatprep.subr.mxu0 0.0
    %3495 = vmatpush1.msra.mxu0 0.0
    %3496 = vmatprep.mubr.f32.mxu0 0.0
    %3497 = vmatmul.mubr.f32.gmra.mrb[0].mxu0 %v3427
    %v3498 = vpop.f32.mrb[0].mxu0
    %v3499 = vadd.f32 0.0, %v3498
    %v3500 = vpop.f32.mrb[0].mxu0
    %3501 = vmatprep.mubr.f32.mxu0 0.0
    %3502 = vmatmul.mubr.f32.gmra.mrb[0].mxu0 %v3430
    %v3503 = vpop.f32.mrb[0].mxu0
    %v3504 = vadd.f32 0.0, %v3503
    %v3505 = vpop.f32.mrb[0].mxu0
    %3506 = vdwg.mxu0
    %v3507 = vadd.f32 %v1921, %v3499
    %v3508 = vadd.f32 %v1922, %v3504
    %v3509 = vlaneseq
    %v3510 = vshrl.u32 %v3509, 7
    %v3511 = vsub.s32 2, %v3510
    %v3512 = vrot.slane %v1924, %v3511
    %v3513 = vadd.f32 %v3507, %v3512
    %v3514 = vadd.f32 %v3508, %v3512
    %v3515 = vsel %vm30, %v3513, 0.0
    %3516 = vadd.xlane.f32.xlu0 %v3515
    %v3517 = vpop.xlane.xlu0 %3516
    %v3518 = vsel %vm30, %v3514, 0.0
    %3519 = vadd.xlane.f32.xlu0 %v3518
    %v3520 = vpop.xlane.xlu0 %3519
    %v3521 = vmul.f32 %v3517, %v37
    %v3522 = vmul.f32 %v3520, %v37
    %v3523 = vsub.f32 %v3513, %v3521
    %v3524 = vsub.f32 %v3514, %v3522
    %v3525 = vmul.f32 %v3523, %v3523
    %v3526 = vmul.f32 %v3524, %v3524
    %v3527 = vsel %vm30, %v3525, 0.0
    %3528 = vadd.xlane.f32.xlu0 %v3527
    %v3529 = vpop.xlane.xlu0 %3528
    %v3530 = vsel %vm30, %v3526, 0.0
    %3531 = vadd.xlane.f32.xlu0 %v3530
    %v3532 = vpop.xlane.xlu0 %3531
    %v3533 = vmul.f32 %v3529, %v37
    %v3534 = vmul.f32 %v3532, %v37
    %v3535 = vadd.f32 %v3533, 1e-05
    %v3536 = vadd.f32 %v3534, 1e-05
    %v3537 = vrsqrt.pop %v3535
    %v3538 = vrsqrt.pop %v3536
    %v3539 = vmul.f32 %v3523, %v3537
    %v3540 = vmul.f32 %v3524, %v3538
    %v3541 = vlaneseq
    %v3542 = vshrl.u32 %v3541, 7
    %v3543 = vsub.s32 3, %v3542
    %v3544 = vrot.slane %v1924, %v3543
    %v3545 = vmul.f32 %v3539, %v3544
    %v3546 = vmul.f32 %v3540, %v3544
    %v3547 = vlaneseq
    %v3548 = vshrl.u32 %v3547, 7
    %v3549 = vsub.s32 4, %v3548
    %v3550 = vrot.slane %v1924, %v3549
    %v3551 = vadd.f32 %v3545, %v3550
    %v3552 = vadd.f32 %v3546, %v3550
    %s3553 = scalar_lea.vmem %s3, 64
    %v3554 = vld [vmem:[%s3553] sm:$0xff]
    %v3555 = vld [vmem:[%s3553 + $0x8] sm:$0xff]
    %v3556 = vld [vmem:[%s3553 + $0x10] sm:$0xff]
    %v3557 = vld [vmem:[%s3553 + $0x18] sm:$0xff]
    %v3558 = vld [vmem:[%s3553 + $0x20] sm:$0xff]
    %v3559 = vld [vmem:[%s3553 + $0x28] sm:$0xff]
    %v3560 = vld [vmem:[%s3553 + $0x30] sm:$0xff]
    %v3561 = vld [vmem:[%s3553 + $0x38] sm:$0xff]
    %s3562 = scalar_lea.vmem %s4, 2
    %v3563 = vld [vmem:[%s3562] sm:$0x3]
    %v3565 = vlaneseq
    %v3566 = vshrl.u32 %v3565, 7
    %v3567 = vsub.s32 0, %v3566
    %v3568 = vrot.slane %v3563, %v3567
    %v3569 = vlaneseq
    %v3570 = vshrl.u32 %v3569, 7
    %v3571 = vsub.s32 1, %v3570
    %v3572 = vrot.slane %v3563, %v3571
    %v3576 = vsel %vm30, %v3551, 0
    %v3579 = vsel %vm30, %v3552, 0
    %3581 = vmatprep.subr.mxu0 %v3555
    %3582 = vmatpush1.msra.mxu0 %v3554
    %3583 = vmatprep.subr.mxu0 %v3557
    %3584 = vmatpush1.msra.mxu0 %v3556
    %3585 = vmatprep.subr.mxu0 %v3559
    %3586 = vmatpush1.msra.mxu0 %v3558
    %3587 = vmatprep.subr.mxu0 %v3561
    %3588 = vmatpush1.msra.mxu0 %v3560
    %3589 = vmatprep.subr.mxu0 0.0
    %3590 = vmatpush1.msra.mxu0 0.0
    %3591 = vmatprep.subr.mxu0 0.0
    %3592 = vmatpush1.msra.mxu0 0.0
    %3593 = vmatprep.subr.mxu0 0.0
    %3594 = vmatpush1.msra.mxu0 0.0
    %3595 = vmatprep.subr.mxu0 0.0
    %3596 = vmatpush1.msra.mxu0 0.0
    %3597 = vmatprep.subr.mxu0 0.0
    %3598 = vmatpush1.msra.mxu0 0.0
    %3599 = vmatprep.subr.mxu0 0.0
    %3600 = vmatpush1.msra.mxu0 0.0
    %3601 = vmatprep.subr.mxu0 0.0
    %3602 = vmatpush1.msra.mxu0 0.0
    %3603 = vmatprep.subr.mxu0 0.0
    %3604 = vmatpush1.msra.mxu0 0.0
    %3605 = vmatprep.subr.mxu0 0.0
    %3606 = vmatpush1.msra.mxu0 0.0
    %3607 = vmatprep.subr.mxu0 0.0
    %3608 = vmatpush1.msra.mxu0 0.0
    %3609 = vmatprep.subr.mxu0 0.0
    %3610 = vmatpush1.msra.mxu0 0.0
    %3611 = vmatprep.subr.mxu0 0.0
    %3612 = vmatpush1.msra.mxu0 0.0
    %3613 = vmatprep.subr.mxu0 0.0
    %3614 = vmatpush1.msra.mxu0 0.0
    %3615 = vmatprep.subr.mxu0 0.0
    %3616 = vmatpush1.msra.mxu0 0.0
    %3617 = vmatprep.subr.mxu0 0.0
    %3618 = vmatpush1.msra.mxu0 0.0
    %3619 = vmatprep.subr.mxu0 0.0
    %3620 = vmatpush1.msra.mxu0 0.0
    %3621 = vmatprep.subr.mxu0 0.0
    %3622 = vmatpush1.msra.mxu0 0.0
    %3623 = vmatprep.subr.mxu0 0.0
    %3624 = vmatpush1.msra.mxu0 0.0
    %3625 = vmatprep.subr.mxu0 0.0
    %3626 = vmatpush1.msra.mxu0 0.0
    %3627 = vmatprep.subr.mxu0 0.0
    %3628 = vmatpush1.msra.mxu0 0.0
    %3629 = vmatprep.subr.mxu0 0.0
    %3630 = vmatpush1.msra.mxu0 0.0
    %3631 = vmatprep.subr.mxu0 0.0
    %3632 = vmatpush1.msra.mxu0 0.0
    %3633 = vmatprep.subr.mxu0 0.0
    %3634 = vmatpush1.msra.mxu0 0.0
    %3635 = vmatprep.subr.mxu0 0.0
    %3636 = vmatpush1.msra.mxu0 0.0
    %3637 = vmatprep.subr.mxu0 0.0
    %3638 = vmatpush1.msra.mxu0 0.0
    %3639 = vmatprep.subr.mxu0 0.0
    %3640 = vmatpush1.msra.mxu0 0.0
    %3641 = vmatprep.subr.mxu0 0.0
    %3642 = vmatpush1.msra.mxu0 0.0
    %3643 = vmatprep.subr.mxu0 0.0
    %3644 = vmatpush1.msra.mxu0 0.0
    %3645 = vmatprep.mubr.f32.mxu0 0.0
    %3646 = vmatmul.mubr.f32.gmra.mrb[0].mxu0 %v3576
    %v3647 = vpop.f32.mrb[0].mxu0
    %v3648 = vadd.f32 %v3568, %v3647
    %v3649 = vpop.f32.mrb[0].mxu0
    %v3650 = vadd.f32 %v3572, %v3649
    %3651 = vmatprep.mubr.f32.mxu0 0.0
    %3652 = vmatmul.mubr.f32.gmra.mrb[0].mxu0 %v3579
    %v3653 = vpop.f32.mrb[0].mxu0
    %v3654 = vadd.f32 %v3568, %v3653
    %v3655 = vpop.f32.mrb[0].mxu0
    %v3656 = vadd.f32 %v3572, %v3655
    %3657 = vdwg.mxu0
    %v3658 = vmul.f32 %v3650, 0.5
    %v3659 = vmul.f32 %v3656, 0.5
    %v3660 = vmul.f32 %v3650, 0.70710677
    %v3661 = vmul.f32 %v3656, 0.70710677
    %vm3662 = vcmp.lt.f32.partialorder %v3660, 0.0
    %vm3663 = vcmp.lt.f32.partialorder %v3661, 0.0
    %v3664 = vsel %vm3662, -1.0, 1.0
    %v3665 = vsel %vm3663, -1.0, 1.0
    %v3666 = vand.u32 2147483647, %v3660
    %v3667 = vand.u32 2147483647, %v3661
    %v3668 = vmul.f32 %v3666, 0.3275911
    %v3669 = vmul.f32 %v3667, 0.3275911
    %v3670 = vadd.f32 %v3668, 1.0
    %v3671 = vadd.f32 %v3669, 1.0
    %v3672 = vrcp.pop %v3670
    %v3673 = vrcp.pop %v3671
    %v3674 = vmul.f32 %v3670, %v3672
    %v3675 = vmul.f32 %v3671, %v3673
    %v3676 = vsub.f32 2.0, %v3674
    %v3677 = vsub.f32 2.0, %v3675
    %v3678 = vmul.f32 %v3672, %v3676
    %v3679 = vmul.f32 %v3673, %v3677
    %v3680 = vmul.f32 %v3678, 1.0614054
    %v3681 = vmul.f32 %v3679, 1.0614054
    %v3682 = vadd.f32 %v3680, -1.4531521
    %v3683 = vadd.f32 %v3681, -1.4531521
    %v3684 = vmul.f32 %v3682, %v3678
    %v3685 = vmul.f32 %v3683, %v3679
    %v3686 = vadd.f32 %v3684, 1.4214138
    %v3687 = vadd.f32 %v3685, 1.4214138
    %v3688 = vmul.f32 %v3686, %v3678
    %v3689 = vmul.f32 %v3687, %v3679
    %v3690 = vadd.f32 %v3688, -0.28449672
    %v3691 = vadd.f32 %v3689, -0.28449672
    %v3692 = vmul.f32 %v3690, %v3678
    %v3693 = vmul.f32 %v3691, %v3679
    %v3694 = vadd.f32 %v3692, 0.2548296
    %v3695 = vadd.f32 %v3693, 0.2548296
    %v3696 = vmul.f32 %v3694, %v3678
    %v3697 = vmul.f32 %v3695, %v3679
    %v3698 = vsub.f32 0.0, %v3666
    %v3699 = vsub.f32 0.0, %v3667
    %v3700 = vmul.f32 %v3698, %v3666
    %v3701 = vmul.f32 %v3699, %v3667
    %v3702 = vmul.f32 %v3700, 1.442695
    %v3703 = vpow.pop %v3702
    %v3704 = vmul.f32 %v3701, 1.442695
    %v3705 = vpow.pop %v3704
    %v3706 = vmul.f32 %v3696, %v3703
    %v3707 = vmul.f32 %v3697, %v3705
    %v3708 = vsub.f32 1.0, %v3706
    %v3709 = vsub.f32 1.0, %v3707
    %v3710 = vmul.f32 %v3664, %v3708
    %v3711 = vmul.f32 %v3665, %v3709
    %v3712 = vadd.f32 %v3710, 1.0
    %v3713 = vadd.f32 %v3711, 1.0
    %v3714 = vmul.f32 %v3658, %v3712
    %v3715 = vmul.f32 %v3659, %v3713
    %v3716 = vmul.f32 %v3648, %v3714
    %v3717 = vmul.f32 %v3654, %v3715
    %s3718 = scalar_lea.vmem %s5, 128
    %v3719 = vld [vmem:[%s3718] sm:$0xff]
    %v3720 = vld [vmem:[%s3718 + $0x8] sm:$0xff]
    %v3721 = vld [vmem:[%s3718 + $0x10] sm:$0xff]
    %v3722 = vld [vmem:[%s3718 + $0x18] sm:$0xff]
    %v3723 = vld [vmem:[%s3718 + $0x20] sm:$0xff]
    %v3724 = vld [vmem:[%s3718 + $0x28] sm:$0xff]
    %v3725 = vld [vmem:[%s3718 + $0x30] sm:$0xff]
    %v3726 = vld [vmem:[%s3718 + $0x38] sm:$0xff]
    %v3727 = vld [vmem:[%s3718 + $0x40] sm:$0xff]
    %v3728 = vld [vmem:[%s3718 + $0x48] sm:$0xff]
    %v3729 = vld [vmem:[%s3718 + $0x50] sm:$0xff]
    %v3730 = vld [vmem:[%s3718 + $0x58] sm:$0xff]
    %v3731 = vld [vmem:[%s3718 + $0x60] sm:$0xff]
    %v3732 = vld [vmem:[%s3718 + $0x68] sm:$0xff]
    %v3733 = vld [vmem:[%s3718 + $0x70] sm:$0xff]
    %v3734 = vld [vmem:[%s3718 + $0x78] sm:$0xff]
    %3735 = vmatprep.subr.mxu0 0.0
    %3736 = vmatpush1.msra.mxu0 %v3719
    %3737 = vmatprep.subr.mxu0 0.0
    %3738 = vmatpush1.msra.mxu0 %v3720
    %3739 = vmatprep.subr.mxu0 0.0
    %3740 = vmatpush1.msra.mxu0 %v3721
    %3741 = vmatprep.subr.mxu0 0.0
    %3742 = vmatpush1.msra.mxu0 %v3722
    %3743 = vmatprep.subr.mxu0 0.0
    %3744 = vmatpush1.msra.mxu0 %v3723
    %3745 = vmatprep.subr.mxu0 0.0
    %3746 = vmatpush1.msra.mxu0 %v3724
    %3747 = vmatprep.subr.mxu0 0.0
    %3748 = vmatpush1.msra.mxu0 %v3725
    %3749 = vmatprep.subr.mxu0 0.0
    %3750 = vmatpush1.msra.mxu0 %v3726
    %3751 = vmatprep.subr.mxu0 0.0
    %3752 = vmatpush1.msra.mxu0 %v3727
    %3753 = vmatprep.subr.mxu0 0.0
    %3754 = vmatpush1.msra.mxu0 %v3728
    %3755 = vmatprep.subr.mxu0 0.0
    %3756 = vmatpush1.msra.mxu0 %v3729
    %3757 = vmatprep.subr.mxu0 0.0
    %3758 = vmatpush1.msra.mxu0 %v3730
    %3759 = vmatprep.subr.mxu0 0.0
    %3760 = vmatpush1.msra.mxu0 %v3731
    %3761 = vmatprep.subr.mxu0 0.0
    %3762 = vmatpush1.msra.mxu0 %v3732
    %3763 = vmatprep.subr.mxu0 0.0
    %3764 = vmatpush1.msra.mxu0 %v3733
    %3765 = vmatprep.subr.mxu0 0.0
    %3766 = vmatpush1.msra.mxu0 %v3734
    %3767 = vmatprep.subr.mxu0 0.0
    %3768 = vmatpush1.msra.mxu0 0.0
    %3769 = vmatprep.subr.mxu0 0.0
    %3770 = vmatpush1.msra.mxu0 0.0
    %3771 = vmatprep.subr.mxu0 0.0
    %3772 = vmatpush1.msra.mxu0 0.0
    %3773 = vmatprep.subr.mxu0 0.0
    %3774 = vmatpush1.msra.mxu0 0.0
    %3775 = vmatprep.subr.mxu0 0.0
    %3776 = vmatpush1.msra.mxu0 0.0
    %3777 = vmatprep.subr.mxu0 0.0
    %3778 = vmatpush1.msra.mxu0 0.0
    %3779 = vmatprep.subr.mxu0 0.0
    %3780 = vmatpush1.msra.mxu0 0.0
    %3781 = vmatprep.subr.mxu0 0.0
    %3782 = vmatpush1.msra.mxu0 0.0
    %3783 = vmatprep.subr.mxu0 0.0
    %3784 = vmatpush1.msra.mxu0 0.0
    %3785 = vmatprep.subr.mxu0 0.0
    %3786 = vmatpush1.msra.mxu0 0.0
    %3787 = vmatprep.subr.mxu0 0.0
    %3788 = vmatpush1.msra.mxu0 0.0
    %3789 = vmatprep.subr.mxu0 0.0
    %3790 = vmatpush1.msra.mxu0 0.0
    %3791 = vmatprep.subr.mxu0 0.0
    %3792 = vmatpush1.msra.mxu0 0.0
    %3793 = vmatprep.subr.mxu0 0.0
    %3794 = vmatpush1.msra.mxu0 0.0
    %3795 = vmatprep.subr.mxu0 0.0
    %3796 = vmatpush1.msra.mxu0 0.0
    %3797 = vmatprep.subr.mxu0 0.0
    %3798 = vmatpush1.msra.mxu0 0.0
    %3799 = vmatprep.mubr.f32.mxu0 0.0
    %3800 = vmatmul.mubr.f32.gmra.mrb[0].mxu0 %v3716
    %v3801 = vpop.f32.mrb[0].mxu0
    %v3802 = vadd.f32 0.0, %v3801
    %v3803 = vpop.f32.mrb[0].mxu0
    %3804 = vmatprep.mubr.f32.mxu0 0.0
    %3805 = vmatmul.mubr.f32.gmra.mrb[0].mxu0 %v3717
    %v3806 = vpop.f32.mrb[0].mxu0
    %v3807 = vadd.f32 0.0, %v3806
    %v3808 = vpop.f32.mrb[0].mxu0
    %3809 = vdwg.mxu0
    %v3810 = vadd.f32 %v3513, %v3802
    %v3811 = vadd.f32 %v3514, %v3807
    %v3812 = vlaneseq
    %v3813 = vshrl.u32 %v3812, 7
    %v3814 = vsub.s32 5, %v3813
    %v3815 = vrot.slane %v1924, %v3814
    %v3816 = vadd.f32 %v3810, %v3815
    %v3817 = vadd.f32 %v3811, %v3815
    %3818 = vst.msk [vmem:[#allocation2] sm:$0xff] %vm30, %v3816
    %3819 = vst.msk [vmem:[#allocation2 + $0x8] sm:$0xff] %vm30, %v3817
    // Predicated region
    $region30: #{tpu_custom_call.1} parent=1 // pred_check
      _
    $region31: #{tpu_custom_call.1} parent=1 // pred_check_branch
      %3821 = sbr.rel (0) target = $region33
    $region32: #{tpu_custom_call.1} parent=1 // pred_region
      %s3823 = ssub.s32 256, 256
      %3824 = vsyncadd [#allocation3], %s3823
      %s3825 = sshll.u32 [#allocation2], 4
      %s3826 = int_to_ptr.vmem [resolvable:$true] %s3825
      %3831 = dma.vmem_to_hbm [thread:$0]  %s3826, 256, %s7, [#allocation3], 128, 128, 8
    $region33: #{tpu_custom_call.1} parent=1 // pred_fallthru
      _
    // Predicated region
    $region34: #{tpu_custom_call.1} parent=1 // pred_check
      _
    $region35: #{tpu_custom_call.1} parent=1 // pred_check_branch
      %3833 = sbr.rel (0) target = $region37
    $region36: #{tpu_custom_call.1} parent=1 // pred_region
      %3834 = dma.done [#allocation3], 256
    $region37: #{tpu_custom_call.1} parent=1 // pred_fallthru
      _
    %3835 = vsyncpa [#allocation3], 1

</llo_original>
